<compile_context>
chip_gen: v6e
topology: v6e:2x2x1
jax: 0.10.0
libtpu: 0.0.40
codegen_flags: <defaults>
</compile_context>

<pallas_src>
import functools
import math

import jax
import jax.numpy as jnp
import numpy as np
from jax.experimental import pallas as pl
from jax.experimental.pallas import tpu as pltpu


def _track_builder_kernel(n_heads, hidden, n_proto, out_dtype,
                          x_ref, pre_ref, k_ref,
                          wv_ref, bv_ref, wq_ref, bq_ref,
                          track_ref, attn_ref):
    x = x_ref[...]        # (TILE_N, feat_dim)
    pre = pre_ref[...]    # (TILE_N, in_dim)
    k = k_ref[...]        # (P, n_heads*hidden) -- precomputed prototype proj.

    # Linear projections on the MXU (biases are (1, n_heads*hidden) rows).
    v = jnp.dot(x, wv_ref[...], preferred_element_type=jnp.float32) + bv_ref[...]
    q = jnp.dot(pre, wq_ref[...], preferred_element_type=jnp.float32) + bq_ref[...]

    tn = x.shape[0]
    attn_acc = jnp.zeros((n_proto, tn), jnp.float32)

    for h in range(n_heads):  # static, small head count -> unrolled
        sl = slice(h * hidden, (h + 1) * hidden)
        qh = q[:, sl]          # (TILE_N, hidden)
        kh = k[:, sl]          # (P, hidden)
        vh = v[:, sl]          # (TILE_N, hidden)

        # Logits directly in (P, TILE_N) orientation: contraction over the
        # last dim of both operands is a native MXU "NT" matmul.
        logits = jax.lax.dot_general(
            kh, qh, (((1,), (1,)), ((), ())),
            preferred_element_type=jnp.float32)          # (P, TILE_N)

        # Softmax over the prototype (sublane) axis -- exact normalisation.
        m = jnp.max(logits, axis=0, keepdims=True)       # (1, TILE_N)
        e = jnp.exp(logits - m)
        denom = jnp.sum(e, axis=0, keepdims=True)        # (1, TILE_N)
        alpha = e * (1.0 / denom)                        # (P, TILE_N), exact

        attn_acc = attn_acc + alpha

        # sharp_alpha: exp(-entropy) = exp(sum(alpha * log(alpha + 1e-6)))
        sharp = jnp.exp(jnp.sum(alpha * jnp.log(alpha + 1e-6),
                                axis=0, keepdims=True))  # (1, TILE_N)
        aw = alpha * sharp                               # (P, TILE_N)

        # Single small XLU transpose per head, then per-prototype lane-dense
        # stores (avoids the (P, TILE_N, hidden) relayout / vreg spill).
        awT = aw.T                                       # (TILE_N, P)
        for p in range(n_proto):
            track_ref[p, :, sl] = (awT[:, p:p + 1] * vh).astype(out_dtype)

    attn_ref[...] = attn_acc * (1.0 / n_heads)           # (P, TILE_N)


def _pick_tile_n(n, n_proto, hh, feat_dim, in_dim, out_bytes, vmem_budget):
    """Largest lane-dense node tile with negligible padding waste that fits VMEM."""
    n_pad_min = -(-n // 128) * 128
    for t in (512, 384, 256, 128):
        n_pad = -(-n // t) * t
        if n_pad > max(n_pad_min * 1.05, n_pad_min):
            continue  # excessive padding waste (writeback-bound -> 1:1 tax)
        vmem = 2 * (t * feat_dim * 4 + t * in_dim * 4             # x, pre tiles
                    + n_proto * t * hh * out_bytes                # track_h block
                    + n_proto * t * 4)                            # attn block
        vmem += 2 * (n_proto * hh + feat_dim * hh + in_dim * hh + 2 * hh) * 4
        vmem += 4 * t * hh * 4                                    # q/v/product headroom
        if vmem <= vmem_budget:
            return t, n_pad
    return 128, n_pad_min


def base_track_builder(prototype, pre_emb, x, params, *, n_heads, hidden,
                       tile_n=None, out_dtype=jnp.bfloat16,
                       vmem_limit_bytes=48 * 1024 * 1024):
    """Pallas equivalent of baseTrackBuilder.forward (eval mode)."""
    N, feat_dim = x.shape
    P, in_dim = prototype.shape
    hh = n_heads * hidden
    out_bytes = jnp.dtype(out_dtype).itemsize

    if tile_n is None:
        tile_n, n_pad = _pick_tile_n(N, P, hh, feat_dim, in_dim, out_bytes,
                                     int(0.7 * vmem_limit_bytes))
    else:
        assert tile_n % 128 == 0, "tile_n must be a multiple of 128"
        n_pad = -(-N // tile_n) * tile_n

    if n_pad != N:
        x = jnp.pad(x, ((0, n_pad - N), (0, 0)))
        pre_emb = jnp.pad(pre_emb, ((0, n_pad - N), (0, 0)))

    # Hoist the prototype projection: independent of the node tile.
    k = jnp.dot(prototype, params["wk"],
                preferred_element_type=jnp.float32) + params["bk"]   # (P, hh)

    grid = (n_pad // tile_n,)
    kernel = functools.partial(_track_builder_kernel, n_heads, hidden, P,
                               out_dtype)

    cost = pl.CostEstimate(
        flops=2 * n_pad * hh * (feat_dim + in_dim + P) + n_heads * P * n_pad * hh,
        transcendentals=n_heads * n_pad * (2 * P + 1),
        bytes_accessed=(4 * (n_pad * (feat_dim + in_dim)
                             + P * hh + (feat_dim + in_dim + 2) * hh
                             + P * n_pad)
                        + out_bytes * P * n_pad * hh),
    )

    track_h, attn_t = pl.pallas_call(
        kernel,
        out_shape=(jax.ShapeDtypeStruct((P, n_pad, hh), out_dtype),
                   jax.ShapeDtypeStruct((P, n_pad), jnp.float32)),
        grid=grid,
        in_specs=[
            pl.BlockSpec((tile_n, feat_dim), lambda i: (i, 0)),   # x tile
            pl.BlockSpec((tile_n, in_dim),   lambda i: (i, 0)),   # pre_emb tile
            pl.BlockSpec((P, hh),            lambda i: (0, 0)),   # k (resident)
            pl.BlockSpec((feat_dim, hh),     lambda i: (0, 0)),   # wv (resident)
            pl.BlockSpec((1, hh),            lambda i: (0, 0)),   # bv
            pl.BlockSpec((in_dim, hh),       lambda i: (0, 0)),   # wq
            pl.BlockSpec((1, hh),            lambda i: (0, 0)),   # bq
        ],
        out_specs=(
            pl.BlockSpec((P, tile_n, hh), lambda i: (0, i, 0)),   # track_h tile
            pl.BlockSpec((P, tile_n),     lambda i: (0, i)),      # attn (P, N) lane-dense
        ),
        compiler_params=pltpu.CompilerParams(
            dimension_semantics=("parallel",),
            vmem_limit_bytes=vmem_limit_bytes),
        cost_estimate=cost,
    )(x, pre_emb, k,
      params["wv"], params["bv"], params["wq"], params["bq"])

    if n_pad != N:
        track_h = track_h[:, :N, :]
        attn_t = attn_t[:, :N]
    attn = attn_t.T  # (N, P) -- transpose done in XLA, kernel stores lane-dense
    return track_h, attn


def _reference(prototype, pre_emb, x, params, *, n_heads, hidden):
    """Pure-JAX reference mirroring the PyTorch forward (eval mode)."""
    v = x @ params["wv"] + params["bv"][0]
    q = pre_emb @ params["wq"] + params["bq"][0]
    k = prototype @ params["wk"] + params["bk"][0]
    v = jnp.stack([v[:, i * hidden:(i + 1) * hidden] for i in range(n_heads)])
    q = jnp.stack([q[:, i * hidden:(i + 1) * hidden] for i in range(n_heads)])
    k = jnp.stack([k[:, i * hidden:(i + 1) * hidden] for i in range(n_heads)])
    alpha1 = jnp.einsum("hnd,hpd->hnp", q, k)
    alpha = jax.nn.softmax(alpha1, axis=-1)
    attn = jnp.mean(alpha, axis=0)
    entropy = -jnp.sum(alpha * jnp.log(alpha + 1e-6), axis=-1)
    sharp = math.e ** (-entropy)
    track_h = v[:, :, None, :] * alpha[:, :, :, None]
    track_h = track_h * sharp[:, :, None, None]
    track_h = jnp.concatenate([track_h[i] for i in range(n_heads)], axis=-1)
    return jnp.transpose(track_h, (1, 0, 2)), attn


if __name__ == "__main__":
    # Small config consistent with the module (hidden chosen lane-dense).
    n_heads, hidden = 2, 128
    feat_dim, in_dim = 16, 8
    N, P = 200, 8              # nodes (non-multiple of tile -> exercises padding)
    hh = n_heads * hidden

    key = jax.random.PRNGKey(0)
    ks = jax.random.split(key, 9)
    params = {
        # weights stored as (in_features, out_features); biases as (1, out)
        "wv": jax.random.normal(ks[0], (feat_dim, hh), jnp.float32) * 0.1,
        "bv": jax.random.normal(ks[1], (1, hh), jnp.float32) * 0.1,
        "wq": jax.random.normal(ks[2], (in_dim, hh), jnp.float32) * 0.1,
        "bq": jax.random.normal(ks[3], (1, hh), jnp.float32) * 0.1,
        "wk": jax.random.normal(ks[4], (in_dim, hh), jnp.float32) * 0.1,
        "bk": jax.random.normal(ks[5], (1, hh), jnp.float32) * 0.1,
    }
    x = jax.random.normal(ks[6], (N, feat_dim), jnp.float32)
    pre_emb = jax.random.normal(ks[7], (N, in_dim), jnp.float32)
    prototype = jax.random.normal(ks[8], (P, in_dim), jnp.float32)

    track_h, attn = base_track_builder(prototype, pre_emb, x, params,
                                       n_heads=n_heads, hidden=hidden)
    jax.block_until_ready((track_h, attn))

    ref_track, ref_attn = _reference(prototype, pre_emb, x, params,
                                     n_heads=n_heads, hidden=hidden)
    assert track_h.shape == (P, N, hh) and attn.shape == (N, P)
    assert track_h.dtype == jnp.bfloat16

    # track_h is emitted bf16 (all math in f32, down-cast only at the store):
    # tolerance sized for bf16 rounding (~2^-9 relative) plus minor
    # MXU-vs-XLA matmul precision differences.
    np.testing.assert_allclose(np.asarray(track_h, dtype=np.float32),
                               np.asarray(ref_track),
                               rtol=2e-2, atol=2e-2)
    # attn is f32 with an exact softmax normalisation.
    np.testing.assert_allclose(np.asarray(attn), np.asarray(ref_attn),
                               rtol=1e-2, atol=1e-2)
    print("KERNEL_OK")
</pallas_src>

<mosaic_0001>
module attributes {stable_mosaic.version = 11 : i64} {
  func.func @_track_builder_kernel(%arg0: i32, %arg1: memref<256x16xf32, #tpu.memory_space<vmem>>, %arg2: memref<256x8xf32, #tpu.memory_space<vmem>>, %arg3: memref<8x256xf32, #tpu.memory_space<vmem>>, %arg4: memref<16x256xf32, #tpu.memory_space<vmem>>, %arg5: memref<1x256xf32, #tpu.memory_space<vmem>>, %arg6: memref<8x256xf32, #tpu.memory_space<vmem>>, %arg7: memref<1x256xf32, #tpu.memory_space<vmem>>, %arg8: memref<8x256x256xbf16, #tpu.memory_space<vmem>>, %arg9: memref<8x256xf32, #tpu.memory_space<vmem>>) attributes {dimension_semantics = [#tpu.dimension_semantics<parallel>], iteration_bounds = array<i64: 1>, scalar_prefetch = 0 : i64, scratch_operands = 0 : i64, tpu.core_type = #tpu.core_type<tc>, window_params = [{transform_indices = @transform_0, window_bounds = array<i64: 256, 16>}, {transform_indices = @transform_1, window_bounds = array<i64: 256, 8>}, {pipeline_mode = #tpu.pipeline_mode<synchronous>, transform_indices = @transform_2, window_bounds = array<i64: 8, 256>}, {pipeline_mode = #tpu.pipeline_mode<synchronous>, transform_indices = @transform_3, window_bounds = array<i64: 16, 256>}, {pipeline_mode = #tpu.pipeline_mode<synchronous>, transform_indices = @transform_4, window_bounds = array<i64: 1, 256>}, {pipeline_mode = #tpu.pipeline_mode<synchronous>, transform_indices = @transform_5, window_bounds = array<i64: 8, 256>}, {pipeline_mode = #tpu.pipeline_mode<synchronous>, transform_indices = @transform_6, window_bounds = array<i64: 1, 256>}, {transform_indices = @transform_7, window_bounds = array<i64: 8, 256, 256>}, {transform_indices = @transform_8, window_bounds = array<i64: 8, 256>}]} {
    %c0 = arith.constant 0 : index
    %c0_0 = arith.constant 0 : index
    %0 = vector.load %arg1[%c0, %c0_0] : memref<256x16xf32, #tpu.memory_space<vmem>>, vector<256x16xf32>
    %c0_1 = arith.constant 0 : index
    %c0_2 = arith.constant 0 : index
    %1 = vector.load %arg2[%c0_1, %c0_2] : memref<256x8xf32, #tpu.memory_space<vmem>>, vector<256x8xf32>
    %c0_3 = arith.constant 0 : index
    %c0_4 = arith.constant 0 : index
    %2 = vector.load %arg3[%c0_3, %c0_4] : memref<8x256xf32, #tpu.memory_space<vmem>>, vector<8x256xf32>
    %c0_5 = arith.constant 0 : index
    %c0_6 = arith.constant 0 : index
    %3 = vector.load %arg4[%c0_5, %c0_6] : memref<16x256xf32, #tpu.memory_space<vmem>>, vector<16x256xf32>
    %cst = arith.constant dense<0.000000e+00> : vector<256x256xf32>
    %4 = tpu.matmul %0, %3, %cst {dimension_numbers = #tpu.dot_dimension_numbers<[1], [0], [0], [1], [0, 0, 1, 1], [], []>} : vector<256x16xf32>, vector<16x256xf32>, vector<256x256xf32> -> vector<256x256xf32>
    %c0_7 = arith.constant 0 : index
    %c0_8 = arith.constant 0 : index
    %5 = vector.load %arg5[%c0_7, %c0_8] : memref<1x256xf32, #tpu.memory_space<vmem>>, vector<1x256xf32>
    %6 = vector.broadcast %5 : vector<1x256xf32> to vector<256x256xf32>
    %7 = arith.addf %4, %6 : vector<256x256xf32>
    %c0_9 = arith.constant 0 : index
    %c0_10 = arith.constant 0 : index
    %8 = vector.load %arg6[%c0_9, %c0_10] : memref<8x256xf32, #tpu.memory_space<vmem>>, vector<8x256xf32>
    %cst_11 = arith.constant dense<0.000000e+00> : vector<256x256xf32>
    %9 = tpu.matmul %1, %8, %cst_11 {dimension_numbers = #tpu.dot_dimension_numbers<[1], [0], [0], [1], [0, 0, 1, 1], [], []>} : vector<256x8xf32>, vector<8x256xf32>, vector<256x256xf32> -> vector<256x256xf32>
    %c0_12 = arith.constant 0 : index
    %c0_13 = arith.constant 0 : index
    %10 = vector.load %arg7[%c0_12, %c0_13] : memref<1x256xf32, #tpu.memory_space<vmem>>, vector<1x256xf32>
    %11 = vector.broadcast %10 : vector<1x256xf32> to vector<256x256xf32>
    %12 = arith.addf %9, %11 : vector<256x256xf32>
    %cst_14 = arith.constant 0.000000e+00 : f32
    %13 = vector.broadcast %cst_14 : f32 to vector<8x256xf32>
    %14 = vector.extract_strided_slice %12 {offsets = [0, 0], sizes = [256, 128], strides = [1, 1]} : vector<256x256xf32> to vector<256x128xf32>
    %15 = vector.extract_strided_slice %2 {offsets = [0, 0], sizes = [8, 128], strides = [1, 1]} : vector<8x256xf32> to vector<8x128xf32>
    %16 = vector.extract_strided_slice %7 {offsets = [0, 0], sizes = [256, 128], strides = [1, 1]} : vector<256x256xf32> to vector<256x128xf32>
    %cst_15 = arith.constant dense<0.000000e+00> : vector<8x256xf32>
    %17 = tpu.matmul %15, %14, %cst_15 {dimension_numbers = #tpu.dot_dimension_numbers<[1], [1], [0], [0], [0, 0, 1, 0], [], []>} : vector<8x128xf32>, vector<256x128xf32>, vector<8x256xf32> -> vector<8x256xf32>
    %cst_16 = arith.constant dense<0xFF800000> : vector<256xf32>
    %18 = vector.multi_reduction <maximumf>, %17, %cst_16 [0] : vector<8x256xf32> to vector<256xf32>
    %19 = vector.shape_cast %18 : vector<256xf32> to vector<1x256xf32>
    %20 = vector.broadcast %19 : vector<1x256xf32> to vector<8x256xf32>
    %21 = arith.subf %17, %20 : vector<8x256xf32>
    %22 = math.exp %21 : vector<8x256xf32>
    %cst_17 = arith.constant dense<0.000000e+00> : vector<256xf32>
    %23 = vector.multi_reduction <add>, %22, %cst_17 [0] : vector<8x256xf32> to vector<256xf32>
    %24 = vector.shape_cast %23 : vector<256xf32> to vector<1x256xf32>
    %cst_18 = arith.constant 1.000000e+00 : f32
    %25 = vector.broadcast %cst_18 : f32 to vector<1x256xf32>
    %26 = arith.divf %25, %24 : vector<1x256xf32>
    %27 = vector.broadcast %26 : vector<1x256xf32> to vector<8x256xf32>
    %28 = arith.mulf %22, %27 : vector<8x256xf32>
    %29 = arith.addf %13, %28 : vector<8x256xf32>
    %cst_19 = arith.constant 9.99999997E-7 : f32
    %30 = vector.broadcast %cst_19 : f32 to vector<8x256xf32>
    %31 = arith.addf %28, %30 : vector<8x256xf32>
    %32 = math.log %31 : vector<8x256xf32>
    %33 = arith.mulf %28, %32 : vector<8x256xf32>
    %cst_20 = arith.constant dense<0.000000e+00> : vector<256xf32>
    %34 = vector.multi_reduction <add>, %33, %cst_20 [0] : vector<8x256xf32> to vector<256xf32>
    %35 = vector.shape_cast %34 : vector<256xf32> to vector<1x256xf32>
    %36 = math.exp %35 : vector<1x256xf32>
    %37 = vector.broadcast %36 : vector<1x256xf32> to vector<8x256xf32>
    %38 = arith.mulf %28, %37 : vector<8x256xf32>
    %39 = tpu.transpose %38, [1, 0] : vector<8x256xf32> -> vector<256x8xf32>
    %40 = vector.extract_strided_slice %39 {offsets = [0, 0], sizes = [256, 1], strides = [1, 1]} : vector<256x8xf32> to vector<256x1xf32>
    %41 = vector.broadcast %40 : vector<256x1xf32> to vector<256x128xf32>
    %42 = arith.mulf %41, %16 : vector<256x128xf32>
    %43 = arith.truncf %42 : vector<256x128xf32> to vector<256x128xbf16>
    %c0_21 = arith.constant 0 : index
    %c0_22 = arith.constant 0 : index
    %c0_23 = arith.constant 0 : index
    %44 = vector.load %arg8[%c0_21, %c0_22, %c0_23] : memref<8x256x256xbf16, #tpu.memory_space<vmem>>, vector<1x256x128xbf16>
    %45 = vector.shape_cast %44 : vector<1x256x128xbf16> to vector<256x128xbf16>
    %46 = vector.shape_cast %43 : vector<256x128xbf16> to vector<1x256x128xbf16>
    tpu.vector_store %arg8[%c0_21, %c0_22, %c0_23], %46 {strides = array<i32>} : memref<8x256x256xbf16, #tpu.memory_space<vmem>>, vector<1x256x128xbf16>,
    %47 = vector.extract_strided_slice %39 {offsets = [0, 1], sizes = [256, 1], strides = [1, 1]} : vector<256x8xf32> to vector<256x1xf32>
    %48 = vector.broadcast %47 : vector<256x1xf32> to vector<256x128xf32>
    %49 = arith.mulf %48, %16 : vector<256x128xf32>
    %50 = arith.truncf %49 : vector<256x128xf32> to vector<256x128xbf16>
    %c1 = arith.constant 1 : index
    %c0_24 = arith.constant 0 : index
    %c0_25 = arith.constant 0 : index
    %51 = vector.load %arg8[%c1, %c0_24, %c0_25] : memref<8x256x256xbf16, #tpu.memory_space<vmem>>, vector<1x256x128xbf16>
    %52 = vector.shape_cast %51 : vector<1x256x128xbf16> to vector<256x128xbf16>
    %53 = vector.shape_cast %50 : vector<256x128xbf16> to vector<1x256x128xbf16>
    tpu.vector_store %arg8[%c1, %c0_24, %c0_25], %53 {strides = array<i32>} : memref<8x256x256xbf16, #tpu.memory_space<vmem>>, vector<1x256x128xbf16>,
    %54 = vector.extract_strided_slice %39 {offsets = [0, 2], sizes = [256, 1], strides = [1, 1]} : vector<256x8xf32> to vector<256x1xf32>
    %55 = vector.broadcast %54 : vector<256x1xf32> to vector<256x128xf32>
    %56 = arith.mulf %55, %16 : vector<256x128xf32>
    %57 = arith.truncf %56 : vector<256x128xf32> to vector<256x128xbf16>
    %c2 = arith.constant 2 : index
    %c0_26 = arith.constant 0 : index
    %c0_27 = arith.constant 0 : index
    %58 = vector.load %arg8[%c2, %c0_26, %c0_27] : memref<8x256x256xbf16, #tpu.memory_space<vmem>>, vector<1x256x128xbf16>
    %59 = vector.shape_cast %58 : vector<1x256x128xbf16> to vector<256x128xbf16>
    %60 = vector.shape_cast %57 : vector<256x128xbf16> to vector<1x256x128xbf16>
    tpu.vector_store %arg8[%c2, %c0_26, %c0_27], %60 {strides = array<i32>} : memref<8x256x256xbf16, #tpu.memory_space<vmem>>, vector<1x256x128xbf16>,
    %61 = vector.extract_strided_slice %39 {offsets = [0, 3], sizes = [256, 1], strides = [1, 1]} : vector<256x8xf32> to vector<256x1xf32>
    %62 = vector.broadcast %61 : vector<256x1xf32> to vector<256x128xf32>
    %63 = arith.mulf %62, %16 : vector<256x128xf32>
    %64 = arith.truncf %63 : vector<256x128xf32> to vector<256x128xbf16>
    %c3 = arith.constant 3 : index
    %c0_28 = arith.constant 0 : index
    %c0_29 = arith.constant 0 : index
    %65 = vector.load %arg8[%c3, %c0_28, %c0_29] : memref<8x256x256xbf16, #tpu.memory_space<vmem>>, vector<1x256x128xbf16>
    %66 = vector.shape_cast %65 : vector<1x256x128xbf16> to vector<256x128xbf16>
    %67 = vector.shape_cast %64 : vector<256x128xbf16> to vector<1x256x128xbf16>
    tpu.vector_store %arg8[%c3, %c0_28, %c0_29], %67 {strides = array<i32>} : memref<8x256x256xbf16, #tpu.memory_space<vmem>>, vector<1x256x128xbf16>,
    %68 = vector.extract_strided_slice %39 {offsets = [0, 4], sizes = [256, 1], strides = [1, 1]} : vector<256x8xf32> to vector<256x1xf32>
    %69 = vector.broadcast %68 : vector<256x1xf32> to vector<256x128xf32>
    %70 = arith.mulf %69, %16 : vector<256x128xf32>
    %71 = arith.truncf %70 : vector<256x128xf32> to vector<256x128xbf16>
    %c4 = arith.constant 4 : index
    %c0_30 = arith.constant 0 : index
    %c0_31 = arith.constant 0 : index
    %72 = vector.load %arg8[%c4, %c0_30, %c0_31] : memref<8x256x256xbf16, #tpu.memory_space<vmem>>, vector<1x256x128xbf16>
    %73 = vector.shape_cast %72 : vector<1x256x128xbf16> to vector<256x128xbf16>
    %74 = vector.shape_cast %71 : vector<256x128xbf16> to vector<1x256x128xbf16>
    tpu.vector_store %arg8[%c4, %c0_30, %c0_31], %74 {strides = array<i32>} : memref<8x256x256xbf16, #tpu.memory_space<vmem>>, vector<1x256x128xbf16>,
    %75 = vector.extract_strided_slice %39 {offsets = [0, 5], sizes = [256, 1], strides = [1, 1]} : vector<256x8xf32> to vector<256x1xf32>
    %76 = vector.broadcast %75 : vector<256x1xf32> to vector<256x128xf32>
    %77 = arith.mulf %76, %16 : vector<256x128xf32>
    %78 = arith.truncf %77 : vector<256x128xf32> to vector<256x128xbf16>
    %c5 = arith.constant 5 : index
    %c0_32 = arith.constant 0 : index
    %c0_33 = arith.constant 0 : index
    %79 = vector.load %arg8[%c5, %c0_32, %c0_33] : memref<8x256x256xbf16, #tpu.memory_space<vmem>>, vector<1x256x128xbf16>
    %80 = vector.shape_cast %79 : vector<1x256x128xbf16> to vector<256x128xbf16>
    %81 = vector.shape_cast %78 : vector<256x128xbf16> to vector<1x256x128xbf16>
    tpu.vector_store %arg8[%c5, %c0_32, %c0_33], %81 {strides = array<i32>} : memref<8x256x256xbf16, #tpu.memory_space<vmem>>, vector<1x256x128xbf16>,
    %82 = vector.extract_strided_slice %39 {offsets = [0, 6], sizes = [256, 1], strides = [1, 1]} : vector<256x8xf32> to vector<256x1xf32>
    %83 = vector.broadcast %82 : vector<256x1xf32> to vector<256x128xf32>
    %84 = arith.mulf %83, %16 : vector<256x128xf32>
    %85 = arith.truncf %84 : vector<256x128xf32> to vector<256x128xbf16>
    %c6 = arith.constant 6 : index
    %c0_34 = arith.constant 0 : index
    %c0_35 = arith.constant 0 : index
    %86 = vector.load %arg8[%c6, %c0_34, %c0_35] : memref<8x256x256xbf16, #tpu.memory_space<vmem>>, vector<1x256x128xbf16>
    %87 = vector.shape_cast %86 : vector<1x256x128xbf16> to vector<256x128xbf16>
    %88 = vector.shape_cast %85 : vector<256x128xbf16> to vector<1x256x128xbf16>
    tpu.vector_store %arg8[%c6, %c0_34, %c0_35], %88 {strides = array<i32>} : memref<8x256x256xbf16, #tpu.memory_space<vmem>>, vector<1x256x128xbf16>,
    %89 = vector.extract_strided_slice %39 {offsets = [0, 7], sizes = [256, 1], strides = [1, 1]} : vector<256x8xf32> to vector<256x1xf32>
    %90 = vector.broadcast %89 : vector<256x1xf32> to vector<256x128xf32>
    %91 = arith.mulf %90, %16 : vector<256x128xf32>
    %92 = arith.truncf %91 : vector<256x128xf32> to vector<256x128xbf16>
    %c7 = arith.constant 7 : index
    %c0_36 = arith.constant 0 : index
    %c0_37 = arith.constant 0 : index
    %93 = vector.load %arg8[%c7, %c0_36, %c0_37] : memref<8x256x256xbf16, #tpu.memory_space<vmem>>, vector<1x256x128xbf16>
    %94 = vector.shape_cast %93 : vector<1x256x128xbf16> to vector<256x128xbf16>
    %95 = vector.shape_cast %92 : vector<256x128xbf16> to vector<1x256x128xbf16>
    tpu.vector_store %arg8[%c7, %c0_36, %c0_37], %95 {strides = array<i32>} : memref<8x256x256xbf16, #tpu.memory_space<vmem>>, vector<1x256x128xbf16>,
    %96 = vector.extract_strided_slice %12 {offsets = [0, 128], sizes = [256, 128], strides = [1, 1]} : vector<256x256xf32> to vector<256x128xf32>
    %97 = vector.extract_strided_slice %2 {offsets = [0, 128], sizes = [8, 128], strides = [1, 1]} : vector<8x256xf32> to vector<8x128xf32>
    %98 = vector.extract_strided_slice %7 {offsets = [0, 128], sizes = [256, 128], strides = [1, 1]} : vector<256x256xf32> to vector<256x128xf32>
    %cst_38 = arith.constant dense<0.000000e+00> : vector<8x256xf32>
    %99 = tpu.matmul %97, %96, %cst_38 {dimension_numbers = #tpu.dot_dimension_numbers<[1], [1], [0], [0], [0, 0, 1, 0], [], []>} : vector<8x128xf32>, vector<256x128xf32>, vector<8x256xf32> -> vector<8x256xf32>
    %cst_39 = arith.constant dense<0xFF800000> : vector<256xf32>
    %100 = vector.multi_reduction <maximumf>, %99, %cst_39 [0] : vector<8x256xf32> to vector<256xf32>
    %101 = vector.shape_cast %100 : vector<256xf32> to vector<1x256xf32>
    %102 = vector.broadcast %101 : vector<1x256xf32> to vector<8x256xf32>
    %103 = arith.subf %99, %102 : vector<8x256xf32>
    %104 = math.exp %103 : vector<8x256xf32>
    %cst_40 = arith.constant dense<0.000000e+00> : vector<256xf32>
    %105 = vector.multi_reduction <add>, %104, %cst_40 [0] : vector<8x256xf32> to vector<256xf32>
    %106 = vector.shape_cast %105 : vector<256xf32> to vector<1x256xf32>
    %cst_41 = arith.constant 1.000000e+00 : f32
    %107 = vector.broadcast %cst_41 : f32 to vector<1x256xf32>
    %108 = arith.divf %107, %106 : vector<1x256xf32>
    %109 = vector.broadcast %108 : vector<1x256xf32> to vector<8x256xf32>
    %110 = arith.mulf %104, %109 : vector<8x256xf32>
    %111 = arith.addf %29, %110 : vector<8x256xf32>
    %cst_42 = arith.constant 9.99999997E-7 : f32
    %112 = vector.broadcast %cst_42 : f32 to vector<8x256xf32>
    %113 = arith.addf %110, %112 : vector<8x256xf32>
    %114 = math.log %113 : vector<8x256xf32>
    %115 = arith.mulf %110, %114 : vector<8x256xf32>
    %cst_43 = arith.constant dense<0.000000e+00> : vector<256xf32>
    %116 = vector.multi_reduction <add>, %115, %cst_43 [0] : vector<8x256xf32> to vector<256xf32>
    %117 = vector.shape_cast %116 : vector<256xf32> to vector<1x256xf32>
    %118 = math.exp %117 : vector<1x256xf32>
    %119 = vector.broadcast %118 : vector<1x256xf32> to vector<8x256xf32>
    %120 = arith.mulf %110, %119 : vector<8x256xf32>
    %121 = tpu.transpose %120, [1, 0] : vector<8x256xf32> -> vector<256x8xf32>
    %122 = vector.extract_strided_slice %121 {offsets = [0, 0], sizes = [256, 1], strides = [1, 1]} : vector<256x8xf32> to vector<256x1xf32>
    %123 = vector.broadcast %122 : vector<256x1xf32> to vector<256x128xf32>
    %124 = arith.mulf %123, %98 : vector<256x128xf32>
    %125 = arith.truncf %124 : vector<256x128xf32> to vector<256x128xbf16>
    %c0_44 = arith.constant 0 : index
    %c0_45 = arith.constant 0 : index
    %c128 = arith.constant 128 : index
    %126 = vector.load %arg8[%c0_44, %c0_45, %c128] : memref<8x256x256xbf16, #tpu.memory_space<vmem>>, vector<1x256x128xbf16>
    %127 = vector.shape_cast %126 : vector<1x256x128xbf16> to vector<256x128xbf16>
    %128 = vector.shape_cast %125 : vector<256x128xbf16> to vector<1x256x128xbf16>
    tpu.vector_store %arg8[%c0_44, %c0_45, %c128], %128 {strides = array<i32>} : memref<8x256x256xbf16, #tpu.memory_space<vmem>>, vector<1x256x128xbf16>,
    %129 = vector.extract_strided_slice %121 {offsets = [0, 1], sizes = [256, 1], strides = [1, 1]} : vector<256x8xf32> to vector<256x1xf32>
    %130 = vector.broadcast %129 : vector<256x1xf32> to vector<256x128xf32>
    %131 = arith.mulf %130, %98 : vector<256x128xf32>
    %132 = arith.truncf %131 : vector<256x128xf32> to vector<256x128xbf16>
    %c1_46 = arith.constant 1 : index
    %c0_47 = arith.constant 0 : index
    %c128_48 = arith.constant 128 : index
    %133 = vector.load %arg8[%c1_46, %c0_47, %c128_48] : memref<8x256x256xbf16, #tpu.memory_space<vmem>>, vector<1x256x128xbf16>
    %134 = vector.shape_cast %133 : vector<1x256x128xbf16> to vector<256x128xbf16>
    %135 = vector.shape_cast %132 : vector<256x128xbf16> to vector<1x256x128xbf16>
    tpu.vector_store %arg8[%c1_46, %c0_47, %c128_48], %135 {strides = array<i32>} : memref<8x256x256xbf16, #tpu.memory_space<vmem>>, vector<1x256x128xbf16>,
    %136 = vector.extract_strided_slice %121 {offsets = [0, 2], sizes = [256, 1], strides = [1, 1]} : vector<256x8xf32> to vector<256x1xf32>
    %137 = vector.broadcast %136 : vector<256x1xf32> to vector<256x128xf32>
    %138 = arith.mulf %137, %98 : vector<256x128xf32>
    %139 = arith.truncf %138 : vector<256x128xf32> to vector<256x128xbf16>
    %c2_49 = arith.constant 2 : index
    %c0_50 = arith.constant 0 : index
    %c128_51 = arith.constant 128 : index
    %140 = vector.load %arg8[%c2_49, %c0_50, %c128_51] : memref<8x256x256xbf16, #tpu.memory_space<vmem>>, vector<1x256x128xbf16>
    %141 = vector.shape_cast %140 : vector<1x256x128xbf16> to vector<256x128xbf16>
    %142 = vector.shape_cast %139 : vector<256x128xbf16> to vector<1x256x128xbf16>
    tpu.vector_store %arg8[%c2_49, %c0_50, %c128_51], %142 {strides = array<i32>} : memref<8x256x256xbf16, #tpu.memory_space<vmem>>, vector<1x256x128xbf16>,
    %143 = vector.extract_strided_slice %121 {offsets = [0, 3], sizes = [256, 1], strides = [1, 1]} : vector<256x8xf32> to vector<256x1xf32>
    %144 = vector.broadcast %143 : vector<256x1xf32> to vector<256x128xf32>
    %145 = arith.mulf %144, %98 : vector<256x128xf32>
    %146 = arith.truncf %145 : vector<256x128xf32> to vector<256x128xbf16>
    %c3_52 = arith.constant 3 : index
    %c0_53 = arith.constant 0 : index
    %c128_54 = arith.constant 128 : index
    %147 = vector.load %arg8[%c3_52, %c0_53, %c128_54] : memref<8x256x256xbf16, #tpu.memory_space<vmem>>, vector<1x256x128xbf16>
    %148 = vector.shape_cast %147 : vector<1x256x128xbf16> to vector<256x128xbf16>
    %149 = vector.shape_cast %146 : vector<256x128xbf16> to vector<1x256x128xbf16>
    tpu.vector_store %arg8[%c3_52, %c0_53, %c128_54], %149 {strides = array<i32>} : memref<8x256x256xbf16, #tpu.memory_space<vmem>>, vector<1x256x128xbf16>,
    %150 = vector.extract_strided_slice %121 {offsets = [0, 4], sizes = [256, 1], strides = [1, 1]} : vector<256x8xf32> to vector<256x1xf32>
    %151 = vector.broadcast %150 : vector<256x1xf32> to vector<256x128xf32>
    %152 = arith.mulf %151, %98 : vector<256x128xf32>
    %153 = arith.truncf %152 : vector<256x128xf32> to vector<256x128xbf16>
    %c4_55 = arith.constant 4 : index
    %c0_56 = arith.constant 0 : index
    %c128_57 = arith.constant 128 : index
    %154 = vector.load %arg8[%c4_55, %c0_56, %c128_57] : memref<8x256x256xbf16, #tpu.memory_space<vmem>>, vector<1x256x128xbf16>
    %155 = vector.shape_cast %154 : vector<1x256x128xbf16> to vector<256x128xbf16>
    %156 = vector.shape_cast %153 : vector<256x128xbf16> to vector<1x256x128xbf16>
    tpu.vector_store %arg8[%c4_55, %c0_56, %c128_57], %156 {strides = array<i32>} : memref<8x256x256xbf16, #tpu.memory_space<vmem>>, vector<1x256x128xbf16>,
    %157 = vector.extract_strided_slice %121 {offsets = [0, 5], sizes = [256, 1], strides = [1, 1]} : vector<256x8xf32> to vector<256x1xf32>
    %158 = vector.broadcast %157 : vector<256x1xf32> to vector<256x128xf32>
    %159 = arith.mulf %158, %98 : vector<256x128xf32>
    %160 = arith.truncf %159 : vector<256x128xf32> to vector<256x128xbf16>
    %c5_58 = arith.constant 5 : index
    %c0_59 = arith.constant 0 : index
    %c128_60 = arith.constant 128 : index
    %161 = vector.load %arg8[%c5_58, %c0_59, %c128_60] : memref<8x256x256xbf16, #tpu.memory_space<vmem>>, vector<1x256x128xbf16>
    %162 = vector.shape_cast %161 : vector<1x256x128xbf16> to vector<256x128xbf16>
    %163 = vector.shape_cast %160 : vector<256x128xbf16> to vector<1x256x128xbf16>
    tpu.vector_store %arg8[%c5_58, %c0_59, %c128_60], %163 {strides = array<i32>} : memref<8x256x256xbf16, #tpu.memory_space<vmem>>, vector<1x256x128xbf16>,
    %164 = vector.extract_strided_slice %121 {offsets = [0, 6], sizes = [256, 1], strides = [1, 1]} : vector<256x8xf32> to vector<256x1xf32>
    %165 = vector.broadcast %164 : vector<256x1xf32> to vector<256x128xf32>
    %166 = arith.mulf %165, %98 : vector<256x128xf32>
    %167 = arith.truncf %166 : vector<256x128xf32> to vector<256x128xbf16>
    %c6_61 = arith.constant 6 : index
    %c0_62 = arith.constant 0 : index
    %c128_63 = arith.constant 128 : index
    %168 = vector.load %arg8[%c6_61, %c0_62, %c128_63] : memref<8x256x256xbf16, #tpu.memory_space<vmem>>, vector<1x256x128xbf16>
    %169 = vector.shape_cast %168 : vector<1x256x128xbf16> to vector<256x128xbf16>
    %170 = vector.shape_cast %167 : vector<256x128xbf16> to vector<1x256x128xbf16>
    tpu.vector_store %arg8[%c6_61, %c0_62, %c128_63], %170 {strides = array<i32>} : memref<8x256x256xbf16, #tpu.memory_space<vmem>>, vector<1x256x128xbf16>,
    %171 = vector.extract_strided_slice %121 {offsets = [0, 7], sizes = [256, 1], strides = [1, 1]} : vector<256x8xf32> to vector<256x1xf32>
    %172 = vector.broadcast %171 : vector<256x1xf32> to vector<256x128xf32>
    %173 = arith.mulf %172, %98 : vector<256x128xf32>
    %174 = arith.truncf %173 : vector<256x128xf32> to vector<256x128xbf16>
    %c7_64 = arith.constant 7 : index
    %c0_65 = arith.constant 0 : index
    %c128_66 = arith.constant 128 : index
    %175 = vector.load %arg8[%c7_64, %c0_65, %c128_66] : memref<8x256x256xbf16, #tpu.memory_space<vmem>>, vector<1x256x128xbf16>
    %176 = vector.shape_cast %175 : vector<1x256x128xbf16> to vector<256x128xbf16>
    %177 = vector.shape_cast %174 : vector<256x128xbf16> to vector<1x256x128xbf16>
    tpu.vector_store %arg8[%c7_64, %c0_65, %c128_66], %177 {strides = array<i32>} : memref<8x256x256xbf16, #tpu.memory_space<vmem>>, vector<1x256x128xbf16>,
    %cst_67 = arith.constant 5.000000e-01 : f32
    %178 = vector.broadcast %cst_67 : f32 to vector<8x256xf32>
    %179 = arith.mulf %111, %178 : vector<8x256xf32>
    %c0_68 = arith.constant 0 : index
    %c0_69 = arith.constant 0 : index
    %180 = vector.load %arg9[%c0_68, %c0_69] : memref<8x256xf32, #tpu.memory_space<vmem>>, vector<8x256xf32>
    tpu.vector_store %arg9[%c0_68, %c0_69], %179 {strides = array<i32>} : memref<8x256xf32, #tpu.memory_space<vmem>>, vector<8x256xf32>,
    return
  }
  func.func @transform_0(%arg0: i32) -> (i32, i32) {
    %c0_i32 = arith.constant 0 : i32
    %c0_i32_0 = arith.constant 0 : i32
    return %arg0, %c0_i32 : i32, i32
  }
  func.func @transform_1(%arg0: i32) -> (i32, i32) {
    %c0_i32 = arith.constant 0 : i32
    %c0_i32_0 = arith.constant 0 : i32
    return %arg0, %c0_i32 : i32, i32
  }
  func.func @transform_2(%arg0: i32) -> (i32, i32) {
    %c0_i32 = arith.constant 0 : i32
    %c0_i32_0 = arith.constant 0 : i32
    %c0_i32_1 = arith.constant 0 : i32
    return %c0_i32, %c0_i32_0 : i32, i32
  }
  func.func @transform_3(%arg0: i32) -> (i32, i32) {
    %c0_i32 = arith.constant 0 : i32
    %c0_i32_0 = arith.constant 0 : i32
    %c0_i32_1 = arith.constant 0 : i32
    return %c0_i32, %c0_i32_0 : i32, i32
  }
  func.func @transform_4(%arg0: i32) -> (i32, i32) {
    %c0_i32 = arith.constant 0 : i32
    %c0_i32_0 = arith.constant 0 : i32
    %c0_i32_1 = arith.constant 0 : i32
    return %c0_i32, %c0_i32_0 : i32, i32
  }
  func.func @transform_5(%arg0: i32) -> (i32, i32) {
    %c0_i32 = arith.constant 0 : i32
    %c0_i32_0 = arith.constant 0 : i32
    %c0_i32_1 = arith.constant 0 : i32
    return %c0_i32, %c0_i32_0 : i32, i32
  }
  func.func @transform_6(%arg0: i32) -> (i32, i32) {
    %c0_i32 = arith.constant 0 : i32
    %c0_i32_0 = arith.constant 0 : i32
    %c0_i32_1 = arith.constant 0 : i32
    return %c0_i32, %c0_i32_0 : i32, i32
  }
  func.func @transform_7(%arg0: i32) -> (i32, i32, i32) {
    %c0_i32 = arith.constant 0 : i32
    %c0_i32_0 = arith.constant 0 : i32
    %c0_i32_1 = arith.constant 0 : i32
    return %c0_i32, %arg0, %c0_i32_0 : i32, i32, i32
  }
  func.func @transform_8(%arg0: i32) -> (i32, i32) {
    %c0_i32 = arith.constant 0 : i32
    %c0_i32_0 = arith.constant 0 : i32
    return %c0_i32, %arg0 : i32, i32
  }
}

</mosaic_0001>

<llo_original>
// kernel: tpu_custom_call.1
$region0: #{tpu_custom_call.1}
  #allocation0 [shape = 'u32[]', space=smem, size = 0x4, offset = 0x4, fixed_abs, tag = 'smem constant byte address 0x4 - core index']
  #allocation1 [shape = 'u32[144,128]{1,0:T(1,128)}', space=vmem, size = 0x12000, scoped, tag = 'internal scratch']
  %s0 = inlined_call_operand.vmem [shape: f32[256,16], index: 0, kind: input, shape index: {}]
  %s1 = inlined_call_operand.vmem [shape: f32[256,8], index: 1, kind: input, shape index: {}]
  %s2 = inlined_call_operand.vmem [shape: f32[8,256], index: 2, kind: input, shape index: {}]
  %s3 = inlined_call_operand.vmem [shape: f32[16,256], index: 3, kind: input, shape index: {}]
  %s4 = inlined_call_operand.vmem [shape: f32[1,256], index: 4, kind: input, shape index: {}]
  %s5 = inlined_call_operand.vmem [shape: f32[8,256], index: 5, kind: input, shape index: {}]
  %s6 = inlined_call_operand.vmem [shape: f32[1,256], index: 6, kind: input, shape index: {}]
  %s7 = inlined_call_operand.hbm [shape: bf16[8,256,256], index: 7, kind: output, shape index: {0}]
  %s8 = inlined_call_operand.hbm [shape: f32[8,256], index: 8, kind: output, shape index: {1}]
  %9 = xla_tuple %s7, %s8
  %s10 = sld [smem:[#allocation0]]
  $region46: #{tpu_custom_call.1} parent=0
    _
  %s12 = ssub.s32 1, %s10
  %s13 = scalar_select 0, %s12, %s10
  $region1: #{tpu_custom_call.1} parent=0
    #allocation2 [shape = 'u8[1048576]{0}', space=vmem, size = 0x100000, scoped, tag = 'output window, operand 0, single buffered']
    #allocation3 [shape = 's32[1]{0}', space=sflag, size = 0x4, scoped, tag = 'scoped memory for tpu_custom_call.1']
    #allocation4 [shape = 'u8[8192]{0}', space=vmem, size = 0x2000, scoped, tag = 'output window, operand 1, single buffered']
    #allocation5 [shape = 's32[1]{0}', space=sflag, size = 0x4, scoped, tag = 'scoped memory for tpu_custom_call.1']
    %14 = vsyncpa [#allocation3], 0
    %15 = vsyncpa [#allocation5], 0
    // Predicated region
    $region2: #{tpu_custom_call.1} parent=1 // pred_check
      _
    $region3: #{tpu_custom_call.1} parent=1 // pred_check_branch
      %17 = sbr.rel (0) target = $region5
    $region4: #{tpu_custom_call.1} parent=1 // pred_region
      _
    $region5: #{tpu_custom_call.1} parent=1 // pred_fallthru
      _
    // Predicated region
    $region6: #{tpu_custom_call.1} parent=1 // pred_check
      _
    $region7: #{tpu_custom_call.1} parent=1 // pred_check_branch
      %19 = sbr.rel (0) target = $region9
    $region8: #{tpu_custom_call.1} parent=1 // pred_region
      _
    $region9: #{tpu_custom_call.1} parent=1 // pred_fallthru
      _
    // Predicated region
    $region10: #{tpu_custom_call.1} parent=1 // pred_check
      _
    $region11: #{tpu_custom_call.1} parent=1 // pred_check_branch
      %21 = sbr.rel (0) target = $region13
    $region12: #{tpu_custom_call.1} parent=1 // pred_region
      _
    $region13: #{tpu_custom_call.1} parent=1 // pred_fallthru
      _
    // Predicated region
    $region14: #{tpu_custom_call.1} parent=1 // pred_check
      _
    $region15: #{tpu_custom_call.1} parent=1 // pred_check_branch
      %23 = sbr.rel (0) target = $region17
    $region16: #{tpu_custom_call.1} parent=1 // pred_region
      _
    $region17: #{tpu_custom_call.1} parent=1 // pred_fallthru
      _
    // Predicated region
    $region18: #{tpu_custom_call.1} parent=1 // pred_check
      _
    $region19: #{tpu_custom_call.1} parent=1 // pred_check_branch
      %25 = sbr.rel (0) target = $region21
    $region20: #{tpu_custom_call.1} parent=1 // pred_region
      _
    $region21: #{tpu_custom_call.1} parent=1 // pred_fallthru
      _
    // Predicated region
    $region22: #{tpu_custom_call.1} parent=1 // pred_check
      _
    $region23: #{tpu_custom_call.1} parent=1 // pred_check_branch
      %27 = sbr.rel (0) target = $region25
    $region24: #{tpu_custom_call.1} parent=1 // pred_region
      _
    $region25: #{tpu_custom_call.1} parent=1 // pred_fallthru
      _
    // Predicated region
    $region26: #{tpu_custom_call.1} parent=1 // pred_check
      _
    $region27: #{tpu_custom_call.1} parent=1 // pred_check_branch
      %29 = sbr.rel (0) target = $region29
    $region28: #{tpu_custom_call.1} parent=1 // pred_region
      _
    $region29: #{tpu_custom_call.1} parent=1 // pred_fallthru
      _
    %v30 = vld [vmem:[%s0] sm:$0xff]
    %v31 = vld [vmem:[%s0 + $0x8] sm:$0xff]
    %v32 = vld [vmem:[%s0 + $0x10] sm:$0xff]
    %v33 = vld [vmem:[%s0 + $0x18] sm:$0xff]
    %v34 = vld [vmem:[%s0 + $0x20] sm:$0xff]
    %v35 = vld [vmem:[%s0 + $0x28] sm:$0xff]
    %v36 = vld [vmem:[%s0 + $0x30] sm:$0xff]
    %v37 = vld [vmem:[%s0 + $0x38] sm:$0xff]
    %v38 = vld [vmem:[%s0 + $0x40] sm:$0xff]
    %v39 = vld [vmem:[%s0 + $0x48] sm:$0xff]
    %v40 = vld [vmem:[%s0 + $0x50] sm:$0xff]
    %v41 = vld [vmem:[%s0 + $0x58] sm:$0xff]
    %v42 = vld [vmem:[%s0 + $0x60] sm:$0xff]
    %v43 = vld [vmem:[%s0 + $0x68] sm:$0xff]
    %v44 = vld [vmem:[%s0 + $0x70] sm:$0xff]
    %v45 = vld [vmem:[%s0 + $0x78] sm:$0xff]
    %v46 = vld [vmem:[%s0 + $0x80] sm:$0xff]
    %v47 = vld [vmem:[%s0 + $0x88] sm:$0xff]
    %v48 = vld [vmem:[%s0 + $0x90] sm:$0xff]
    %v49 = vld [vmem:[%s0 + $0x98] sm:$0xff]
    %v50 = vld [vmem:[%s0 + $0xa0] sm:$0xff]
    %v51 = vld [vmem:[%s0 + $0xa8] sm:$0xff]
    %v52 = vld [vmem:[%s0 + $0xb0] sm:$0xff]
    %v53 = vld [vmem:[%s0 + $0xb8] sm:$0xff]
    %v54 = vld [vmem:[%s0 + $0xc0] sm:$0xff]
    %v55 = vld [vmem:[%s0 + $0xc8] sm:$0xff]
    %v56 = vld [vmem:[%s0 + $0xd0] sm:$0xff]
    %v57 = vld [vmem:[%s0 + $0xd8] sm:$0xff]
    %v58 = vld [vmem:[%s0 + $0xe0] sm:$0xff]
    %v59 = vld [vmem:[%s0 + $0xe8] sm:$0xff]
    %v60 = vld [vmem:[%s0 + $0xf0] sm:$0xff]
    %v61 = vld [vmem:[%s0 + $0xf8] sm:$0xff]
    %v62 = vld [vmem:[%s1] sm:$0xff]
    %v63 = vld [vmem:[%s1 + $0x8] sm:$0xff]
    %v64 = vld [vmem:[%s1 + $0x10] sm:$0xff]
    %v65 = vld [vmem:[%s1 + $0x18] sm:$0xff]
    %v66 = vld [vmem:[%s1 + $0x20] sm:$0xff]
    %v67 = vld [vmem:[%s1 + $0x28] sm:$0xff]
    %v68 = vld [vmem:[%s1 + $0x30] sm:$0xff]
    %v69 = vld [vmem:[%s1 + $0x38] sm:$0xff]
    %v70 = vld [vmem:[%s1 + $0x40] sm:$0xff]
    %v71 = vld [vmem:[%s1 + $0x48] sm:$0xff]
    %v72 = vld [vmem:[%s1 + $0x50] sm:$0xff]
    %v73 = vld [vmem:[%s1 + $0x58] sm:$0xff]
    %v74 = vld [vmem:[%s1 + $0x60] sm:$0xff]
    %v75 = vld [vmem:[%s1 + $0x68] sm:$0xff]
    %v76 = vld [vmem:[%s1 + $0x70] sm:$0xff]
    %v77 = vld [vmem:[%s1 + $0x78] sm:$0xff]
    %v78 = vld [vmem:[%s1 + $0x80] sm:$0xff]
    %v79 = vld [vmem:[%s1 + $0x88] sm:$0xff]
    %v80 = vld [vmem:[%s1 + $0x90] sm:$0xff]
    %v81 = vld [vmem:[%s1 + $0x98] sm:$0xff]
    %v82 = vld [vmem:[%s1 + $0xa0] sm:$0xff]
    %v83 = vld [vmem:[%s1 + $0xa8] sm:$0xff]
    %v84 = vld [vmem:[%s1 + $0xb0] sm:$0xff]
    %v85 = vld [vmem:[%s1 + $0xb8] sm:$0xff]
    %v86 = vld [vmem:[%s1 + $0xc0] sm:$0xff]
    %v87 = vld [vmem:[%s1 + $0xc8] sm:$0xff]
    %v88 = vld [vmem:[%s1 + $0xd0] sm:$0xff]
    %v89 = vld [vmem:[%s1 + $0xd8] sm:$0xff]
    %v90 = vld [vmem:[%s1 + $0xe0] sm:$0xff]
    %v91 = vld [vmem:[%s1 + $0xe8] sm:$0xff]
    %v92 = vld [vmem:[%s1 + $0xf0] sm:$0xff]
    %v93 = vld [vmem:[%s1 + $0xf8] sm:$0xff]
    %v94 = vld [vmem:[%s2] sm:$0xff]
    %v95 = vld [vmem:[%s2 + $0x8] sm:$0xff]
    %v96 = vld [vmem:[%s3] sm:$0xff]
    %v97 = vld [vmem:[%s3 + $0x8] sm:$0xff]
    %v98 = vld [vmem:[%s3 + $0x10] sm:$0xff]
    %v99 = vld [vmem:[%s3 + $0x18] sm:$0xff]
    %v100 = vld [vmem:[%s4] sm:$0x3]
    %v102 = vlaneseq
    %v103 = vshrl.u32 %v102, 7
    %v104 = vsub.s32 0, %v103
    %v105 = vrot.slane %v100, %v104
    %v106 = vlaneseq
    %v107 = vshrl.u32 %v106, 7
    %v108 = vsub.s32 1, %v107
    %v109 = vrot.slane %v100, %v108
    %vm112 = vcmask 130048
    %v114 = vsel %vm112, %v30, 0
    %v117 = vsel %vm112, %v31, 0
    %v120 = vsel %vm112, %v32, 0
    %v123 = vsel %vm112, %v33, 0
    %v126 = vsel %vm112, %v34, 0
    %v129 = vsel %vm112, %v35, 0
    %v132 = vsel %vm112, %v36, 0
    %v135 = vsel %vm112, %v37, 0
    %v138 = vsel %vm112, %v38, 0
    %v141 = vsel %vm112, %v39, 0
    %v144 = vsel %vm112, %v40, 0
    %v147 = vsel %vm112, %v41, 0
    %v150 = vsel %vm112, %v42, 0
    %v153 = vsel %vm112, %v43, 0
    %v156 = vsel %vm112, %v44, 0
    %v159 = vsel %vm112, %v45, 0
    %v162 = vsel %vm112, %v46, 0
    %v165 = vsel %vm112, %v47, 0
    %v168 = vsel %vm112, %v48, 0
    %v171 = vsel %vm112, %v49, 0
    %v174 = vsel %vm112, %v50, 0
    %v177 = vsel %vm112, %v51, 0
    %v180 = vsel %vm112, %v52, 0
    %v183 = vsel %vm112, %v53, 0
    %v186 = vsel %vm112, %v54, 0
    %v189 = vsel %vm112, %v55, 0
    %v192 = vsel %vm112, %v56, 0
    %v195 = vsel %vm112, %v57, 0
    %v198 = vsel %vm112, %v58, 0
    %v201 = vsel %vm112, %v59, 0
    %v204 = vsel %vm112, %v60, 0
    %v207 = vsel %vm112, %v61, 0
    %209 = vmatprep.subr.mxu0 0.0
    %210 = vmatpush1.msra.mxu0 0.0
    %211 = vmatprep.subr.mxu0 0.0
    %212 = vmatpush1.msra.mxu0 0.0
    %213 = vmatprep.subr.mxu0 0.0
    %214 = vmatpush1.msra.mxu0 0.0
    %215 = vmatprep.subr.mxu0 0.0
    %216 = vmatpush1.msra.mxu0 0.0
    %217 = vmatprep.subr.mxu0 0.0
    %218 = vmatpush1.msra.mxu0 0.0
    %219 = vmatprep.subr.mxu0 0.0
    %220 = vmatpush1.msra.mxu0 0.0
    %221 = vmatprep.subr.mxu0 0.0
    %222 = vmatpush1.msra.mxu0 0.0
    %223 = vmatprep.subr.mxu0 0.0
    %224 = vmatpush1.msra.mxu0 0.0
    %225 = vmatprep.subr.mxu0 0.0
    %226 = vmatpush1.msra.mxu0 0.0
    %227 = vmatprep.subr.mxu0 0.0
    %228 = vmatpush1.msra.mxu0 0.0
    %229 = vmatprep.subr.mxu0 0.0
    %230 = vmatpush1.msra.mxu0 0.0
    %231 = vmatprep.subr.mxu0 0.0
    %232 = vmatpush1.msra.mxu0 0.0
    %233 = vmatprep.subr.mxu0 0.0
    %234 = vmatpush1.msra.mxu0 0.0
    %235 = vmatprep.subr.mxu0 0.0
    %236 = vmatpush1.msra.mxu0 0.0
    %237 = vmatprep.subr.mxu0 %v99
    %238 = vmatpush1.msra.mxu0 %v98
    %239 = vmatprep.subr.mxu0 %v97
    %240 = vmatpush1.msra.mxu0 %v96
    %241 = vmatprep.subr.mxu0 0.0
    %242 = vmatpush2.msra.mxu0 0.0
    %243 = vmatprep.subr.mxu0 0.0
    %244 = vmatpush2.msra.mxu0 0.0
    %245 = vmatprep.subr.mxu0 0.0
    %246 = vmatpush2.msra.mxu0 0.0
    %247 = vmatprep.subr.mxu0 0.0
    %248 = vmatpush2.msra.mxu0 0.0
    %249 = vmatprep.subr.mxu0 0.0
    %250 = vmatpush2.msra.mxu0 0.0
    %251 = vmatprep.subr.mxu0 0.0
    %252 = vmatpush2.msra.mxu0 0.0
    %253 = vmatprep.subr.mxu0 0.0
    %254 = vmatpush2.msra.mxu0 0.0
    %255 = vmatprep.subr.mxu0 0.0
    %256 = vmatpush2.msra.mxu0 0.0
    %257 = vmatprep.subr.mxu0 0.0
    %258 = vmatpush2.msra.mxu0 0.0
    %259 = vmatprep.subr.mxu0 0.0
    %260 = vmatpush2.msra.mxu0 0.0
    %261 = vmatprep.subr.mxu0 0.0
    %262 = vmatpush2.msra.mxu0 0.0
    %263 = vmatprep.subr.mxu0 0.0
    %264 = vmatpush2.msra.mxu0 0.0
    %265 = vmatprep.subr.mxu0 0.0
    %266 = vmatpush2.msra.mxu0 0.0
    %267 = vmatprep.subr.mxu0 0.0
    %268 = vmatpush2.msra.mxu0 0.0
    %269 = vmatprep.subr.mxu0 0.0
    %270 = vmatpush2.msra.mxu0 0.0
    %271 = vmatprep.subr.mxu0 0.0
    %272 = vmatpush2.msra.mxu0 0.0
    %273 = vmatprep.mubr.f32.mxu0 0.0
    %274 = vmatmul.mubr.f32.gmra.mxu0 %v114
    %v275 = vpop.f32.mrf.mxu0
    %v276 = vadd.f32 %v105, %v275
    %v277 = vpop.f32.mrf.mxu0
    %v278 = vadd.f32 %v109, %v277
    %279 = vmatprep.mubr.f32.mxu0 0.0
    %280 = vmatmul.mubr.f32.gmra.mxu0 %v117
    %v281 = vpop.f32.mrf.mxu0
    %v282 = vadd.f32 %v105, %v281
    %v283 = vpop.f32.mrf.mxu0
    %v284 = vadd.f32 %v109, %v283
    %285 = vmatprep.mubr.f32.mxu0 0.0
    %286 = vmatmul.mubr.f32.gmra.mxu0 %v120
    %v287 = vpop.f32.mrf.mxu0
    %v288 = vadd.f32 %v105, %v287
    %v289 = vpop.f32.mrf.mxu0
    %v290 = vadd.f32 %v109, %v289
    %291 = vmatprep.mubr.f32.mxu0 0.0
    %292 = vmatmul.mubr.f32.gmra.mxu0 %v123
    %v293 = vpop.f32.mrf.mxu0
    %v294 = vadd.f32 %v105, %v293
    %v295 = vpop.f32.mrf.mxu0
    %v296 = vadd.f32 %v109, %v295
    %297 = vmatprep.mubr.f32.mxu0 0.0
    %298 = vmatmul.mubr.f32.gmra.mxu0 %v126
    %v299 = vpop.f32.mrf.mxu0
    %v300 = vadd.f32 %v105, %v299
    %v301 = vpop.f32.mrf.mxu0
    %v302 = vadd.f32 %v109, %v301
    %303 = vmatprep.mubr.f32.mxu0 0.0
    %304 = vmatmul.mubr.f32.gmra.mxu0 %v129
    %v305 = vpop.f32.mrf.mxu0
    %v306 = vadd.f32 %v105, %v305
    %v307 = vpop.f32.mrf.mxu0
    %v308 = vadd.f32 %v109, %v307
    %309 = vmatprep.mubr.f32.mxu0 0.0
    %310 = vmatmul.mubr.f32.gmra.mxu0 %v132
    %v311 = vpop.f32.mrf.mxu0
    %v312 = vadd.f32 %v105, %v311
    %v313 = vpop.f32.mrf.mxu0
    %v314 = vadd.f32 %v109, %v313
    %315 = vmatprep.mubr.f32.mxu0 0.0
    %316 = vmatmul.mubr.f32.gmra.mxu0 %v135
    %v317 = vpop.f32.mrf.mxu0
    %v318 = vadd.f32 %v105, %v317
    %v319 = vpop.f32.mrf.mxu0
    %v320 = vadd.f32 %v109, %v319
    %321 = vmatprep.mubr.f32.mxu0 0.0
    %322 = vmatmul.mubr.f32.gmra.mxu0 %v138
    %v323 = vpop.f32.mrf.mxu0
    %v324 = vadd.f32 %v105, %v323
    %v325 = vpop.f32.mrf.mxu0
    %v326 = vadd.f32 %v109, %v325
    %327 = vmatprep.mubr.f32.mxu0 0.0
    %328 = vmatmul.mubr.f32.gmra.mxu0 %v141
    %v329 = vpop.f32.mrf.mxu0
    %v330 = vadd.f32 %v105, %v329
    %v331 = vpop.f32.mrf.mxu0
    %v332 = vadd.f32 %v109, %v331
    %333 = vmatprep.mubr.f32.mxu0 0.0
    %334 = vmatmul.mubr.f32.gmra.mxu0 %v144
    %v335 = vpop.f32.mrf.mxu0
    %v336 = vadd.f32 %v105, %v335
    %v337 = vpop.f32.mrf.mxu0
    %v338 = vadd.f32 %v109, %v337
    %339 = vmatprep.mubr.f32.mxu0 0.0
    %340 = vmatmul.mubr.f32.gmra.mxu0 %v147
    %v341 = vpop.f32.mrf.mxu0
    %v342 = vadd.f32 %v105, %v341
    %v343 = vpop.f32.mrf.mxu0
    %v344 = vadd.f32 %v109, %v343
    %345 = vmatprep.mubr.f32.mxu0 0.0
    %346 = vmatmul.mubr.f32.gmra.mxu0 %v150
    %v347 = vpop.f32.mrf.mxu0
    %v348 = vadd.f32 %v105, %v347
    %v349 = vpop.f32.mrf.mxu0
    %v350 = vadd.f32 %v109, %v349
    %351 = vmatprep.mubr.f32.mxu0 0.0
    %352 = vmatmul.mubr.f32.gmra.mxu0 %v153
    %v353 = vpop.f32.mrf.mxu0
    %v354 = vadd.f32 %v105, %v353
    %v355 = vpop.f32.mrf.mxu0
    %v356 = vadd.f32 %v109, %v355
    %357 = vmatprep.mubr.f32.mxu0 0.0
    %358 = vmatmul.mubr.f32.gmra.mxu0 %v156
    %v359 = vpop.f32.mrf.mxu0
    %v360 = vadd.f32 %v105, %v359
    %v361 = vpop.f32.mrf.mxu0
    %v362 = vadd.f32 %v109, %v361
    %363 = vmatprep.mubr.f32.mxu0 0.0
    %364 = vmatmul.mubr.f32.gmra.mxu0 %v159
    %v365 = vpop.f32.mrf.mxu0
    %v366 = vadd.f32 %v105, %v365
    %v367 = vpop.f32.mrf.mxu0
    %v368 = vadd.f32 %v109, %v367
    %369 = vmatprep.mubr.f32.mxu0 0.0
    %370 = vmatmul.mubr.f32.gmra.mxu0 %v162
    %v371 = vpop.f32.mrf.mxu0
    %v372 = vadd.f32 %v105, %v371
    %v373 = vpop.f32.mrf.mxu0
    %v374 = vadd.f32 %v109, %v373
    %375 = vmatprep.mubr.f32.mxu0 0.0
    %376 = vmatmul.mubr.f32.gmra.mxu0 %v165
    %v377 = vpop.f32.mrf.mxu0
    %v378 = vadd.f32 %v105, %v377
    %v379 = vpop.f32.mrf.mxu0
    %v380 = vadd.f32 %v109, %v379
    %381 = vmatprep.mubr.f32.mxu0 0.0
    %382 = vmatmul.mubr.f32.gmra.mxu0 %v168
    %v383 = vpop.f32.mrf.mxu0
    %v384 = vadd.f32 %v105, %v383
    %v385 = vpop.f32.mrf.mxu0
    %v386 = vadd.f32 %v109, %v385
    %387 = vmatprep.mubr.f32.mxu0 0.0
    %388 = vmatmul.mubr.f32.gmra.mxu0 %v171
    %v389 = vpop.f32.mrf.mxu0
    %v390 = vadd.f32 %v105, %v389
    %v391 = vpop.f32.mrf.mxu0
    %v392 = vadd.f32 %v109, %v391
    %393 = vmatprep.mubr.f32.mxu0 0.0
    %394 = vmatmul.mubr.f32.gmra.mxu0 %v174
    %v395 = vpop.f32.mrf.mxu0
    %v396 = vadd.f32 %v105, %v395
    %v397 = vpop.f32.mrf.mxu0
    %v398 = vadd.f32 %v109, %v397
    %399 = vmatprep.mubr.f32.mxu0 0.0
    %400 = vmatmul.mubr.f32.gmra.mxu0 %v177
    %v401 = vpop.f32.mrf.mxu0
    %v402 = vadd.f32 %v105, %v401
    %v403 = vpop.f32.mrf.mxu0
    %v404 = vadd.f32 %v109, %v403
    %405 = vmatprep.mubr.f32.mxu0 0.0
    %406 = vmatmul.mubr.f32.gmra.mxu0 %v180
    %v407 = vpop.f32.mrf.mxu0
    %v408 = vadd.f32 %v105, %v407
    %v409 = vpop.f32.mrf.mxu0
    %v410 = vadd.f32 %v109, %v409
    %411 = vmatprep.mubr.f32.mxu0 0.0
    %412 = vmatmul.mubr.f32.gmra.mxu0 %v183
    %v413 = vpop.f32.mrf.mxu0
    %v414 = vadd.f32 %v105, %v413
    %v415 = vpop.f32.mrf.mxu0
    %v416 = vadd.f32 %v109, %v415
    %417 = vmatprep.mubr.f32.mxu0 0.0
    %418 = vmatmul.mubr.f32.gmra.mxu0 %v186
    %v419 = vpop.f32.mrf.mxu0
    %v420 = vadd.f32 %v105, %v419
    %v421 = vpop.f32.mrf.mxu0
    %v422 = vadd.f32 %v109, %v421
    %423 = vmatprep.mubr.f32.mxu0 0.0
    %424 = vmatmul.mubr.f32.gmra.mxu0 %v189
    %v425 = vpop.f32.mrf.mxu0
    %v426 = vadd.f32 %v105, %v425
    %v427 = vpop.f32.mrf.mxu0
    %v428 = vadd.f32 %v109, %v427
    %429 = vmatprep.mubr.f32.mxu0 0.0
    %430 = vmatmul.mubr.f32.gmra.mxu0 %v192
    %v431 = vpop.f32.mrf.mxu0
    %v432 = vadd.f32 %v105, %v431
    %v433 = vpop.f32.mrf.mxu0
    %v434 = vadd.f32 %v109, %v433
    %435 = vmatprep.mubr.f32.mxu0 0.0
    %436 = vmatmul.mubr.f32.gmra.mxu0 %v195
    %v437 = vpop.f32.mrf.mxu0
    %v438 = vadd.f32 %v105, %v437
    %v439 = vpop.f32.mrf.mxu0
    %v440 = vadd.f32 %v109, %v439
    %441 = vmatprep.mubr.f32.mxu0 0.0
    %442 = vmatmul.mubr.f32.gmra.mxu0 %v198
    %v443 = vpop.f32.mrf.mxu0
    %v444 = vadd.f32 %v105, %v443
    %v445 = vpop.f32.mrf.mxu0
    %v446 = vadd.f32 %v109, %v445
    %447 = vmatprep.mubr.f32.mxu0 0.0
    %448 = vmatmul.mubr.f32.gmra.mxu0 %v201
    %v449 = vpop.f32.mrf.mxu0
    %v450 = vadd.f32 %v105, %v449
    %v451 = vpop.f32.mrf.mxu0
    %v452 = vadd.f32 %v109, %v451
    %453 = vmatprep.mubr.f32.mxu0 0.0
    %454 = vmatmul.mubr.f32.gmra.mxu0 %v204
    %v455 = vpop.f32.mrf.mxu0
    %v456 = vadd.f32 %v105, %v455
    %v457 = vpop.f32.mrf.mxu0
    %v458 = vadd.f32 %v109, %v457
    %459 = vmatprep.mubr.f32.mxu0 0.0
    %460 = vmatmul.mubr.f32.gmra.mxu0 %v207
    %v461 = vpop.f32.mrf.mxu0
    %v462 = vadd.f32 %v105, %v461
    %v463 = vpop.f32.mrf.mxu0
    %v464 = vadd.f32 %v109, %v463
    %465 = vdwg.mxu0
    %v466 = vld [vmem:[%s5] sm:$0xff]
    %v467 = vld [vmem:[%s5 + $0x8] sm:$0xff]
    %v468 = vld [vmem:[%s6] sm:$0x3]
    %v470 = vlaneseq
    %v471 = vshrl.u32 %v470, 7
    %v472 = vsub.s32 0, %v471
    %v473 = vrot.slane %v468, %v472
    %v474 = vlaneseq
    %v475 = vshrl.u32 %v474, 7
    %v476 = vsub.s32 1, %v475
    %v477 = vrot.slane %v468, %v476
    %vm480 = vcmask 64512
    %v482 = vsel %vm480, %v62, 0
    %v485 = vsel %vm480, %v63, 0
    %v488 = vsel %vm480, %v64, 0
    %v491 = vsel %vm480, %v65, 0
    %v494 = vsel %vm480, %v66, 0
    %v497 = vsel %vm480, %v67, 0
    %v500 = vsel %vm480, %v68, 0
    %v503 = vsel %vm480, %v69, 0
    %v506 = vsel %vm480, %v70, 0
    %v509 = vsel %vm480, %v71, 0
    %v512 = vsel %vm480, %v72, 0
    %v515 = vsel %vm480, %v73, 0
    %v518 = vsel %vm480, %v74, 0
    %v521 = vsel %vm480, %v75, 0
    %v524 = vsel %vm480, %v76, 0
    %v527 = vsel %vm480, %v77, 0
    %v530 = vsel %vm480, %v78, 0
    %v533 = vsel %vm480, %v79, 0
    %v536 = vsel %vm480, %v80, 0
    %v539 = vsel %vm480, %v81, 0
    %v542 = vsel %vm480, %v82, 0
    %v545 = vsel %vm480, %v83, 0
    %v548 = vsel %vm480, %v84, 0
    %v551 = vsel %vm480, %v85, 0
    %v554 = vsel %vm480, %v86, 0
    %v557 = vsel %vm480, %v87, 0
    %v560 = vsel %vm480, %v88, 0
    %v563 = vsel %vm480, %v89, 0
    %v566 = vsel %vm480, %v90, 0
    %v569 = vsel %vm480, %v91, 0
    %v572 = vsel %vm480, %v92, 0
    %v575 = vsel %vm480, %v93, 0
    %577 = vmatprep.subr.mxu0 0.0
    %578 = vmatpush1.msra.mxu0 0.0
    %579 = vmatprep.subr.mxu0 0.0
    %580 = vmatpush1.msra.mxu0 0.0
    %581 = vmatprep.subr.mxu0 0.0
    %582 = vmatpush1.msra.mxu0 0.0
    %583 = vmatprep.subr.mxu0 0.0
    %584 = vmatpush1.msra.mxu0 0.0
    %585 = vmatprep.subr.mxu0 0.0
    %586 = vmatpush1.msra.mxu0 0.0
    %587 = vmatprep.subr.mxu0 0.0
    %588 = vmatpush1.msra.mxu0 0.0
    %589 = vmatprep.subr.mxu0 0.0
    %590 = vmatpush1.msra.mxu0 0.0
    %591 = vmatprep.subr.mxu0 0.0
    %592 = vmatpush1.msra.mxu0 0.0
    %593 = vmatprep.subr.mxu0 0.0
    %594 = vmatpush1.msra.mxu0 0.0
    %595 = vmatprep.subr.mxu0 0.0
    %596 = vmatpush1.msra.mxu0 0.0
    %597 = vmatprep.subr.mxu0 0.0
    %598 = vmatpush1.msra.mxu0 0.0
    %599 = vmatprep.subr.mxu0 0.0
    %600 = vmatpush1.msra.mxu0 0.0
    %601 = vmatprep.subr.mxu0 0.0
    %602 = vmatpush1.msra.mxu0 0.0
    %603 = vmatprep.subr.mxu0 0.0
    %604 = vmatpush1.msra.mxu0 0.0
    %605 = vmatprep.subr.mxu0 0.0
    %606 = vmatpush1.msra.mxu0 0.0
    %607 = vmatprep.subr.mxu0 %v467
    %608 = vmatpush1.msra.mxu0 %v466
    %609 = vmatprep.subr.mxu0 0.0
    %610 = vmatpush2.msra.mxu0 0.0
    %611 = vmatprep.subr.mxu0 0.0
    %612 = vmatpush2.msra.mxu0 0.0
    %613 = vmatprep.subr.mxu0 0.0
    %614 = vmatpush2.msra.mxu0 0.0
    %615 = vmatprep.subr.mxu0 0.0
    %616 = vmatpush2.msra.mxu0 0.0
    %617 = vmatprep.subr.mxu0 0.0
    %618 = vmatpush2.msra.mxu0 0.0
    %619 = vmatprep.subr.mxu0 0.0
    %620 = vmatpush2.msra.mxu0 0.0
    %621 = vmatprep.subr.mxu0 0.0
    %622 = vmatpush2.msra.mxu0 0.0
    %623 = vmatprep.subr.mxu0 0.0
    %624 = vmatpush2.msra.mxu0 0.0
    %625 = vmatprep.subr.mxu0 0.0
    %626 = vmatpush2.msra.mxu0 0.0
    %627 = vmatprep.subr.mxu0 0.0
    %628 = vmatpush2.msra.mxu0 0.0
    %629 = vmatprep.subr.mxu0 0.0
    %630 = vmatpush2.msra.mxu0 0.0
    %631 = vmatprep.subr.mxu0 0.0
    %632 = vmatpush2.msra.mxu0 0.0
    %633 = vmatprep.subr.mxu0 0.0
    %634 = vmatpush2.msra.mxu0 0.0
    %635 = vmatprep.subr.mxu0 0.0
    %636 = vmatpush2.msra.mxu0 0.0
    %637 = vmatprep.subr.mxu0 0.0
    %638 = vmatpush2.msra.mxu0 0.0
    %639 = vmatprep.subr.mxu0 0.0
    %640 = vmatpush2.msra.mxu0 0.0
    %641 = vmatprep.mubr.f32.mxu0 0.0
    %642 = vmatmul.mubr.f32.gmra.mxu0 %v482
    %v643 = vpop.f32.mrf.mxu0
    %v644 = vadd.f32 %v473, %v643
    %v645 = vpop.f32.mrf.mxu0
    %v646 = vadd.f32 %v477, %v645
    %647 = vmatprep.mubr.f32.mxu0 0.0
    %648 = vmatmul.mubr.f32.gmra.mxu0 %v485
    %v649 = vpop.f32.mrf.mxu0
    %v650 = vadd.f32 %v473, %v649
    %v651 = vpop.f32.mrf.mxu0
    %v652 = vadd.f32 %v477, %v651
    %653 = vmatprep.mubr.f32.mxu0 0.0
    %654 = vmatmul.mubr.f32.gmra.mxu0 %v488
    %v655 = vpop.f32.mrf.mxu0
    %v656 = vadd.f32 %v473, %v655
    %v657 = vpop.f32.mrf.mxu0
    %v658 = vadd.f32 %v477, %v657
    %659 = vmatprep.mubr.f32.mxu0 0.0
    %660 = vmatmul.mubr.f32.gmra.mxu0 %v491
    %v661 = vpop.f32.mrf.mxu0
    %v662 = vadd.f32 %v473, %v661
    %v663 = vpop.f32.mrf.mxu0
    %v664 = vadd.f32 %v477, %v663
    %665 = vmatprep.mubr.f32.mxu0 0.0
    %666 = vmatmul.mubr.f32.gmra.mxu0 %v494
    %v667 = vpop.f32.mrf.mxu0
    %v668 = vadd.f32 %v473, %v667
    %v669 = vpop.f32.mrf.mxu0
    %v670 = vadd.f32 %v477, %v669
    %671 = vmatprep.mubr.f32.mxu0 0.0
    %672 = vmatmul.mubr.f32.gmra.mxu0 %v497
    %v673 = vpop.f32.mrf.mxu0
    %v674 = vadd.f32 %v473, %v673
    %v675 = vpop.f32.mrf.mxu0
    %v676 = vadd.f32 %v477, %v675
    %677 = vmatprep.mubr.f32.mxu0 0.0
    %678 = vmatmul.mubr.f32.gmra.mxu0 %v500
    %v679 = vpop.f32.mrf.mxu0
    %v680 = vadd.f32 %v473, %v679
    %v681 = vpop.f32.mrf.mxu0
    %v682 = vadd.f32 %v477, %v681
    %683 = vmatprep.mubr.f32.mxu0 0.0
    %684 = vmatmul.mubr.f32.gmra.mxu0 %v503
    %v685 = vpop.f32.mrf.mxu0
    %v686 = vadd.f32 %v473, %v685
    %v687 = vpop.f32.mrf.mxu0
    %v688 = vadd.f32 %v477, %v687
    %689 = vmatprep.mubr.f32.mxu0 0.0
    %690 = vmatmul.mubr.f32.gmra.mxu0 %v506
    %v691 = vpop.f32.mrf.mxu0
    %v692 = vadd.f32 %v473, %v691
    %v693 = vpop.f32.mrf.mxu0
    %v694 = vadd.f32 %v477, %v693
    %695 = vmatprep.mubr.f32.mxu0 0.0
    %696 = vmatmul.mubr.f32.gmra.mxu0 %v509
    %v697 = vpop.f32.mrf.mxu0
    %v698 = vadd.f32 %v473, %v697
    %v699 = vpop.f32.mrf.mxu0
    %v700 = vadd.f32 %v477, %v699
    %701 = vmatprep.mubr.f32.mxu0 0.0
    %702 = vmatmul.mubr.f32.gmra.mxu0 %v512
    %v703 = vpop.f32.mrf.mxu0
    %v704 = vadd.f32 %v473, %v703
    %v705 = vpop.f32.mrf.mxu0
    %v706 = vadd.f32 %v477, %v705
    %707 = vmatprep.mubr.f32.mxu0 0.0
    %708 = vmatmul.mubr.f32.gmra.mxu0 %v515
    %v709 = vpop.f32.mrf.mxu0
    %v710 = vadd.f32 %v473, %v709
    %v711 = vpop.f32.mrf.mxu0
    %v712 = vadd.f32 %v477, %v711
    %713 = vmatprep.mubr.f32.mxu0 0.0
    %714 = vmatmul.mubr.f32.gmra.mxu0 %v518
    %v715 = vpop.f32.mrf.mxu0
    %v716 = vadd.f32 %v473, %v715
    %v717 = vpop.f32.mrf.mxu0
    %v718 = vadd.f32 %v477, %v717
    %719 = vmatprep.mubr.f32.mxu0 0.0
    %720 = vmatmul.mubr.f32.gmra.mxu0 %v521
    %v721 = vpop.f32.mrf.mxu0
    %v722 = vadd.f32 %v473, %v721
    %v723 = vpop.f32.mrf.mxu0
    %v724 = vadd.f32 %v477, %v723
    %725 = vmatprep.mubr.f32.mxu0 0.0
    %726 = vmatmul.mubr.f32.gmra.mxu0 %v524
    %v727 = vpop.f32.mrf.mxu0
    %v728 = vadd.f32 %v473, %v727
    %v729 = vpop.f32.mrf.mxu0
    %v730 = vadd.f32 %v477, %v729
    %731 = vmatprep.mubr.f32.mxu0 0.0
    %732 = vmatmul.mubr.f32.gmra.mxu0 %v527
    %v733 = vpop.f32.mrf.mxu0
    %v734 = vadd.f32 %v473, %v733
    %v735 = vpop.f32.mrf.mxu0
    %v736 = vadd.f32 %v477, %v735
    %737 = vmatprep.mubr.f32.mxu0 0.0
    %738 = vmatmul.mubr.f32.gmra.mxu0 %v530
    %v739 = vpop.f32.mrf.mxu0
    %v740 = vadd.f32 %v473, %v739
    %v741 = vpop.f32.mrf.mxu0
    %v742 = vadd.f32 %v477, %v741
    %743 = vmatprep.mubr.f32.mxu0 0.0
    %744 = vmatmul.mubr.f32.gmra.mxu0 %v533
    %v745 = vpop.f32.mrf.mxu0
    %v746 = vadd.f32 %v473, %v745
    %v747 = vpop.f32.mrf.mxu0
    %v748 = vadd.f32 %v477, %v747
    %749 = vmatprep.mubr.f32.mxu0 0.0
    %750 = vmatmul.mubr.f32.gmra.mxu0 %v536
    %v751 = vpop.f32.mrf.mxu0
    %v752 = vadd.f32 %v473, %v751
    %v753 = vpop.f32.mrf.mxu0
    %v754 = vadd.f32 %v477, %v753
    %755 = vmatprep.mubr.f32.mxu0 0.0
    %756 = vmatmul.mubr.f32.gmra.mxu0 %v539
    %v757 = vpop.f32.mrf.mxu0
    %v758 = vadd.f32 %v473, %v757
    %v759 = vpop.f32.mrf.mxu0
    %v760 = vadd.f32 %v477, %v759
    %761 = vmatprep.mubr.f32.mxu0 0.0
    %762 = vmatmul.mubr.f32.gmra.mxu0 %v542
    %v763 = vpop.f32.mrf.mxu0
    %v764 = vadd.f32 %v473, %v763
    %v765 = vpop.f32.mrf.mxu0
    %v766 = vadd.f32 %v477, %v765
    %767 = vmatprep.mubr.f32.mxu0 0.0
    %768 = vmatmul.mubr.f32.gmra.mxu0 %v545
    %v769 = vpop.f32.mrf.mxu0
    %v770 = vadd.f32 %v473, %v769
    %v771 = vpop.f32.mrf.mxu0
    %v772 = vadd.f32 %v477, %v771
    %773 = vmatprep.mubr.f32.mxu0 0.0
    %774 = vmatmul.mubr.f32.gmra.mxu0 %v548
    %v775 = vpop.f32.mrf.mxu0
    %v776 = vadd.f32 %v473, %v775
    %v777 = vpop.f32.mrf.mxu0
    %v778 = vadd.f32 %v477, %v777
    %779 = vmatprep.mubr.f32.mxu0 0.0
    %780 = vmatmul.mubr.f32.gmra.mxu0 %v551
    %v781 = vpop.f32.mrf.mxu0
    %v782 = vadd.f32 %v473, %v781
    %v783 = vpop.f32.mrf.mxu0
    %v784 = vadd.f32 %v477, %v783
    %785 = vmatprep.mubr.f32.mxu0 0.0
    %786 = vmatmul.mubr.f32.gmra.mxu0 %v554
    %v787 = vpop.f32.mrf.mxu0
    %v788 = vadd.f32 %v473, %v787
    %v789 = vpop.f32.mrf.mxu0
    %v790 = vadd.f32 %v477, %v789
    %791 = vmatprep.mubr.f32.mxu0 0.0
    %792 = vmatmul.mubr.f32.gmra.mxu0 %v557
    %v793 = vpop.f32.mrf.mxu0
    %v794 = vadd.f32 %v473, %v793
    %v795 = vpop.f32.mrf.mxu0
    %v796 = vadd.f32 %v477, %v795
    %797 = vmatprep.mubr.f32.mxu0 0.0
    %798 = vmatmul.mubr.f32.gmra.mxu0 %v560
    %v799 = vpop.f32.mrf.mxu0
    %v800 = vadd.f32 %v473, %v799
    %v801 = vpop.f32.mrf.mxu0
    %v802 = vadd.f32 %v477, %v801
    %803 = vmatprep.mubr.f32.mxu0 0.0
    %804 = vmatmul.mubr.f32.gmra.mxu0 %v563
    %v805 = vpop.f32.mrf.mxu0
    %v806 = vadd.f32 %v473, %v805
    %v807 = vpop.f32.mrf.mxu0
    %v808 = vadd.f32 %v477, %v807
    %809 = vmatprep.mubr.f32.mxu0 0.0
    %810 = vmatmul.mubr.f32.gmra.mxu0 %v566
    %v811 = vpop.f32.mrf.mxu0
    %v812 = vadd.f32 %v473, %v811
    %v813 = vpop.f32.mrf.mxu0
    %v814 = vadd.f32 %v477, %v813
    %815 = vmatprep.mubr.f32.mxu0 0.0
    %816 = vmatmul.mubr.f32.gmra.mxu0 %v569
    %v817 = vpop.f32.mrf.mxu0
    %v818 = vadd.f32 %v473, %v817
    %v819 = vpop.f32.mrf.mxu0
    %v820 = vadd.f32 %v477, %v819
    %821 = vmatprep.mubr.f32.mxu0 0.0
    %822 = vmatmul.mubr.f32.gmra.mxu0 %v572
    %v823 = vpop.f32.mrf.mxu0
    %v824 = vadd.f32 %v473, %v823
    %v825 = vpop.f32.mrf.mxu0
    %v826 = vadd.f32 %v477, %v825
    %827 = vmatprep.mubr.f32.mxu0 0.0
    %828 = vmatmul.mubr.f32.gmra.mxu0 %v575
    %v829 = vpop.f32.mrf.mxu0
    %v830 = vadd.f32 %v473, %v829
    %v831 = vpop.f32.mrf.mxu0
    %v832 = vadd.f32 %v477, %v831
    %833 = vdwg.mxu0
    %834 = vmatprep.subr.mxu0 0.0
    %835 = vmatpush1.xpose.msra.mxu0 %v734
    %836 = vmatprep.subr.mxu0 0.0
    %837 = vmatpush1.xpose.msra.mxu0 %v728
    %838 = vmatprep.subr.mxu0 0.0
    %839 = vmatpush1.xpose.msra.mxu0 %v722
    %840 = vmatprep.subr.mxu0 0.0
    %841 = vmatpush1.xpose.msra.mxu0 %v716
    %842 = vmatprep.subr.mxu0 0.0
    %843 = vmatpush1.xpose.msra.mxu0 %v710
    %844 = vmatprep.subr.mxu0 0.0
    %845 = vmatpush1.xpose.msra.mxu0 %v704
    %846 = vmatprep.subr.mxu0 0.0
    %847 = vmatpush1.xpose.msra.mxu0 %v698
    %848 = vmatprep.subr.mxu0 0.0
    %849 = vmatpush1.xpose.msra.mxu0 %v692
    %850 = vmatprep.subr.mxu0 0.0
    %851 = vmatpush1.xpose.msra.mxu0 %v686
    %852 = vmatprep.subr.mxu0 0.0
    %853 = vmatpush1.xpose.msra.mxu0 %v680
    %854 = vmatprep.subr.mxu0 0.0
    %855 = vmatpush1.xpose.msra.mxu0 %v674
    %856 = vmatprep.subr.mxu0 0.0
    %857 = vmatpush1.xpose.msra.mxu0 %v668
    %858 = vmatprep.subr.mxu0 0.0
    %859 = vmatpush1.xpose.msra.mxu0 %v662
    %860 = vmatprep.subr.mxu0 0.0
    %861 = vmatpush1.xpose.msra.mxu0 %v656
    %862 = vmatprep.subr.mxu0 0.0
    %863 = vmatpush1.xpose.msra.mxu0 %v650
    %864 = vmatprep.subr.mxu0 0.0
    %865 = vmatpush1.xpose.msra.mxu0 %v644
    %866 = vmatprep.subr.mxu0 0.0
    %867 = vmatpush2.xpose.msra.mxu0 %v830
    %868 = vmatprep.subr.mxu0 0.0
    %869 = vmatpush2.xpose.msra.mxu0 %v824
    %870 = vmatprep.subr.mxu0 0.0
    %871 = vmatpush2.xpose.msra.mxu0 %v818
    %872 = vmatprep.subr.mxu0 0.0
    %873 = vmatpush2.xpose.msra.mxu0 %v812
    %874 = vmatprep.subr.mxu0 0.0
    %875 = vmatpush2.xpose.msra.mxu0 %v806
    %876 = vmatprep.subr.mxu0 0.0
    %877 = vmatpush2.xpose.msra.mxu0 %v800
    %878 = vmatprep.subr.mxu0 0.0
    %879 = vmatpush2.xpose.msra.mxu0 %v794
    %880 = vmatprep.subr.mxu0 0.0
    %881 = vmatpush2.xpose.msra.mxu0 %v788
    %882 = vmatprep.subr.mxu0 0.0
    %883 = vmatpush2.xpose.msra.mxu0 %v782
    %884 = vmatprep.subr.mxu0 0.0
    %885 = vmatpush2.xpose.msra.mxu0 %v776
    %886 = vmatprep.subr.mxu0 0.0
    %887 = vmatpush2.xpose.msra.mxu0 %v770
    %888 = vmatprep.subr.mxu0 0.0
    %889 = vmatpush2.xpose.msra.mxu0 %v764
    %890 = vmatprep.subr.mxu0 0.0
    %891 = vmatpush2.xpose.msra.mxu0 %v758
    %892 = vmatprep.subr.mxu0 0.0
    %893 = vmatpush2.xpose.msra.mxu0 %v752
    %894 = vmatprep.subr.mxu0 0.0
    %895 = vmatpush2.xpose.msra.mxu0 %v746
    %896 = vmatprep.subr.mxu0 0.0
    %897 = vmatpush2.xpose.msra.mxu0 %v740
    %898 = vmatprep.mubr.f32.mxu0 0.0
    %899 = vmatmul.mubr.f32.gmra.mxu0 %v94
    %v900 = vpop.f32.mrf.mxu0
    %v901 = vadd.f32 0.0, %v900
    %v902 = vpop.f32.mrf.mxu0
    %v903 = vadd.f32 0.0, %v902
    %904 = vdwg.mxu0
    %v905 = vrot.slane %v901, 4
    %v906 = vmax.f32 %v901, %v905
    %v907 = vrot.slane %v906, 2
    %v908 = vmax.f32 %v906, %v907
    %v909 = vrot.slane %v908, 1
    %v910 = vmax.f32 %v908, %v909
    %v911 = vrot.slane %v903, 4
    %v912 = vmax.f32 %v903, %v911
    %v913 = vrot.slane %v912, 2
    %v914 = vmax.f32 %v912, %v913
    %v915 = vrot.slane %v914, 1
    %v916 = vmax.f32 %v914, %v915
    %v917 = vsub.f32 %v901, %v910
    %v918 = vsub.f32 %v903, %v916
    %v919 = vmul.f32 %v917, 1.442695
    %v920 = vpow.pop %v919
    %v921 = vmul.f32 %v918, 1.442695
    %v922 = vpow.pop %v921
    %v923 = vrot.slane %v920, 4
    %v924 = vadd.f32 %v920, %v923
    %v925 = vrot.slane %v924, 2
    %v926 = vadd.f32 %v924, %v925
    %v927 = vrot.slane %v926, 1
    %v928 = vadd.f32 %v926, %v927
    %v929 = vrot.slane %v922, 4
    %v930 = vadd.f32 %v922, %v929
    %v931 = vrot.slane %v930, 2
    %v932 = vadd.f32 %v930, %v931
    %v933 = vrot.slane %v932, 1
    %v934 = vadd.f32 %v932, %v933
    %v935 = vrcp.pop %v928
    %v936 = vmul.f32 1.0, %v935
    %v937 = vrcp.pop %v934
    %v938 = vmul.f32 1.0, %v937
    %v939 = vmul.f32 %v920, %v936
    %v940 = vmul.f32 %v922, %v938
    %v941 = vadd.f32 %v939, 0.0
    %v942 = vadd.f32 %v940, 0.0
    %v943 = vadd.f32 %v939, 1e-06
    %v944 = vadd.f32 %v940, 1e-06
    %v945 = vlog2.pop %v943
    %v946 = vmul.f32 %v945, 0.6931472
    %v947 = vlog2.pop %v944
    %v948 = vmul.f32 %v947, 0.6931472
    %v949 = vmul.f32 %v939, %v946
    %v950 = vmul.f32 %v940, %v948
    %v951 = vrot.slane %v949, 4
    %v952 = vadd.f32 %v949, %v951
    %v953 = vrot.slane %v952, 2
    %v954 = vadd.f32 %v952, %v953
    %v955 = vrot.slane %v954, 1
    %v956 = vadd.f32 %v954, %v955
    %v957 = vrot.slane %v950, 4
    %v958 = vadd.f32 %v950, %v957
    %v959 = vrot.slane %v958, 2
    %v960 = vadd.f32 %v958, %v959
    %v961 = vrot.slane %v960, 1
    %v962 = vadd.f32 %v960, %v961
    %v963 = vmul.f32 %v956, 1.442695
    %v964 = vpow.pop %v963
    %v965 = vmul.f32 %v962, 1.442695
    %v966 = vpow.pop %v965
    %v967 = vmul.f32 %v939, %v964
    %v968 = vmul.f32 %v940, %v966
    %969 = vxpose.xlu0.b32.start [1/16] %v967, 128
    %970 = vxpose.xlu0.b32.cont [2/16] 0.0, 128
    %971 = vxpose.xlu0.b32.cont [3/16] 0.0, 128
    %972 = vxpose.xlu0.b32.cont [4/16] 0.0, 128
    %973 = vxpose.xlu0.b32.cont [5/16] 0.0, 128
    %974 = vxpose.xlu0.b32.cont [6/16] 0.0, 128
    %975 = vxpose.xlu0.b32.cont [7/16] 0.0, 128
    %976 = vxpose.xlu0.b32.cont [8/16] 0.0, 128
    %977 = vxpose.xlu0.b32.cont [9/16] 0.0, 128
    %978 = vxpose.xlu0.b32.cont [10/16] 0.0, 128
    %979 = vxpose.xlu0.b32.cont [11/16] 0.0, 128
    %980 = vxpose.xlu0.b32.cont [12/16] 0.0, 128
    %981 = vxpose.xlu0.b32.cont [13/16] 0.0, 128
    %982 = vxpose.xlu0.b32.cont [14/16] 0.0, 128
    %983 = vxpose.xlu0.b32.cont [15/16] 0.0, 128
    %984 = vxpose.xlu0.b32.end [16/16] 0.0, 128
    %v985 = vpop.trf.xlu0
    %v986 = vpop.trf.xlu0
    %v987 = vpop.trf.xlu0
    %v988 = vpop.trf.xlu0
    %v989 = vpop.trf.xlu0
    %v990 = vpop.trf.xlu0
    %v991 = vpop.trf.xlu0
    %v992 = vpop.trf.xlu0
    %v993 = vpop.trf.xlu0
    %v994 = vpop.trf.xlu0
    %v995 = vpop.trf.xlu0
    %v996 = vpop.trf.xlu0
    %v997 = vpop.trf.xlu0
    %v998 = vpop.trf.xlu0
    %v999 = vpop.trf.xlu0
    %v1000 = vpop.trf.xlu0
    %1001 = vxpose.xlu0.b32.start [1/16] %v968, 128
    %1002 = vxpose.xlu0.b32.cont [2/16] 0.0, 128
    %1003 = vxpose.xlu0.b32.cont [3/16] 0.0, 128
    %1004 = vxpose.xlu0.b32.cont [4/16] 0.0, 128
    %1005 = vxpose.xlu0.b32.cont [5/16] 0.0, 128
    %1006 = vxpose.xlu0.b32.cont [6/16] 0.0, 128
    %1007 = vxpose.xlu0.b32.cont [7/16] 0.0, 128
    %1008 = vxpose.xlu0.b32.cont [8/16] 0.0, 128
    %1009 = vxpose.xlu0.b32.cont [9/16] 0.0, 128
    %1010 = vxpose.xlu0.b32.cont [10/16] 0.0, 128
    %1011 = vxpose.xlu0.b32.cont [11/16] 0.0, 128
    %1012 = vxpose.xlu0.b32.cont [12/16] 0.0, 128
    %1013 = vxpose.xlu0.b32.cont [13/16] 0.0, 128
    %1014 = vxpose.xlu0.b32.cont [14/16] 0.0, 128
    %1015 = vxpose.xlu0.b32.cont [15/16] 0.0, 128
    %1016 = vxpose.xlu0.b32.end [16/16] 0.0, 128
    %v1017 = vpop.trf.xlu0
    %v1018 = vpop.trf.xlu0
    %v1019 = vpop.trf.xlu0
    %v1020 = vpop.trf.xlu0
    %v1021 = vpop.trf.xlu0
    %v1022 = vpop.trf.xlu0
    %v1023 = vpop.trf.xlu0
    %v1024 = vpop.trf.xlu0
    %v1025 = vpop.trf.xlu0
    %v1026 = vpop.trf.xlu0
    %v1027 = vpop.trf.xlu0
    %v1028 = vpop.trf.xlu0
    %v1029 = vpop.trf.xlu0
    %v1030 = vpop.trf.xlu0
    %v1031 = vpop.trf.xlu0
    %v1032 = vpop.trf.xlu0
    %1034 = vset.pattern.permute.xlu0 0
    %1035 = vperm.xlu0 %1034, %v985
    %v1036 = vpop.permute.xlu0 %1035
    %1039 = vset.pattern.permute.xlu0 0
    %1040 = vperm.xlu0 %1039, %v986
    %v1041 = vpop.permute.xlu0 %1040
    %1044 = vset.pattern.permute.xlu0 0
    %1045 = vperm.xlu0 %1044, %v987
    %v1046 = vpop.permute.xlu0 %1045
    %1049 = vset.pattern.permute.xlu0 0
    %1050 = vperm.xlu0 %1049, %v988
    %v1051 = vpop.permute.xlu0 %1050
    %1054 = vset.pattern.permute.xlu0 0
    %1055 = vperm.xlu0 %1054, %v989
    %v1056 = vpop.permute.xlu0 %1055
    %1059 = vset.pattern.permute.xlu0 0
    %1060 = vperm.xlu0 %1059, %v990
    %v1061 = vpop.permute.xlu0 %1060
    %1064 = vset.pattern.permute.xlu0 0
    %1065 = vperm.xlu0 %1064, %v991
    %v1066 = vpop.permute.xlu0 %1065
    %1069 = vset.pattern.permute.xlu0 0
    %1070 = vperm.xlu0 %1069, %v992
    %v1071 = vpop.permute.xlu0 %1070
    %1074 = vset.pattern.permute.xlu0 0
    %1075 = vperm.xlu0 %1074, %v993
    %v1076 = vpop.permute.xlu0 %1075
    %1079 = vset.pattern.permute.xlu0 0
    %1080 = vperm.xlu0 %1079, %v994
    %v1081 = vpop.permute.xlu0 %1080
    %1084 = vset.pattern.permute.xlu0 0
    %1085 = vperm.xlu0 %1084, %v995
    %v1086 = vpop.permute.xlu0 %1085
    %1089 = vset.pattern.permute.xlu0 0
    %1090 = vperm.xlu0 %1089, %v996
    %v1091 = vpop.permute.xlu0 %1090
    %1094 = vset.pattern.permute.xlu0 0
    %1095 = vperm.xlu0 %1094, %v997
    %v1096 = vpop.permute.xlu0 %1095
    %1099 = vset.pattern.permute.xlu0 0
    %1100 = vperm.xlu0 %1099, %v998
    %v1101 = vpop.permute.xlu0 %1100
    %1104 = vset.pattern.permute.xlu0 0
    %1105 = vperm.xlu0 %1104, %v999
    %v1106 = vpop.permute.xlu0 %1105
    %1109 = vset.pattern.permute.xlu0 0
    %1110 = vperm.xlu0 %1109, %v1000
    %v1111 = vpop.permute.xlu0 %1110
    %1114 = vset.pattern.permute.xlu0 0
    %1115 = vperm.xlu0 %1114, %v1017
    %v1116 = vpop.permute.xlu0 %1115
    %1119 = vset.pattern.permute.xlu0 0
    %1120 = vperm.xlu0 %1119, %v1018
    %v1121 = vpop.permute.xlu0 %1120
    %1124 = vset.pattern.permute.xlu0 0
    %1125 = vperm.xlu0 %1124, %v1019
    %v1126 = vpop.permute.xlu0 %1125
    %1129 = vset.pattern.permute.xlu0 0
    %1130 = vperm.xlu0 %1129, %v1020
    %v1131 = vpop.permute.xlu0 %1130
    %1134 = vset.pattern.permute.xlu0 0
    %1135 = vperm.xlu0 %1134, %v1021
    %v1136 = vpop.permute.xlu0 %1135
    %1139 = vset.pattern.permute.xlu0 0
    %1140 = vperm.xlu0 %1139, %v1022
    %v1141 = vpop.permute.xlu0 %1140
    %1144 = vset.pattern.permute.xlu0 0
    %1145 = vperm.xlu0 %1144, %v1023
    %v1146 = vpop.permute.xlu0 %1145
    %1149 = vset.pattern.permute.xlu0 0
    %1150 = vperm.xlu0 %1149, %v1024
    %v1151 = vpop.permute.xlu0 %1150
    %1154 = vset.pattern.permute.xlu0 0
    %1155 = vperm.xlu0 %1154, %v1025
    %v1156 = vpop.permute.xlu0 %1155
    %1159 = vset.pattern.permute.xlu0 0
    %1160 = vperm.xlu0 %1159, %v1026
    %v1161 = vpop.permute.xlu0 %1160
    %1164 = vset.pattern.permute.xlu0 0
    %1165 = vperm.xlu0 %1164, %v1027
    %v1166 = vpop.permute.xlu0 %1165
    %1169 = vset.pattern.permute.xlu0 0
    %1170 = vperm.xlu0 %1169, %v1028
    %v1171 = vpop.permute.xlu0 %1170
    %1174 = vset.pattern.permute.xlu0 0
    %1175 = vperm.xlu0 %1174, %v1029
    %v1176 = vpop.permute.xlu0 %1175
    %1179 = vset.pattern.permute.xlu0 0
    %1180 = vperm.xlu0 %1179, %v1030
    %v1181 = vpop.permute.xlu0 %1180
    %1184 = vset.pattern.permute.xlu0 0
    %1185 = vperm.xlu0 %1184, %v1031
    %v1186 = vpop.permute.xlu0 %1185
    %1189 = vset.pattern.permute.xlu0 0
    %1190 = vperm.xlu0 %1189, %v1032
    %v1191 = vpop.permute.xlu0 %1190
    %v1193 = vmul.f32 %v1036, %v276
    %v1194 = vmul.f32 %v1041, %v282
    %v1195 = vmul.f32 %v1046, %v288
    %v1196 = vmul.f32 %v1051, %v294
    %v1197 = vmul.f32 %v1056, %v300
    %v1198 = vmul.f32 %v1061, %v306
    %v1199 = vmul.f32 %v1066, %v312
    %v1200 = vmul.f32 %v1071, %v318
    %v1201 = vmul.f32 %v1076, %v324
    %v1202 = vmul.f32 %v1081, %v330
    %v1203 = vmul.f32 %v1086, %v336
    %v1204 = vmul.f32 %v1091, %v342
    %v1205 = vmul.f32 %v1096, %v348
    %v1206 = vmul.f32 %v1101, %v354
    %v1207 = vmul.f32 %v1106, %v360
    %v1208 = vmul.f32 %v1111, %v366
    %v1209 = vmul.f32 %v1116, %v372
    %v1210 = vmul.f32 %v1121, %v378
    %v1211 = vmul.f32 %v1126, %v384
    %v1212 = vmul.f32 %v1131, %v390
    %v1213 = vmul.f32 %v1136, %v396
    %v1214 = vmul.f32 %v1141, %v402
    %v1215 = vmul.f32 %v1146, %v408
    %v1216 = vmul.f32 %v1151, %v414
    %v1217 = vmul.f32 %v1156, %v420
    %v1218 = vmul.f32 %v1161, %v426
    %v1219 = vmul.f32 %v1166, %v432
    %v1220 = vmul.f32 %v1171, %v438
    %v1221 = vmul.f32 %v1176, %v444
    %v1222 = vmul.f32 %v1181, %v450
    %v1223 = vmul.f32 %v1186, %v456
    %v1224 = vmul.f32 %v1191, %v462
    %v1225 = vpack.c.bf16 %v1194, %v1193
    %v1226 = vpack.c.bf16 %v1196, %v1195
    %v1227 = vpack.c.bf16 %v1198, %v1197
    %v1228 = vpack.c.bf16 %v1200, %v1199
    %v1229 = vpack.c.bf16 %v1202, %v1201
    %v1230 = vpack.c.bf16 %v1204, %v1203
    %v1231 = vpack.c.bf16 %v1206, %v1205
    %v1232 = vpack.c.bf16 %v1208, %v1207
    %v1233 = vpack.c.bf16 %v1210, %v1209
    %v1234 = vpack.c.bf16 %v1212, %v1211
    %v1235 = vpack.c.bf16 %v1214, %v1213
    %v1236 = vpack.c.bf16 %v1216, %v1215
    %v1237 = vpack.c.bf16 %v1218, %v1217
    %v1238 = vpack.c.bf16 %v1220, %v1219
    %v1239 = vpack.c.bf16 %v1222, %v1221
    %v1240 = vpack.c.bf16 %v1224, %v1223
    %v1257 = vunpack.c.l.b16 %v1225
    %v1258 = vunpack.c.h.b16 %v1225
    %v1259 = vunpack.c.l.b16 %v1226
    %v1260 = vunpack.c.h.b16 %v1226
    %v1261 = vunpack.c.l.b16 %v1227
    %v1262 = vunpack.c.h.b16 %v1227
    %v1263 = vunpack.c.l.b16 %v1228
    %v1264 = vunpack.c.h.b16 %v1228
    %v1265 = vunpack.c.l.b16 %v1229
    %v1266 = vunpack.c.h.b16 %v1229
    %v1267 = vunpack.c.l.b16 %v1230
    %v1268 = vunpack.c.h.b16 %v1230
    %v1269 = vunpack.c.l.b16 %v1231
    %v1270 = vunpack.c.h.b16 %v1231
    %v1271 = vunpack.c.l.b16 %v1232
    %v1272 = vunpack.c.h.b16 %v1232
    %v1273 = vunpack.c.l.b16 %v1233
    %v1274 = vunpack.c.h.b16 %v1233
    %v1275 = vunpack.c.l.b16 %v1234
    %v1276 = vunpack.c.h.b16 %v1234
    %v1277 = vunpack.c.l.b16 %v1235
    %v1278 = vunpack.c.h.b16 %v1235
    %v1279 = vunpack.c.l.b16 %v1236
    %v1280 = vunpack.c.h.b16 %v1236
    %v1281 = vunpack.c.l.b16 %v1237
    %v1282 = vunpack.c.h.b16 %v1237
    %v1283 = vunpack.c.l.b16 %v1238
    %v1284 = vunpack.c.h.b16 %v1238
    %v1285 = vunpack.c.l.b16 %v1239
    %v1286 = vunpack.c.h.b16 %v1239
    %v1287 = vunpack.c.l.b16 %v1240
    %v1288 = vunpack.c.h.b16 %v1240
    %v1289 = vpack.c.b16 %v1257, %v1257
    %v1290 = vpack.c.b16 %v1258, %v1258
    %v1291 = vpack.c.b16 %v1259, %v1259
    %v1292 = vpack.c.b16 %v1260, %v1260
    %v1293 = vpack.c.b16 %v1261, %v1261
    %v1294 = vpack.c.b16 %v1262, %v1262
    %v1295 = vpack.c.b16 %v1263, %v1263
    %v1296 = vpack.c.b16 %v1264, %v1264
    %v1297 = vpack.c.b16 %v1265, %v1265
    %v1298 = vpack.c.b16 %v1266, %v1266
    %v1299 = vpack.c.b16 %v1267, %v1267
    %v1300 = vpack.c.b16 %v1268, %v1268
    %v1301 = vpack.c.b16 %v1269, %v1269
    %v1302 = vpack.c.b16 %v1270, %v1270
    %v1303 = vpack.c.b16 %v1271, %v1271
    %v1304 = vpack.c.b16 %v1272, %v1272
    %v1305 = vpack.c.b16 %v1273, %v1273
    %v1306 = vpack.c.b16 %v1274, %v1274
    %v1307 = vpack.c.b16 %v1275, %v1275
    %v1308 = vpack.c.b16 %v1276, %v1276
    %v1309 = vpack.c.b16 %v1277, %v1277
    %v1310 = vpack.c.b16 %v1278, %v1278
    %v1311 = vpack.c.b16 %v1279, %v1279
    %v1312 = vpack.c.b16 %v1280, %v1280
    %v1313 = vpack.c.b16 %v1281, %v1281
    %v1314 = vpack.c.b16 %v1282, %v1282
    %v1315 = vpack.c.b16 %v1283, %v1283
    %v1316 = vpack.c.b16 %v1284, %v1284
    %v1317 = vpack.c.b16 %v1285, %v1285
    %v1318 = vpack.c.b16 %v1286, %v1286
    %v1319 = vpack.c.b16 %v1287, %v1287
    %v1320 = vpack.c.b16 %v1288, %v1288
    %1353 = vst [vmem:[#allocation2] sm:$0xf] %v1289
    %1354 = vst [vmem:[#allocation2 + $0x8] sm:$0xf] %v1290
    %1355 = vst [vmem:[#allocation2 + $0x10] sm:$0xf] %v1291
    %1356 = vst [vmem:[#allocation2 + $0x18] sm:$0xf] %v1292
    %1357 = vst [vmem:[#allocation2 + $0x20] sm:$0xf] %v1293
    %1358 = vst [vmem:[#allocation2 + $0x28] sm:$0xf] %v1294
    %1359 = vst [vmem:[#allocation2 + $0x30] sm:$0xf] %v1295
    %1360 = vst [vmem:[#allocation2 + $0x38] sm:$0xf] %v1296
    %1361 = vst [vmem:[#allocation2 + $0x40] sm:$0xf] %v1297
    %1362 = vst [vmem:[#allocation2 + $0x48] sm:$0xf] %v1298
    %1363 = vst [vmem:[#allocation2 + $0x50] sm:$0xf] %v1299
    %1364 = vst [vmem:[#allocation2 + $0x58] sm:$0xf] %v1300
    %1365 = vst [vmem:[#allocation2 + $0x60] sm:$0xf] %v1301
    %1366 = vst [vmem:[#allocation2 + $0x68] sm:$0xf] %v1302
    %1367 = vst [vmem:[#allocation2 + $0x70] sm:$0xf] %v1303
    %1368 = vst [vmem:[#allocation2 + $0x78] sm:$0xf] %v1304
    %1369 = vst [vmem:[#allocation2 + $0x80] sm:$0xf] %v1305
    %1370 = vst [vmem:[#allocation2 + $0x88] sm:$0xf] %v1306
    %1371 = vst [vmem:[#allocation2 + $0x90] sm:$0xf] %v1307
    %1372 = vst [vmem:[#allocation2 + $0x98] sm:$0xf] %v1308
    %1373 = vst [vmem:[#allocation2 + $0xa0] sm:$0xf] %v1309
    %1374 = vst [vmem:[#allocation2 + $0xa8] sm:$0xf] %v1310
    %1375 = vst [vmem:[#allocation2 + $0xb0] sm:$0xf] %v1311
    %1376 = vst [vmem:[#allocation2 + $0xb8] sm:$0xf] %v1312
    %1377 = vst [vmem:[#allocation2 + $0xc0] sm:$0xf] %v1313
    %1378 = vst [vmem:[#allocation2 + $0xc8] sm:$0xf] %v1314
    %1379 = vst [vmem:[#allocation2 + $0xd0] sm:$0xf] %v1315
    %1380 = vst [vmem:[#allocation2 + $0xd8] sm:$0xf] %v1316
    %1381 = vst [vmem:[#allocation2 + $0xe0] sm:$0xf] %v1317
    %1382 = vst [vmem:[#allocation2 + $0xe8] sm:$0xf] %v1318
    %1383 = vst [vmem:[#allocation2 + $0xf0] sm:$0xf] %v1319
    %1384 = vst [vmem:[#allocation2 + $0xf8] sm:$0xf] %v1320
    %1385 = vset.pattern.permute.xlu0 1
    %1386 = vperm.xlu0 %1385, %v985
    %v1387 = vpop.permute.xlu0 %1386
    %1389 = vset.pattern.permute.xlu0 1
    %1390 = vperm.xlu0 %1389, %v986
    %v1391 = vpop.permute.xlu0 %1390
    %1393 = vset.pattern.permute.xlu0 1
    %1394 = vperm.xlu0 %1393, %v987
    %v1395 = vpop.permute.xlu0 %1394
    %1397 = vset.pattern.permute.xlu0 1
    %1398 = vperm.xlu0 %1397, %v988
    %v1399 = vpop.permute.xlu0 %1398
    %1401 = vset.pattern.permute.xlu0 1
    %1402 = vperm.xlu0 %1401, %v989
    %v1403 = vpop.permute.xlu0 %1402
    %1405 = vset.pattern.permute.xlu0 1
    %1406 = vperm.xlu0 %1405, %v990
    %v1407 = vpop.permute.xlu0 %1406
    %1409 = vset.pattern.permute.xlu0 1
    %1410 = vperm.xlu0 %1409, %v991
    %v1411 = vpop.permute.xlu0 %1410
    %1413 = vset.pattern.permute.xlu0 1
    %1414 = vperm.xlu0 %1413, %v992
    %v1415 = vpop.permute.xlu0 %1414
    %1417 = vset.pattern.permute.xlu0 1
    %1418 = vperm.xlu0 %1417, %v993
    %v1419 = vpop.permute.xlu0 %1418
    %1421 = vset.pattern.permute.xlu0 1
    %1422 = vperm.xlu0 %1421, %v994
    %v1423 = vpop.permute.xlu0 %1422
    %1425 = vset.pattern.permute.xlu0 1
    %1426 = vperm.xlu0 %1425, %v995
    %v1427 = vpop.permute.xlu0 %1426
    %1429 = vset.pattern.permute.xlu0 1
    %1430 = vperm.xlu0 %1429, %v996
    %v1431 = vpop.permute.xlu0 %1430
    %1433 = vset.pattern.permute.xlu0 1
    %1434 = vperm.xlu0 %1433, %v997
    %v1435 = vpop.permute.xlu0 %1434
    %1437 = vset.pattern.permute.xlu0 1
    %1438 = vperm.xlu0 %1437, %v998
    %v1439 = vpop.permute.xlu0 %1438
    %1441 = vset.pattern.permute.xlu0 1
    %1442 = vperm.xlu0 %1441, %v999
    %v1443 = vpop.permute.xlu0 %1442
    %1445 = vset.pattern.permute.xlu0 1
    %1446 = vperm.xlu0 %1445, %v1000
    %v1447 = vpop.permute.xlu0 %1446
    %1449 = vset.pattern.permute.xlu0 1
    %1450 = vperm.xlu0 %1449, %v1017
    %v1451 = vpop.permute.xlu0 %1450
    %1453 = vset.pattern.permute.xlu0 1
    %1454 = vperm.xlu0 %1453, %v1018
    %v1455 = vpop.permute.xlu0 %1454
    %1457 = vset.pattern.permute.xlu0 1
    %1458 = vperm.xlu0 %1457, %v1019
    %v1459 = vpop.permute.xlu0 %1458
    %1461 = vset.pattern.permute.xlu0 1
    %1462 = vperm.xlu0 %1461, %v1020
    %v1463 = vpop.permute.xlu0 %1462
    %1465 = vset.pattern.permute.xlu0 1
    %1466 = vperm.xlu0 %1465, %v1021
    %v1467 = vpop.permute.xlu0 %1466
    %1469 = vset.pattern.permute.xlu0 1
    %1470 = vperm.xlu0 %1469, %v1022
    %v1471 = vpop.permute.xlu0 %1470
    %1473 = vset.pattern.permute.xlu0 1
    %1474 = vperm.xlu0 %1473, %v1023
    %v1475 = vpop.permute.xlu0 %1474
    %1477 = vset.pattern.permute.xlu0 1
    %1478 = vperm.xlu0 %1477, %v1024
    %v1479 = vpop.permute.xlu0 %1478
    %1481 = vset.pattern.permute.xlu0 1
    %1482 = vperm.xlu0 %1481, %v1025
    %v1483 = vpop.permute.xlu0 %1482
    %1485 = vset.pattern.permute.xlu0 1
    %1486 = vperm.xlu0 %1485, %v1026
    %v1487 = vpop.permute.xlu0 %1486
    %1489 = vset.pattern.permute.xlu0 1
    %1490 = vperm.xlu0 %1489, %v1027
    %v1491 = vpop.permute.xlu0 %1490
    %1493 = vset.pattern.permute.xlu0 1
    %1494 = vperm.xlu0 %1493, %v1028
    %v1495 = vpop.permute.xlu0 %1494
    %1497 = vset.pattern.permute.xlu0 1
    %1498 = vperm.xlu0 %1497, %v1029
    %v1499 = vpop.permute.xlu0 %1498
    %1501 = vset.pattern.permute.xlu0 1
    %1502 = vperm.xlu0 %1501, %v1030
    %v1503 = vpop.permute.xlu0 %1502
    %1505 = vset.pattern.permute.xlu0 1
    %1506 = vperm.xlu0 %1505, %v1031
    %v1507 = vpop.permute.xlu0 %1506
    %1509 = vset.pattern.permute.xlu0 1
    %1510 = vperm.xlu0 %1509, %v1032
    %v1511 = vpop.permute.xlu0 %1510
    %v1513 = vmul.f32 %v1387, %v276
    %v1514 = vmul.f32 %v1391, %v282
    %v1515 = vmul.f32 %v1395, %v288
    %v1516 = vmul.f32 %v1399, %v294
    %v1517 = vmul.f32 %v1403, %v300
    %v1518 = vmul.f32 %v1407, %v306
    %v1519 = vmul.f32 %v1411, %v312
    %v1520 = vmul.f32 %v1415, %v318
    %v1521 = vmul.f32 %v1419, %v324
    %v1522 = vmul.f32 %v1423, %v330
    %v1523 = vmul.f32 %v1427, %v336
    %v1524 = vmul.f32 %v1431, %v342
    %v1525 = vmul.f32 %v1435, %v348
    %v1526 = vmul.f32 %v1439, %v354
    %v1527 = vmul.f32 %v1443, %v360
    %v1528 = vmul.f32 %v1447, %v366
    %v1529 = vmul.f32 %v1451, %v372
    %v1530 = vmul.f32 %v1455, %v378
    %v1531 = vmul.f32 %v1459, %v384
    %v1532 = vmul.f32 %v1463, %v390
    %v1533 = vmul.f32 %v1467, %v396
    %v1534 = vmul.f32 %v1471, %v402
    %v1535 = vmul.f32 %v1475, %v408
    %v1536 = vmul.f32 %v1479, %v414
    %v1537 = vmul.f32 %v1483, %v420
    %v1538 = vmul.f32 %v1487, %v426
    %v1539 = vmul.f32 %v1491, %v432
    %v1540 = vmul.f32 %v1495, %v438
    %v1541 = vmul.f32 %v1499, %v444
    %v1542 = vmul.f32 %v1503, %v450
    %v1543 = vmul.f32 %v1507, %v456
    %v1544 = vmul.f32 %v1511, %v462
    %v1545 = vpack.c.bf16 %v1514, %v1513
    %v1546 = vpack.c.bf16 %v1516, %v1515
    %v1547 = vpack.c.bf16 %v1518, %v1517
    %v1548 = vpack.c.bf16 %v1520, %v1519
    %v1549 = vpack.c.bf16 %v1522, %v1521
    %v1550 = vpack.c.bf16 %v1524, %v1523
    %v1551 = vpack.c.bf16 %v1526, %v1525
    %v1552 = vpack.c.bf16 %v1528, %v1527
    %v1553 = vpack.c.bf16 %v1530, %v1529
    %v1554 = vpack.c.bf16 %v1532, %v1531
    %v1555 = vpack.c.bf16 %v1534, %v1533
    %v1556 = vpack.c.bf16 %v1536, %v1535
    %v1557 = vpack.c.bf16 %v1538, %v1537
    %v1558 = vpack.c.bf16 %v1540, %v1539
    %v1559 = vpack.c.bf16 %v1542, %v1541
    %v1560 = vpack.c.bf16 %v1544, %v1543
    %v1577 = vunpack.c.l.b16 %v1545
    %v1578 = vunpack.c.h.b16 %v1545
    %v1579 = vunpack.c.l.b16 %v1546
    %v1580 = vunpack.c.h.b16 %v1546
    %v1581 = vunpack.c.l.b16 %v1547
    %v1582 = vunpack.c.h.b16 %v1547
    %v1583 = vunpack.c.l.b16 %v1548
    %v1584 = vunpack.c.h.b16 %v1548
    %v1585 = vunpack.c.l.b16 %v1549
    %v1586 = vunpack.c.h.b16 %v1549
    %v1587 = vunpack.c.l.b16 %v1550
    %v1588 = vunpack.c.h.b16 %v1550
    %v1589 = vunpack.c.l.b16 %v1551
    %v1590 = vunpack.c.h.b16 %v1551
    %v1591 = vunpack.c.l.b16 %v1552
    %v1592 = vunpack.c.h.b16 %v1552
    %v1593 = vunpack.c.l.b16 %v1553
    %v1594 = vunpack.c.h.b16 %v1553
    %v1595 = vunpack.c.l.b16 %v1554
    %v1596 = vunpack.c.h.b16 %v1554
    %v1597 = vunpack.c.l.b16 %v1555
    %v1598 = vunpack.c.h.b16 %v1555
    %v1599 = vunpack.c.l.b16 %v1556
    %v1600 = vunpack.c.h.b16 %v1556
    %v1601 = vunpack.c.l.b16 %v1557
    %v1602 = vunpack.c.h.b16 %v1557
    %v1603 = vunpack.c.l.b16 %v1558
    %v1604 = vunpack.c.h.b16 %v1558
    %v1605 = vunpack.c.l.b16 %v1559
    %v1606 = vunpack.c.h.b16 %v1559
    %v1607 = vunpack.c.l.b16 %v1560
    %v1608 = vunpack.c.h.b16 %v1560
    %v1609 = vpack.c.b16 %v1577, %v1577
    %v1610 = vpack.c.b16 %v1578, %v1578
    %v1611 = vpack.c.b16 %v1579, %v1579
    %v1612 = vpack.c.b16 %v1580, %v1580
    %v1613 = vpack.c.b16 %v1581, %v1581
    %v1614 = vpack.c.b16 %v1582, %v1582
    %v1615 = vpack.c.b16 %v1583, %v1583
    %v1616 = vpack.c.b16 %v1584, %v1584
    %v1617 = vpack.c.b16 %v1585, %v1585
    %v1618 = vpack.c.b16 %v1586, %v1586
    %v1619 = vpack.c.b16 %v1587, %v1587
    %v1620 = vpack.c.b16 %v1588, %v1588
    %v1621 = vpack.c.b16 %v1589, %v1589
    %v1622 = vpack.c.b16 %v1590, %v1590
    %v1623 = vpack.c.b16 %v1591, %v1591
    %v1624 = vpack.c.b16 %v1592, %v1592
    %v1625 = vpack.c.b16 %v1593, %v1593
    %v1626 = vpack.c.b16 %v1594, %v1594
    %v1627 = vpack.c.b16 %v1595, %v1595
    %v1628 = vpack.c.b16 %v1596, %v1596
    %v1629 = vpack.c.b16 %v1597, %v1597
    %v1630 = vpack.c.b16 %v1598, %v1598
    %v1631 = vpack.c.b16 %v1599, %v1599
    %v1632 = vpack.c.b16 %v1600, %v1600
    %v1633 = vpack.c.b16 %v1601, %v1601
    %v1634 = vpack.c.b16 %v1602, %v1602
    %v1635 = vpack.c.b16 %v1603, %v1603
    %v1636 = vpack.c.b16 %v1604, %v1604
    %v1637 = vpack.c.b16 %v1605, %v1605
    %v1638 = vpack.c.b16 %v1606, %v1606
    %v1639 = vpack.c.b16 %v1607, %v1607
    %v1640 = vpack.c.b16 %v1608, %v1608
    %s1673 = scalar_lea.vmem [#allocation2], 256
    %1674 = vst [vmem:[%s1673] sm:$0xf] %v1609
    %1675 = vst [vmem:[%s1673 + $0x8] sm:$0xf] %v1610
    %1676 = vst [vmem:[%s1673 + $0x10] sm:$0xf] %v1611
    %1677 = vst [vmem:[%s1673 + $0x18] sm:$0xf] %v1612
    %1678 = vst [vmem:[%s1673 + $0x20] sm:$0xf] %v1613
    %1679 = vst [vmem:[%s1673 + $0x28] sm:$0xf] %v1614
    %1680 = vst [vmem:[%s1673 + $0x30] sm:$0xf] %v1615
    %1681 = vst [vmem:[%s1673 + $0x38] sm:$0xf] %v1616
    %1682 = vst [vmem:[%s1673 + $0x40] sm:$0xf] %v1617
    %1683 = vst [vmem:[%s1673 + $0x48] sm:$0xf] %v1618
    %1684 = vst [vmem:[%s1673 + $0x50] sm:$0xf] %v1619
    %1685 = vst [vmem:[%s1673 + $0x58] sm:$0xf] %v1620
    %1686 = vst [vmem:[%s1673 + $0x60] sm:$0xf] %v1621
    %1687 = vst [vmem:[%s1673 + $0x68] sm:$0xf] %v1622
    %1688 = vst [vmem:[%s1673 + $0x70] sm:$0xf] %v1623
    %1689 = vst [vmem:[%s1673 + $0x78] sm:$0xf] %v1624
    %1690 = vst [vmem:[%s1673 + $0x80] sm:$0xf] %v1625
    %1691 = vst [vmem:[%s1673 + $0x88] sm:$0xf] %v1626
    %1692 = vst [vmem:[%s1673 + $0x90] sm:$0xf] %v1627
    %1693 = vst [vmem:[%s1673 + $0x98] sm:$0xf] %v1628
    %1694 = vst [vmem:[%s1673 + $0xa0] sm:$0xf] %v1629
    %1695 = vst [vmem:[%s1673 + $0xa8] sm:$0xf] %v1630
    %1696 = vst [vmem:[%s1673 + $0xb0] sm:$0xf] %v1631
    %1697 = vst [vmem:[%s1673 + $0xb8] sm:$0xf] %v1632
    %1698 = vst [vmem:[%s1673 + $0xc0] sm:$0xf] %v1633
    %1699 = vst [vmem:[%s1673 + $0xc8] sm:$0xf] %v1634
    %1700 = vst [vmem:[%s1673 + $0xd0] sm:$0xf] %v1635
    %1701 = vst [vmem:[%s1673 + $0xd8] sm:$0xf] %v1636
    %1702 = vst [vmem:[%s1673 + $0xe0] sm:$0xf] %v1637
    %1703 = vst [vmem:[%s1673 + $0xe8] sm:$0xf] %v1638
    %1704 = vst [vmem:[%s1673 + $0xf0] sm:$0xf] %v1639
    %1705 = vst [vmem:[%s1673 + $0xf8] sm:$0xf] %v1640
    %1706 = vset.pattern.permute.xlu0 2
    %1707 = vperm.xlu0 %1706, %v985
    %v1708 = vpop.permute.xlu0 %1707
    %1710 = vset.pattern.permute.xlu0 2
    %1711 = vperm.xlu0 %1710, %v986
    %v1712 = vpop.permute.xlu0 %1711
    %1714 = vset.pattern.permute.xlu0 2
    %1715 = vperm.xlu0 %1714, %v987
    %v1716 = vpop.permute.xlu0 %1715
    %1718 = vset.pattern.permute.xlu0 2
    %1719 = vperm.xlu0 %1718, %v988
    %v1720 = vpop.permute.xlu0 %1719
    %1722 = vset.pattern.permute.xlu0 2
    %1723 = vperm.xlu0 %1722, %v989
    %v1724 = vpop.permute.xlu0 %1723
    %1726 = vset.pattern.permute.xlu0 2
    %1727 = vperm.xlu0 %1726, %v990
    %v1728 = vpop.permute.xlu0 %1727
    %1730 = vset.pattern.permute.xlu0 2
    %1731 = vperm.xlu0 %1730, %v991
    %v1732 = vpop.permute.xlu0 %1731
    %1734 = vset.pattern.permute.xlu0 2
    %1735 = vperm.xlu0 %1734, %v992
    %v1736 = vpop.permute.xlu0 %1735
    %1738 = vset.pattern.permute.xlu0 2
    %1739 = vperm.xlu0 %1738, %v993
    %v1740 = vpop.permute.xlu0 %1739
    %1742 = vset.pattern.permute.xlu0 2
    %1743 = vperm.xlu0 %1742, %v994
    %v1744 = vpop.permute.xlu0 %1743
    %1746 = vset.pattern.permute.xlu0 2
    %1747 = vperm.xlu0 %1746, %v995
    %v1748 = vpop.permute.xlu0 %1747
    %1750 = vset.pattern.permute.xlu0 2
    %1751 = vperm.xlu0 %1750, %v996
    %v1752 = vpop.permute.xlu0 %1751
    %1754 = vset.pattern.permute.xlu0 2
    %1755 = vperm.xlu0 %1754, %v997
    %v1756 = vpop.permute.xlu0 %1755
    %1758 = vset.pattern.permute.xlu0 2
    %1759 = vperm.xlu0 %1758, %v998
    %v1760 = vpop.permute.xlu0 %1759
    %1762 = vset.pattern.permute.xlu0 2
    %1763 = vperm.xlu0 %1762, %v999
    %v1764 = vpop.permute.xlu0 %1763
    %1766 = vset.pattern.permute.xlu0 2
    %1767 = vperm.xlu0 %1766, %v1000
    %v1768 = vpop.permute.xlu0 %1767
    %1770 = vset.pattern.permute.xlu0 2
    %1771 = vperm.xlu0 %1770, %v1017
    %v1772 = vpop.permute.xlu0 %1771
    %1774 = vset.pattern.permute.xlu0 2
    %1775 = vperm.xlu0 %1774, %v1018
    %v1776 = vpop.permute.xlu0 %1775
    %1778 = vset.pattern.permute.xlu0 2
    %1779 = vperm.xlu0 %1778, %v1019
    %v1780 = vpop.permute.xlu0 %1779
    %1782 = vset.pattern.permute.xlu0 2
    %1783 = vperm.xlu0 %1782, %v1020
    %v1784 = vpop.permute.xlu0 %1783
    %1786 = vset.pattern.permute.xlu0 2
    %1787 = vperm.xlu0 %1786, %v1021
    %v1788 = vpop.permute.xlu0 %1787
    %1790 = vset.pattern.permute.xlu0 2
    %1791 = vperm.xlu0 %1790, %v1022
    %v1792 = vpop.permute.xlu0 %1791
    %1794 = vset.pattern.permute.xlu0 2
    %1795 = vperm.xlu0 %1794, %v1023
    %v1796 = vpop.permute.xlu0 %1795
    %1798 = vset.pattern.permute.xlu0 2
    %1799 = vperm.xlu0 %1798, %v1024
    %v1800 = vpop.permute.xlu0 %1799
    %1802 = vset.pattern.permute.xlu0 2
    %1803 = vperm.xlu0 %1802, %v1025
    %v1804 = vpop.permute.xlu0 %1803
    %1806 = vset.pattern.permute.xlu0 2
    %1807 = vperm.xlu0 %1806, %v1026
    %v1808 = vpop.permute.xlu0 %1807
    %1810 = vset.pattern.permute.xlu0 2
    %1811 = vperm.xlu0 %1810, %v1027
    %v1812 = vpop.permute.xlu0 %1811
    %1814 = vset.pattern.permute.xlu0 2
    %1815 = vperm.xlu0 %1814, %v1028
    %v1816 = vpop.permute.xlu0 %1815
    %1818 = vset.pattern.permute.xlu0 2
    %1819 = vperm.xlu0 %1818, %v1029
    %v1820 = vpop.permute.xlu0 %1819
    %1822 = vset.pattern.permute.xlu0 2
    %1823 = vperm.xlu0 %1822, %v1030
    %v1824 = vpop.permute.xlu0 %1823
    %1826 = vset.pattern.permute.xlu0 2
    %1827 = vperm.xlu0 %1826, %v1031
    %v1828 = vpop.permute.xlu0 %1827
    %1830 = vset.pattern.permute.xlu0 2
    %1831 = vperm.xlu0 %1830, %v1032
    %v1832 = vpop.permute.xlu0 %1831
    %v1834 = vmul.f32 %v1708, %v276
    %v1835 = vmul.f32 %v1712, %v282
    %v1836 = vmul.f32 %v1716, %v288
    %v1837 = vmul.f32 %v1720, %v294
    %v1838 = vmul.f32 %v1724, %v300
    %v1839 = vmul.f32 %v1728, %v306
    %v1840 = vmul.f32 %v1732, %v312
    %v1841 = vmul.f32 %v1736, %v318
    %v1842 = vmul.f32 %v1740, %v324
    %v1843 = vmul.f32 %v1744, %v330
    %v1844 = vmul.f32 %v1748, %v336
    %v1845 = vmul.f32 %v1752, %v342
    %v1846 = vmul.f32 %v1756, %v348
    %v1847 = vmul.f32 %v1760, %v354
    %v1848 = vmul.f32 %v1764, %v360
    %v1849 = vmul.f32 %v1768, %v366
    %v1850 = vmul.f32 %v1772, %v372
    %v1851 = vmul.f32 %v1776, %v378
    %v1852 = vmul.f32 %v1780, %v384
    %v1853 = vmul.f32 %v1784, %v390
    %v1854 = vmul.f32 %v1788, %v396
    %v1855 = vmul.f32 %v1792, %v402
    %v1856 = vmul.f32 %v1796, %v408
    %v1857 = vmul.f32 %v1800, %v414
    %v1858 = vmul.f32 %v1804, %v420
    %v1859 = vmul.f32 %v1808, %v426
    %v1860 = vmul.f32 %v1812, %v432
    %v1861 = vmul.f32 %v1816, %v438
    %v1862 = vmul.f32 %v1820, %v444
    %v1863 = vmul.f32 %v1824, %v450
    %v1864 = vmul.f32 %v1828, %v456
    %v1865 = vmul.f32 %v1832, %v462
    %v1866 = vpack.c.bf16 %v1835, %v1834
    %v1867 = vpack.c.bf16 %v1837, %v1836
    %v1868 = vpack.c.bf16 %v1839, %v1838
    %v1869 = vpack.c.bf16 %v1841, %v1840
    %v1870 = vpack.c.bf16 %v1843, %v1842
    %v1871 = vpack.c.bf16 %v1845, %v1844
    %v1872 = vpack.c.bf16 %v1847, %v1846
    %v1873 = vpack.c.bf16 %v1849, %v1848
    %v1874 = vpack.c.bf16 %v1851, %v1850
    %v1875 = vpack.c.bf16 %v1853, %v1852
    %v1876 = vpack.c.bf16 %v1855, %v1854
    %v1877 = vpack.c.bf16 %v1857, %v1856
    %v1878 = vpack.c.bf16 %v1859, %v1858
    %v1879 = vpack.c.bf16 %v1861, %v1860
    %v1880 = vpack.c.bf16 %v1863, %v1862
    %v1881 = vpack.c.bf16 %v1865, %v1864
    %v1898 = vunpack.c.l.b16 %v1866
    %v1899 = vunpack.c.h.b16 %v1866
    %v1900 = vunpack.c.l.b16 %v1867
    %v1901 = vunpack.c.h.b16 %v1867
    %v1902 = vunpack.c.l.b16 %v1868
    %v1903 = vunpack.c.h.b16 %v1868
    %v1904 = vunpack.c.l.b16 %v1869
    %v1905 = vunpack.c.h.b16 %v1869
    %v1906 = vunpack.c.l.b16 %v1870
    %v1907 = vunpack.c.h.b16 %v1870
    %v1908 = vunpack.c.l.b16 %v1871
    %v1909 = vunpack.c.h.b16 %v1871
    %v1910 = vunpack.c.l.b16 %v1872
    %v1911 = vunpack.c.h.b16 %v1872
    %v1912 = vunpack.c.l.b16 %v1873
    %v1913 = vunpack.c.h.b16 %v1873
    %v1914 = vunpack.c.l.b16 %v1874
    %v1915 = vunpack.c.h.b16 %v1874
    %v1916 = vunpack.c.l.b16 %v1875
    %v1917 = vunpack.c.h.b16 %v1875
    %v1918 = vunpack.c.l.b16 %v1876
    %v1919 = vunpack.c.h.b16 %v1876
    %v1920 = vunpack.c.l.b16 %v1877
    %v1921 = vunpack.c.h.b16 %v1877
    %v1922 = vunpack.c.l.b16 %v1878
    %v1923 = vunpack.c.h.b16 %v1878
    %v1924 = vunpack.c.l.b16 %v1879
    %v1925 = vunpack.c.h.b16 %v1879
    %v1926 = vunpack.c.l.b16 %v1880
    %v1927 = vunpack.c.h.b16 %v1880
    %v1928 = vunpack.c.l.b16 %v1881
    %v1929 = vunpack.c.h.b16 %v1881
    %v1930 = vpack.c.b16 %v1898, %v1898
    %v1931 = vpack.c.b16 %v1899, %v1899
    %v1932 = vpack.c.b16 %v1900, %v1900
    %v1933 = vpack.c.b16 %v1901, %v1901
    %v1934 = vpack.c.b16 %v1902, %v1902
    %v1935 = vpack.c.b16 %v1903, %v1903
    %v1936 = vpack.c.b16 %v1904, %v1904
    %v1937 = vpack.c.b16 %v1905, %v1905
    %v1938 = vpack.c.b16 %v1906, %v1906
    %v1939 = vpack.c.b16 %v1907, %v1907
    %v1940 = vpack.c.b16 %v1908, %v1908
    %v1941 = vpack.c.b16 %v1909, %v1909
    %v1942 = vpack.c.b16 %v1910, %v1910
    %v1943 = vpack.c.b16 %v1911, %v1911
    %v1944 = vpack.c.b16 %v1912, %v1912
    %v1945 = vpack.c.b16 %v1913, %v1913
    %v1946 = vpack.c.b16 %v1914, %v1914
    %v1947 = vpack.c.b16 %v1915, %v1915
    %v1948 = vpack.c.b16 %v1916, %v1916
    %v1949 = vpack.c.b16 %v1917, %v1917
    %v1950 = vpack.c.b16 %v1918, %v1918
    %v1951 = vpack.c.b16 %v1919, %v1919
    %v1952 = vpack.c.b16 %v1920, %v1920
    %v1953 = vpack.c.b16 %v1921, %v1921
    %v1954 = vpack.c.b16 %v1922, %v1922
    %v1955 = vpack.c.b16 %v1923, %v1923
    %v1956 = vpack.c.b16 %v1924, %v1924
    %v1957 = vpack.c.b16 %v1925, %v1925
    %v1958 = vpack.c.b16 %v1926, %v1926
    %v1959 = vpack.c.b16 %v1927, %v1927
    %v1960 = vpack.c.b16 %v1928, %v1928
    %v1961 = vpack.c.b16 %v1929, %v1929
    %s1994 = scalar_lea.vmem [#allocation2], 512
    %1995 = vst [vmem:[%s1994] sm:$0xf] %v1930
    %1996 = vst [vmem:[%s1994 + $0x8] sm:$0xf] %v1931
    %1997 = vst [vmem:[%s1994 + $0x10] sm:$0xf] %v1932
    %1998 = vst [vmem:[%s1994 + $0x18] sm:$0xf] %v1933
    %1999 = vst [vmem:[%s1994 + $0x20] sm:$0xf] %v1934
    %2000 = vst [vmem:[%s1994 + $0x28] sm:$0xf] %v1935
    %2001 = vst [vmem:[%s1994 + $0x30] sm:$0xf] %v1936
    %2002 = vst [vmem:[%s1994 + $0x38] sm:$0xf] %v1937
    %2003 = vst [vmem:[%s1994 + $0x40] sm:$0xf] %v1938
    %2004 = vst [vmem:[%s1994 + $0x48] sm:$0xf] %v1939
    %2005 = vst [vmem:[%s1994 + $0x50] sm:$0xf] %v1940
    %2006 = vst [vmem:[%s1994 + $0x58] sm:$0xf] %v1941
    %2007 = vst [vmem:[%s1994 + $0x60] sm:$0xf] %v1942
    %2008 = vst [vmem:[%s1994 + $0x68] sm:$0xf] %v1943
    %2009 = vst [vmem:[%s1994 + $0x70] sm:$0xf] %v1944
    %2010 = vst [vmem:[%s1994 + $0x78] sm:$0xf] %v1945
    %2011 = vst [vmem:[%s1994 + $0x80] sm:$0xf] %v1946
    %2012 = vst [vmem:[%s1994 + $0x88] sm:$0xf] %v1947
    %2013 = vst [vmem:[%s1994 + $0x90] sm:$0xf] %v1948
    %2014 = vst [vmem:[%s1994 + $0x98] sm:$0xf] %v1949
    %2015 = vst [vmem:[%s1994 + $0xa0] sm:$0xf] %v1950
    %2016 = vst [vmem:[%s1994 + $0xa8] sm:$0xf] %v1951
    %2017 = vst [vmem:[%s1994 + $0xb0] sm:$0xf] %v1952
    %2018 = vst [vmem:[%s1994 + $0xb8] sm:$0xf] %v1953
    %2019 = vst [vmem:[%s1994 + $0xc0] sm:$0xf] %v1954
    %2020 = vst [vmem:[%s1994 + $0xc8] sm:$0xf] %v1955
    %2021 = vst [vmem:[%s1994 + $0xd0] sm:$0xf] %v1956
    %2022 = vst [vmem:[%s1994 + $0xd8] sm:$0xf] %v1957
    %2023 = vst [vmem:[%s1994 + $0xe0] sm:$0xf] %v1958
    %2024 = vst [vmem:[%s1994 + $0xe8] sm:$0xf] %v1959
    %2025 = vst [vmem:[%s1994 + $0xf0] sm:$0xf] %v1960
    %2026 = vst [vmem:[%s1994 + $0xf8] sm:$0xf] %v1961
    %2027 = vset.pattern.permute.xlu0 3
    %2028 = vperm.xlu0 %2027, %v985
    %v2029 = vpop.permute.xlu0 %2028
    %2031 = vset.pattern.permute.xlu0 3
    %2032 = vperm.xlu0 %2031, %v986
    %v2033 = vpop.permute.xlu0 %2032
    %2035 = vset.pattern.permute.xlu0 3
    %2036 = vperm.xlu0 %2035, %v987
    %v2037 = vpop.permute.xlu0 %2036
    %2039 = vset.pattern.permute.xlu0 3
    %2040 = vperm.xlu0 %2039, %v988
    %v2041 = vpop.permute.xlu0 %2040
    %2043 = vset.pattern.permute.xlu0 3
    %2044 = vperm.xlu0 %2043, %v989
    %v2045 = vpop.permute.xlu0 %2044
    %2047 = vset.pattern.permute.xlu0 3
    %2048 = vperm.xlu0 %2047, %v990
    %v2049 = vpop.permute.xlu0 %2048
    %2051 = vset.pattern.permute.xlu0 3
    %2052 = vperm.xlu0 %2051, %v991
    %v2053 = vpop.permute.xlu0 %2052
    %2055 = vset.pattern.permute.xlu0 3
    %2056 = vperm.xlu0 %2055, %v992
    %v2057 = vpop.permute.xlu0 %2056
    %2059 = vset.pattern.permute.xlu0 3
    %2060 = vperm.xlu0 %2059, %v993
    %v2061 = vpop.permute.xlu0 %2060
    %2063 = vset.pattern.permute.xlu0 3
    %2064 = vperm.xlu0 %2063, %v994
    %v2065 = vpop.permute.xlu0 %2064
    %2067 = vset.pattern.permute.xlu0 3
    %2068 = vperm.xlu0 %2067, %v995
    %v2069 = vpop.permute.xlu0 %2068
    %2071 = vset.pattern.permute.xlu0 3
    %2072 = vperm.xlu0 %2071, %v996
    %v2073 = vpop.permute.xlu0 %2072
    %2075 = vset.pattern.permute.xlu0 3
    %2076 = vperm.xlu0 %2075, %v997
    %v2077 = vpop.permute.xlu0 %2076
    %2079 = vset.pattern.permute.xlu0 3
    %2080 = vperm.xlu0 %2079, %v998
    %v2081 = vpop.permute.xlu0 %2080
    %2083 = vset.pattern.permute.xlu0 3
    %2084 = vperm.xlu0 %2083, %v999
    %v2085 = vpop.permute.xlu0 %2084
    %2087 = vset.pattern.permute.xlu0 3
    %2088 = vperm.xlu0 %2087, %v1000
    %v2089 = vpop.permute.xlu0 %2088
    %2091 = vset.pattern.permute.xlu0 3
    %2092 = vperm.xlu0 %2091, %v1017
    %v2093 = vpop.permute.xlu0 %2092
    %2095 = vset.pattern.permute.xlu0 3
    %2096 = vperm.xlu0 %2095, %v1018
    %v2097 = vpop.permute.xlu0 %2096
    %2099 = vset.pattern.permute.xlu0 3
    %2100 = vperm.xlu0 %2099, %v1019
    %v2101 = vpop.permute.xlu0 %2100
    %2103 = vset.pattern.permute.xlu0 3
    %2104 = vperm.xlu0 %2103, %v1020
    %v2105 = vpop.permute.xlu0 %2104
    %2107 = vset.pattern.permute.xlu0 3
    %2108 = vperm.xlu0 %2107, %v1021
    %v2109 = vpop.permute.xlu0 %2108
    %2111 = vset.pattern.permute.xlu0 3
    %2112 = vperm.xlu0 %2111, %v1022
    %v2113 = vpop.permute.xlu0 %2112
    %2115 = vset.pattern.permute.xlu0 3
    %2116 = vperm.xlu0 %2115, %v1023
    %v2117 = vpop.permute.xlu0 %2116
    %2119 = vset.pattern.permute.xlu0 3
    %2120 = vperm.xlu0 %2119, %v1024
    %v2121 = vpop.permute.xlu0 %2120
    %2123 = vset.pattern.permute.xlu0 3
    %2124 = vperm.xlu0 %2123, %v1025
    %v2125 = vpop.permute.xlu0 %2124
    %2127 = vset.pattern.permute.xlu0 3
    %2128 = vperm.xlu0 %2127, %v1026
    %v2129 = vpop.permute.xlu0 %2128
    %2131 = vset.pattern.permute.xlu0 3
    %2132 = vperm.xlu0 %2131, %v1027
    %v2133 = vpop.permute.xlu0 %2132
    %2135 = vset.pattern.permute.xlu0 3
    %2136 = vperm.xlu0 %2135, %v1028
    %v2137 = vpop.permute.xlu0 %2136
    %2139 = vset.pattern.permute.xlu0 3
    %2140 = vperm.xlu0 %2139, %v1029
    %v2141 = vpop.permute.xlu0 %2140
    %2143 = vset.pattern.permute.xlu0 3
    %2144 = vperm.xlu0 %2143, %v1030
    %v2145 = vpop.permute.xlu0 %2144
    %2147 = vset.pattern.permute.xlu0 3
    %2148 = vperm.xlu0 %2147, %v1031
    %v2149 = vpop.permute.xlu0 %2148
    %2151 = vset.pattern.permute.xlu0 3
    %2152 = vperm.xlu0 %2151, %v1032
    %v2153 = vpop.permute.xlu0 %2152
    %v2155 = vmul.f32 %v2029, %v276
    %v2156 = vmul.f32 %v2033, %v282
    %v2157 = vmul.f32 %v2037, %v288
    %v2158 = vmul.f32 %v2041, %v294
    %v2159 = vmul.f32 %v2045, %v300
    %v2160 = vmul.f32 %v2049, %v306
    %v2161 = vmul.f32 %v2053, %v312
    %v2162 = vmul.f32 %v2057, %v318
    %v2163 = vmul.f32 %v2061, %v324
    %v2164 = vmul.f32 %v2065, %v330
    %v2165 = vmul.f32 %v2069, %v336
    %v2166 = vmul.f32 %v2073, %v342
    %v2167 = vmul.f32 %v2077, %v348
    %v2168 = vmul.f32 %v2081, %v354
    %v2169 = vmul.f32 %v2085, %v360
    %v2170 = vmul.f32 %v2089, %v366
    %v2171 = vmul.f32 %v2093, %v372
    %v2172 = vmul.f32 %v2097, %v378
    %v2173 = vmul.f32 %v2101, %v384
    %v2174 = vmul.f32 %v2105, %v390
    %v2175 = vmul.f32 %v2109, %v396
    %v2176 = vmul.f32 %v2113, %v402
    %v2177 = vmul.f32 %v2117, %v408
    %v2178 = vmul.f32 %v2121, %v414
    %v2179 = vmul.f32 %v2125, %v420
    %v2180 = vmul.f32 %v2129, %v426
    %v2181 = vmul.f32 %v2133, %v432
    %v2182 = vmul.f32 %v2137, %v438
    %v2183 = vmul.f32 %v2141, %v444
    %v2184 = vmul.f32 %v2145, %v450
    %v2185 = vmul.f32 %v2149, %v456
    %v2186 = vmul.f32 %v2153, %v462
    %v2187 = vpack.c.bf16 %v2156, %v2155
    %v2188 = vpack.c.bf16 %v2158, %v2157
    %v2189 = vpack.c.bf16 %v2160, %v2159
    %v2190 = vpack.c.bf16 %v2162, %v2161
    %v2191 = vpack.c.bf16 %v2164, %v2163
    %v2192 = vpack.c.bf16 %v2166, %v2165
    %v2193 = vpack.c.bf16 %v2168, %v2167
    %v2194 = vpack.c.bf16 %v2170, %v2169
    %v2195 = vpack.c.bf16 %v2172, %v2171
    %v2196 = vpack.c.bf16 %v2174, %v2173
    %v2197 = vpack.c.bf16 %v2176, %v2175
    %v2198 = vpack.c.bf16 %v2178, %v2177
    %v2199 = vpack.c.bf16 %v2180, %v2179
    %v2200 = vpack.c.bf16 %v2182, %v2181
    %v2201 = vpack.c.bf16 %v2184, %v2183
    %v2202 = vpack.c.bf16 %v2186, %v2185
    %v2219 = vunpack.c.l.b16 %v2187
    %v2220 = vunpack.c.h.b16 %v2187
    %v2221 = vunpack.c.l.b16 %v2188
    %v2222 = vunpack.c.h.b16 %v2188
    %v2223 = vunpack.c.l.b16 %v2189
    %v2224 = vunpack.c.h.b16 %v2189
    %v2225 = vunpack.c.l.b16 %v2190
    %v2226 = vunpack.c.h.b16 %v2190
    %v2227 = vunpack.c.l.b16 %v2191
    %v2228 = vunpack.c.h.b16 %v2191
    %v2229 = vunpack.c.l.b16 %v2192
    %v2230 = vunpack.c.h.b16 %v2192
    %v2231 = vunpack.c.l.b16 %v2193
    %v2232 = vunpack.c.h.b16 %v2193
    %v2233 = vunpack.c.l.b16 %v2194
    %v2234 = vunpack.c.h.b16 %v2194
    %v2235 = vunpack.c.l.b16 %v2195
    %v2236 = vunpack.c.h.b16 %v2195
    %v2237 = vunpack.c.l.b16 %v2196
    %v2238 = vunpack.c.h.b16 %v2196
    %v2239 = vunpack.c.l.b16 %v2197
    %v2240 = vunpack.c.h.b16 %v2197
    %v2241 = vunpack.c.l.b16 %v2198
    %v2242 = vunpack.c.h.b16 %v2198
    %v2243 = vunpack.c.l.b16 %v2199
    %v2244 = vunpack.c.h.b16 %v2199
    %v2245 = vunpack.c.l.b16 %v2200
    %v2246 = vunpack.c.h.b16 %v2200
    %v2247 = vunpack.c.l.b16 %v2201
    %v2248 = vunpack.c.h.b16 %v2201
    %v2249 = vunpack.c.l.b16 %v2202
    %v2250 = vunpack.c.h.b16 %v2202
    %v2251 = vpack.c.b16 %v2219, %v2219
    %v2252 = vpack.c.b16 %v2220, %v2220
    %v2253 = vpack.c.b16 %v2221, %v2221
    %v2254 = vpack.c.b16 %v2222, %v2222
    %v2255 = vpack.c.b16 %v2223, %v2223
    %v2256 = vpack.c.b16 %v2224, %v2224
    %v2257 = vpack.c.b16 %v2225, %v2225
    %v2258 = vpack.c.b16 %v2226, %v2226
    %v2259 = vpack.c.b16 %v2227, %v2227
    %v2260 = vpack.c.b16 %v2228, %v2228
    %v2261 = vpack.c.b16 %v2229, %v2229
    %v2262 = vpack.c.b16 %v2230, %v2230
    %v2263 = vpack.c.b16 %v2231, %v2231
    %v2264 = vpack.c.b16 %v2232, %v2232
    %v2265 = vpack.c.b16 %v2233, %v2233
    %v2266 = vpack.c.b16 %v2234, %v2234
    %v2267 = vpack.c.b16 %v2235, %v2235
    %v2268 = vpack.c.b16 %v2236, %v2236
    %v2269 = vpack.c.b16 %v2237, %v2237
    %v2270 = vpack.c.b16 %v2238, %v2238
    %v2271 = vpack.c.b16 %v2239, %v2239
    %v2272 = vpack.c.b16 %v2240, %v2240
    %v2273 = vpack.c.b16 %v2241, %v2241
    %v2274 = vpack.c.b16 %v2242, %v2242
    %v2275 = vpack.c.b16 %v2243, %v2243
    %v2276 = vpack.c.b16 %v2244, %v2244
    %v2277 = vpack.c.b16 %v2245, %v2245
    %v2278 = vpack.c.b16 %v2246, %v2246
    %v2279 = vpack.c.b16 %v2247, %v2247
    %v2280 = vpack.c.b16 %v2248, %v2248
    %v2281 = vpack.c.b16 %v2249, %v2249
    %v2282 = vpack.c.b16 %v2250, %v2250
    %s2315 = scalar_lea.vmem [#allocation2], 768
    %2316 = vst [vmem:[%s2315] sm:$0xf] %v2251
    %2317 = vst [vmem:[%s2315 + $0x8] sm:$0xf] %v2252
    %2318 = vst [vmem:[%s2315 + $0x10] sm:$0xf] %v2253
    %2319 = vst [vmem:[%s2315 + $0x18] sm:$0xf] %v2254
    %2320 = vst [vmem:[%s2315 + $0x20] sm:$0xf] %v2255
    %2321 = vst [vmem:[%s2315 + $0x28] sm:$0xf] %v2256
    %2322 = vst [vmem:[%s2315 + $0x30] sm:$0xf] %v2257
    %2323 = vst [vmem:[%s2315 + $0x38] sm:$0xf] %v2258
    %2324 = vst [vmem:[%s2315 + $0x40] sm:$0xf] %v2259
    %2325 = vst [vmem:[%s2315 + $0x48] sm:$0xf] %v2260
    %2326 = vst [vmem:[%s2315 + $0x50] sm:$0xf] %v2261
    %2327 = vst [vmem:[%s2315 + $0x58] sm:$0xf] %v2262
    %2328 = vst [vmem:[%s2315 + $0x60] sm:$0xf] %v2263
    %2329 = vst [vmem:[%s2315 + $0x68] sm:$0xf] %v2264
    %2330 = vst [vmem:[%s2315 + $0x70] sm:$0xf] %v2265
    %2331 = vst [vmem:[%s2315 + $0x78] sm:$0xf] %v2266
    %2332 = vst [vmem:[%s2315 + $0x80] sm:$0xf] %v2267
    %2333 = vst [vmem:[%s2315 + $0x88] sm:$0xf] %v2268
    %2334 = vst [vmem:[%s2315 + $0x90] sm:$0xf] %v2269
    %2335 = vst [vmem:[%s2315 + $0x98] sm:$0xf] %v2270
    %2336 = vst [vmem:[%s2315 + $0xa0] sm:$0xf] %v2271
    %2337 = vst [vmem:[%s2315 + $0xa8] sm:$0xf] %v2272
    %2338 = vst [vmem:[%s2315 + $0xb0] sm:$0xf] %v2273
    %2339 = vst [vmem:[%s2315 + $0xb8] sm:$0xf] %v2274
    %2340 = vst [vmem:[%s2315 + $0xc0] sm:$0xf] %v2275
    %2341 = vst [vmem:[%s2315 + $0xc8] sm:$0xf] %v2276
    %2342 = vst [vmem:[%s2315 + $0xd0] sm:$0xf] %v2277
    %2343 = vst [vmem:[%s2315 + $0xd8] sm:$0xf] %v2278
    %2344 = vst [vmem:[%s2315 + $0xe0] sm:$0xf] %v2279
    %2345 = vst [vmem:[%s2315 + $0xe8] sm:$0xf] %v2280
    %2346 = vst [vmem:[%s2315 + $0xf0] sm:$0xf] %v2281
    %2347 = vst [vmem:[%s2315 + $0xf8] sm:$0xf] %v2282
    %2348 = vset.pattern.permute.xlu0 4
    %2349 = vperm.xlu0 %2348, %v985
    %v2350 = vpop.permute.xlu0 %2349
    %2352 = vset.pattern.permute.xlu0 4
    %2353 = vperm.xlu0 %2352, %v986
    %v2354 = vpop.permute.xlu0 %2353
    %2356 = vset.pattern.permute.xlu0 4
    %2357 = vperm.xlu0 %2356, %v987
    %v2358 = vpop.permute.xlu0 %2357
    %2360 = vset.pattern.permute.xlu0 4
    %2361 = vperm.xlu0 %2360, %v988
    %v2362 = vpop.permute.xlu0 %2361
    %2364 = vset.pattern.permute.xlu0 4
    %2365 = vperm.xlu0 %2364, %v989
    %v2366 = vpop.permute.xlu0 %2365
    %2368 = vset.pattern.permute.xlu0 4
    %2369 = vperm.xlu0 %2368, %v990
    %v2370 = vpop.permute.xlu0 %2369
    %2372 = vset.pattern.permute.xlu0 4
    %2373 = vperm.xlu0 %2372, %v991
    %v2374 = vpop.permute.xlu0 %2373
    %2376 = vset.pattern.permute.xlu0 4
    %2377 = vperm.xlu0 %2376, %v992
    %v2378 = vpop.permute.xlu0 %2377
    %2380 = vset.pattern.permute.xlu0 4
    %2381 = vperm.xlu0 %2380, %v993
    %v2382 = vpop.permute.xlu0 %2381
    %2384 = vset.pattern.permute.xlu0 4
    %2385 = vperm.xlu0 %2384, %v994
    %v2386 = vpop.permute.xlu0 %2385
    %2388 = vset.pattern.permute.xlu0 4
    %2389 = vperm.xlu0 %2388, %v995
    %v2390 = vpop.permute.xlu0 %2389
    %2392 = vset.pattern.permute.xlu0 4
    %2393 = vperm.xlu0 %2392, %v996
    %v2394 = vpop.permute.xlu0 %2393
    %2396 = vset.pattern.permute.xlu0 4
    %2397 = vperm.xlu0 %2396, %v997
    %v2398 = vpop.permute.xlu0 %2397
    %2400 = vset.pattern.permute.xlu0 4
    %2401 = vperm.xlu0 %2400, %v998
    %v2402 = vpop.permute.xlu0 %2401
    %2404 = vset.pattern.permute.xlu0 4
    %2405 = vperm.xlu0 %2404, %v999
    %v2406 = vpop.permute.xlu0 %2405
    %2408 = vset.pattern.permute.xlu0 4
    %2409 = vperm.xlu0 %2408, %v1000
    %v2410 = vpop.permute.xlu0 %2409
    %2412 = vset.pattern.permute.xlu0 4
    %2413 = vperm.xlu0 %2412, %v1017
    %v2414 = vpop.permute.xlu0 %2413
    %2416 = vset.pattern.permute.xlu0 4
    %2417 = vperm.xlu0 %2416, %v1018
    %v2418 = vpop.permute.xlu0 %2417
    %2420 = vset.pattern.permute.xlu0 4
    %2421 = vperm.xlu0 %2420, %v1019
    %v2422 = vpop.permute.xlu0 %2421
    %2424 = vset.pattern.permute.xlu0 4
    %2425 = vperm.xlu0 %2424, %v1020
    %v2426 = vpop.permute.xlu0 %2425
    %2428 = vset.pattern.permute.xlu0 4
    %2429 = vperm.xlu0 %2428, %v1021
    %v2430 = vpop.permute.xlu0 %2429
    %2432 = vset.pattern.permute.xlu0 4
    %2433 = vperm.xlu0 %2432, %v1022
    %v2434 = vpop.permute.xlu0 %2433
    %2436 = vset.pattern.permute.xlu0 4
    %2437 = vperm.xlu0 %2436, %v1023
    %v2438 = vpop.permute.xlu0 %2437
    %2440 = vset.pattern.permute.xlu0 4
    %2441 = vperm.xlu0 %2440, %v1024
    %v2442 = vpop.permute.xlu0 %2441
    %2444 = vset.pattern.permute.xlu0 4
    %2445 = vperm.xlu0 %2444, %v1025
    %v2446 = vpop.permute.xlu0 %2445
    %2448 = vset.pattern.permute.xlu0 4
    %2449 = vperm.xlu0 %2448, %v1026
    %v2450 = vpop.permute.xlu0 %2449
    %2452 = vset.pattern.permute.xlu0 4
    %2453 = vperm.xlu0 %2452, %v1027
    %v2454 = vpop.permute.xlu0 %2453
    %2456 = vset.pattern.permute.xlu0 4
    %2457 = vperm.xlu0 %2456, %v1028
    %v2458 = vpop.permute.xlu0 %2457
    %2460 = vset.pattern.permute.xlu0 4
    %2461 = vperm.xlu0 %2460, %v1029
    %v2462 = vpop.permute.xlu0 %2461
    %2464 = vset.pattern.permute.xlu0 4
    %2465 = vperm.xlu0 %2464, %v1030
    %v2466 = vpop.permute.xlu0 %2465
    %2468 = vset.pattern.permute.xlu0 4
    %2469 = vperm.xlu0 %2468, %v1031
    %v2470 = vpop.permute.xlu0 %2469
    %2472 = vset.pattern.permute.xlu0 4
    %2473 = vperm.xlu0 %2472, %v1032
    %v2474 = vpop.permute.xlu0 %2473
    %v2476 = vmul.f32 %v2350, %v276
    %v2477 = vmul.f32 %v2354, %v282
    %v2478 = vmul.f32 %v2358, %v288
    %v2479 = vmul.f32 %v2362, %v294
    %v2480 = vmul.f32 %v2366, %v300
    %v2481 = vmul.f32 %v2370, %v306
    %v2482 = vmul.f32 %v2374, %v312
    %v2483 = vmul.f32 %v2378, %v318
    %v2484 = vmul.f32 %v2382, %v324
    %v2485 = vmul.f32 %v2386, %v330
    %v2486 = vmul.f32 %v2390, %v336
    %v2487 = vmul.f32 %v2394, %v342
    %v2488 = vmul.f32 %v2398, %v348
    %v2489 = vmul.f32 %v2402, %v354
    %v2490 = vmul.f32 %v2406, %v360
    %v2491 = vmul.f32 %v2410, %v366
    %v2492 = vmul.f32 %v2414, %v372
    %v2493 = vmul.f32 %v2418, %v378
    %v2494 = vmul.f32 %v2422, %v384
    %v2495 = vmul.f32 %v2426, %v390
    %v2496 = vmul.f32 %v2430, %v396
    %v2497 = vmul.f32 %v2434, %v402
    %v2498 = vmul.f32 %v2438, %v408
    %v2499 = vmul.f32 %v2442, %v414
    %v2500 = vmul.f32 %v2446, %v420
    %v2501 = vmul.f32 %v2450, %v426
    %v2502 = vmul.f32 %v2454, %v432
    %v2503 = vmul.f32 %v2458, %v438
    %v2504 = vmul.f32 %v2462, %v444
    %v2505 = vmul.f32 %v2466, %v450
    %v2506 = vmul.f32 %v2470, %v456
    %v2507 = vmul.f32 %v2474, %v462
    %v2508 = vpack.c.bf16 %v2477, %v2476
    %v2509 = vpack.c.bf16 %v2479, %v2478
    %v2510 = vpack.c.bf16 %v2481, %v2480
    %v2511 = vpack.c.bf16 %v2483, %v2482
    %v2512 = vpack.c.bf16 %v2485, %v2484
    %v2513 = vpack.c.bf16 %v2487, %v2486
    %v2514 = vpack.c.bf16 %v2489, %v2488
    %v2515 = vpack.c.bf16 %v2491, %v2490
    %v2516 = vpack.c.bf16 %v2493, %v2492
    %v2517 = vpack.c.bf16 %v2495, %v2494
    %v2518 = vpack.c.bf16 %v2497, %v2496
    %v2519 = vpack.c.bf16 %v2499, %v2498
    %v2520 = vpack.c.bf16 %v2501, %v2500
    %v2521 = vpack.c.bf16 %v2503, %v2502
    %v2522 = vpack.c.bf16 %v2505, %v2504
    %v2523 = vpack.c.bf16 %v2507, %v2506
    %v2540 = vunpack.c.l.b16 %v2508
    %v2541 = vunpack.c.h.b16 %v2508
    %v2542 = vunpack.c.l.b16 %v2509
    %v2543 = vunpack.c.h.b16 %v2509
    %v2544 = vunpack.c.l.b16 %v2510
    %v2545 = vunpack.c.h.b16 %v2510
    %v2546 = vunpack.c.l.b16 %v2511
    %v2547 = vunpack.c.h.b16 %v2511
    %v2548 = vunpack.c.l.b16 %v2512
    %v2549 = vunpack.c.h.b16 %v2512
    %v2550 = vunpack.c.l.b16 %v2513
    %v2551 = vunpack.c.h.b16 %v2513
    %v2552 = vunpack.c.l.b16 %v2514
    %v2553 = vunpack.c.h.b16 %v2514
    %v2554 = vunpack.c.l.b16 %v2515
    %v2555 = vunpack.c.h.b16 %v2515
    %v2556 = vunpack.c.l.b16 %v2516
    %v2557 = vunpack.c.h.b16 %v2516
    %v2558 = vunpack.c.l.b16 %v2517
    %v2559 = vunpack.c.h.b16 %v2517
    %v2560 = vunpack.c.l.b16 %v2518
    %v2561 = vunpack.c.h.b16 %v2518
    %v2562 = vunpack.c.l.b16 %v2519
    %v2563 = vunpack.c.h.b16 %v2519
    %v2564 = vunpack.c.l.b16 %v2520
    %v2565 = vunpack.c.h.b16 %v2520
    %v2566 = vunpack.c.l.b16 %v2521
    %v2567 = vunpack.c.h.b16 %v2521
    %v2568 = vunpack.c.l.b16 %v2522
    %v2569 = vunpack.c.h.b16 %v2522
    %v2570 = vunpack.c.l.b16 %v2523
    %v2571 = vunpack.c.h.b16 %v2523
    %v2572 = vpack.c.b16 %v2540, %v2540
    %v2573 = vpack.c.b16 %v2541, %v2541
    %v2574 = vpack.c.b16 %v2542, %v2542
    %v2575 = vpack.c.b16 %v2543, %v2543
    %v2576 = vpack.c.b16 %v2544, %v2544
    %v2577 = vpack.c.b16 %v2545, %v2545
    %v2578 = vpack.c.b16 %v2546, %v2546
    %v2579 = vpack.c.b16 %v2547, %v2547
    %v2580 = vpack.c.b16 %v2548, %v2548
    %v2581 = vpack.c.b16 %v2549, %v2549
    %v2582 = vpack.c.b16 %v2550, %v2550
    %v2583 = vpack.c.b16 %v2551, %v2551
    %v2584 = vpack.c.b16 %v2552, %v2552
    %v2585 = vpack.c.b16 %v2553, %v2553
    %v2586 = vpack.c.b16 %v2554, %v2554
    %v2587 = vpack.c.b16 %v2555, %v2555
    %v2588 = vpack.c.b16 %v2556, %v2556
    %v2589 = vpack.c.b16 %v2557, %v2557
    %v2590 = vpack.c.b16 %v2558, %v2558
    %v2591 = vpack.c.b16 %v2559, %v2559
    %v2592 = vpack.c.b16 %v2560, %v2560
    %v2593 = vpack.c.b16 %v2561, %v2561
    %v2594 = vpack.c.b16 %v2562, %v2562
    %v2595 = vpack.c.b16 %v2563, %v2563
    %v2596 = vpack.c.b16 %v2564, %v2564
    %v2597 = vpack.c.b16 %v2565, %v2565
    %v2598 = vpack.c.b16 %v2566, %v2566
    %v2599 = vpack.c.b16 %v2567, %v2567
    %v2600 = vpack.c.b16 %v2568, %v2568
    %v2601 = vpack.c.b16 %v2569, %v2569
    %v2602 = vpack.c.b16 %v2570, %v2570
    %v2603 = vpack.c.b16 %v2571, %v2571
    %s2636 = scalar_lea.vmem [#allocation2], 1024
    %2637 = vst [vmem:[%s2636] sm:$0xf] %v2572
    %2638 = vst [vmem:[%s2636 + $0x8] sm:$0xf] %v2573
    %2639 = vst [vmem:[%s2636 + $0x10] sm:$0xf] %v2574
    %2640 = vst [vmem:[%s2636 + $0x18] sm:$0xf] %v2575
    %2641 = vst [vmem:[%s2636 + $0x20] sm:$0xf] %v2576
    %2642 = vst [vmem:[%s2636 + $0x28] sm:$0xf] %v2577
    %2643 = vst [vmem:[%s2636 + $0x30] sm:$0xf] %v2578
    %2644 = vst [vmem:[%s2636 + $0x38] sm:$0xf] %v2579
    %2645 = vst [vmem:[%s2636 + $0x40] sm:$0xf] %v2580
    %2646 = vst [vmem:[%s2636 + $0x48] sm:$0xf] %v2581
    %2647 = vst [vmem:[%s2636 + $0x50] sm:$0xf] %v2582
    %2648 = vst [vmem:[%s2636 + $0x58] sm:$0xf] %v2583
    %2649 = vst [vmem:[%s2636 + $0x60] sm:$0xf] %v2584
    %2650 = vst [vmem:[%s2636 + $0x68] sm:$0xf] %v2585
    %2651 = vst [vmem:[%s2636 + $0x70] sm:$0xf] %v2586
    %2652 = vst [vmem:[%s2636 + $0x78] sm:$0xf] %v2587
    %2653 = vst [vmem:[%s2636 + $0x80] sm:$0xf] %v2588
    %2654 = vst [vmem:[%s2636 + $0x88] sm:$0xf] %v2589
    %2655 = vst [vmem:[%s2636 + $0x90] sm:$0xf] %v2590
    %2656 = vst [vmem:[%s2636 + $0x98] sm:$0xf] %v2591
    %2657 = vst [vmem:[%s2636 + $0xa0] sm:$0xf] %v2592
    %2658 = vst [vmem:[%s2636 + $0xa8] sm:$0xf] %v2593
    %2659 = vst [vmem:[%s2636 + $0xb0] sm:$0xf] %v2594
    %2660 = vst [vmem:[%s2636 + $0xb8] sm:$0xf] %v2595
    %2661 = vst [vmem:[%s2636 + $0xc0] sm:$0xf] %v2596
    %2662 = vst [vmem:[%s2636 + $0xc8] sm:$0xf] %v2597
    %2663 = vst [vmem:[%s2636 + $0xd0] sm:$0xf] %v2598
    %2664 = vst [vmem:[%s2636 + $0xd8] sm:$0xf] %v2599
    %2665 = vst [vmem:[%s2636 + $0xe0] sm:$0xf] %v2600
    %2666 = vst [vmem:[%s2636 + $0xe8] sm:$0xf] %v2601
    %2667 = vst [vmem:[%s2636 + $0xf0] sm:$0xf] %v2602
    %2668 = vst [vmem:[%s2636 + $0xf8] sm:$0xf] %v2603
    %2669 = vset.pattern.permute.xlu0 5
    %2670 = vperm.xlu0 %2669, %v985
    %v2671 = vpop.permute.xlu0 %2670
    %2673 = vset.pattern.permute.xlu0 5
    %2674 = vperm.xlu0 %2673, %v986
    %v2675 = vpop.permute.xlu0 %2674
    %2677 = vset.pattern.permute.xlu0 5
    %2678 = vperm.xlu0 %2677, %v987
    %v2679 = vpop.permute.xlu0 %2678
    %2681 = vset.pattern.permute.xlu0 5
    %2682 = vperm.xlu0 %2681, %v988
    %v2683 = vpop.permute.xlu0 %2682
    %2685 = vset.pattern.permute.xlu0 5
    %2686 = vperm.xlu0 %2685, %v989
    %v2687 = vpop.permute.xlu0 %2686
    %2689 = vset.pattern.permute.xlu0 5
    %2690 = vperm.xlu0 %2689, %v990
    %v2691 = vpop.permute.xlu0 %2690
    %2693 = vset.pattern.permute.xlu0 5
    %2694 = vperm.xlu0 %2693, %v991
    %v2695 = vpop.permute.xlu0 %2694
    %2697 = vset.pattern.permute.xlu0 5
    %2698 = vperm.xlu0 %2697, %v992
    %v2699 = vpop.permute.xlu0 %2698
    %2701 = vset.pattern.permute.xlu0 5
    %2702 = vperm.xlu0 %2701, %v993
    %v2703 = vpop.permute.xlu0 %2702
    %2705 = vset.pattern.permute.xlu0 5
    %2706 = vperm.xlu0 %2705, %v994
    %v2707 = vpop.permute.xlu0 %2706
    %2709 = vset.pattern.permute.xlu0 5
    %2710 = vperm.xlu0 %2709, %v995
    %v2711 = vpop.permute.xlu0 %2710
    %2713 = vset.pattern.permute.xlu0 5
    %2714 = vperm.xlu0 %2713, %v996
    %v2715 = vpop.permute.xlu0 %2714
    %2717 = vset.pattern.permute.xlu0 5
    %2718 = vperm.xlu0 %2717, %v997
    %v2719 = vpop.permute.xlu0 %2718
    %2721 = vset.pattern.permute.xlu0 5
    %2722 = vperm.xlu0 %2721, %v998
    %v2723 = vpop.permute.xlu0 %2722
    %2725 = vset.pattern.permute.xlu0 5
    %2726 = vperm.xlu0 %2725, %v999
    %v2727 = vpop.permute.xlu0 %2726
    %2729 = vset.pattern.permute.xlu0 5
    %2730 = vperm.xlu0 %2729, %v1000
    %v2731 = vpop.permute.xlu0 %2730
    %2733 = vset.pattern.permute.xlu0 5
    %2734 = vperm.xlu0 %2733, %v1017
    %v2735 = vpop.permute.xlu0 %2734
    %2737 = vset.pattern.permute.xlu0 5
    %2738 = vperm.xlu0 %2737, %v1018
    %v2739 = vpop.permute.xlu0 %2738
    %2741 = vset.pattern.permute.xlu0 5
    %2742 = vperm.xlu0 %2741, %v1019
    %v2743 = vpop.permute.xlu0 %2742
    %2745 = vset.pattern.permute.xlu0 5
    %2746 = vperm.xlu0 %2745, %v1020
    %v2747 = vpop.permute.xlu0 %2746
    %2749 = vset.pattern.permute.xlu0 5
    %2750 = vperm.xlu0 %2749, %v1021
    %v2751 = vpop.permute.xlu0 %2750
    %2753 = vset.pattern.permute.xlu0 5
    %2754 = vperm.xlu0 %2753, %v1022
    %v2755 = vpop.permute.xlu0 %2754
    %2757 = vset.pattern.permute.xlu0 5
    %2758 = vperm.xlu0 %2757, %v1023
    %v2759 = vpop.permute.xlu0 %2758
    %2761 = vset.pattern.permute.xlu0 5
    %2762 = vperm.xlu0 %2761, %v1024
    %v2763 = vpop.permute.xlu0 %2762
    %2765 = vset.pattern.permute.xlu0 5
    %2766 = vperm.xlu0 %2765, %v1025
    %v2767 = vpop.permute.xlu0 %2766
    %2769 = vset.pattern.permute.xlu0 5
    %2770 = vperm.xlu0 %2769, %v1026
    %v2771 = vpop.permute.xlu0 %2770
    %2773 = vset.pattern.permute.xlu0 5
    %2774 = vperm.xlu0 %2773, %v1027
    %v2775 = vpop.permute.xlu0 %2774
    %2777 = vset.pattern.permute.xlu0 5
    %2778 = vperm.xlu0 %2777, %v1028
    %v2779 = vpop.permute.xlu0 %2778
    %2781 = vset.pattern.permute.xlu0 5
    %2782 = vperm.xlu0 %2781, %v1029
    %v2783 = vpop.permute.xlu0 %2782
    %2785 = vset.pattern.permute.xlu0 5
    %2786 = vperm.xlu0 %2785, %v1030
    %v2787 = vpop.permute.xlu0 %2786
    %2789 = vset.pattern.permute.xlu0 5
    %2790 = vperm.xlu0 %2789, %v1031
    %v2791 = vpop.permute.xlu0 %2790
    %2793 = vset.pattern.permute.xlu0 5
    %2794 = vperm.xlu0 %2793, %v1032
    %v2795 = vpop.permute.xlu0 %2794
    %v2797 = vmul.f32 %v2671, %v276
    %v2798 = vmul.f32 %v2675, %v282
    %v2799 = vmul.f32 %v2679, %v288
    %v2800 = vmul.f32 %v2683, %v294
    %v2801 = vmul.f32 %v2687, %v300
    %v2802 = vmul.f32 %v2691, %v306
    %v2803 = vmul.f32 %v2695, %v312
    %v2804 = vmul.f32 %v2699, %v318
    %v2805 = vmul.f32 %v2703, %v324
    %v2806 = vmul.f32 %v2707, %v330
    %v2807 = vmul.f32 %v2711, %v336
    %v2808 = vmul.f32 %v2715, %v342
    %v2809 = vmul.f32 %v2719, %v348
    %v2810 = vmul.f32 %v2723, %v354
    %v2811 = vmul.f32 %v2727, %v360
    %v2812 = vmul.f32 %v2731, %v366
    %v2813 = vmul.f32 %v2735, %v372
    %v2814 = vmul.f32 %v2739, %v378
    %v2815 = vmul.f32 %v2743, %v384
    %v2816 = vmul.f32 %v2747, %v390
    %v2817 = vmul.f32 %v2751, %v396
    %v2818 = vmul.f32 %v2755, %v402
    %v2819 = vmul.f32 %v2759, %v408
    %v2820 = vmul.f32 %v2763, %v414
    %v2821 = vmul.f32 %v2767, %v420
    %v2822 = vmul.f32 %v2771, %v426
    %v2823 = vmul.f32 %v2775, %v432
    %v2824 = vmul.f32 %v2779, %v438
    %v2825 = vmul.f32 %v2783, %v444
    %v2826 = vmul.f32 %v2787, %v450
    %v2827 = vmul.f32 %v2791, %v456
    %v2828 = vmul.f32 %v2795, %v462
    %v2829 = vpack.c.bf16 %v2798, %v2797
    %v2830 = vpack.c.bf16 %v2800, %v2799
    %v2831 = vpack.c.bf16 %v2802, %v2801
    %v2832 = vpack.c.bf16 %v2804, %v2803
    %v2833 = vpack.c.bf16 %v2806, %v2805
    %v2834 = vpack.c.bf16 %v2808, %v2807
    %v2835 = vpack.c.bf16 %v2810, %v2809
    %v2836 = vpack.c.bf16 %v2812, %v2811
    %v2837 = vpack.c.bf16 %v2814, %v2813
    %v2838 = vpack.c.bf16 %v2816, %v2815
    %v2839 = vpack.c.bf16 %v2818, %v2817
    %v2840 = vpack.c.bf16 %v2820, %v2819
    %v2841 = vpack.c.bf16 %v2822, %v2821
    %v2842 = vpack.c.bf16 %v2824, %v2823
    %v2843 = vpack.c.bf16 %v2826, %v2825
    %v2844 = vpack.c.bf16 %v2828, %v2827
    %v2861 = vunpack.c.l.b16 %v2829
    %v2862 = vunpack.c.h.b16 %v2829
    %v2863 = vunpack.c.l.b16 %v2830
    %v2864 = vunpack.c.h.b16 %v2830
    %v2865 = vunpack.c.l.b16 %v2831
    %v2866 = vunpack.c.h.b16 %v2831
    %v2867 = vunpack.c.l.b16 %v2832
    %v2868 = vunpack.c.h.b16 %v2832
    %v2869 = vunpack.c.l.b16 %v2833
    %v2870 = vunpack.c.h.b16 %v2833
    %v2871 = vunpack.c.l.b16 %v2834
    %v2872 = vunpack.c.h.b16 %v2834
    %v2873 = vunpack.c.l.b16 %v2835
    %v2874 = vunpack.c.h.b16 %v2835
    %v2875 = vunpack.c.l.b16 %v2836
    %v2876 = vunpack.c.h.b16 %v2836
    %v2877 = vunpack.c.l.b16 %v2837
    %v2878 = vunpack.c.h.b16 %v2837
    %v2879 = vunpack.c.l.b16 %v2838
    %v2880 = vunpack.c.h.b16 %v2838
    %v2881 = vunpack.c.l.b16 %v2839
    %v2882 = vunpack.c.h.b16 %v2839
    %v2883 = vunpack.c.l.b16 %v2840
    %v2884 = vunpack.c.h.b16 %v2840
    %v2885 = vunpack.c.l.b16 %v2841
    %v2886 = vunpack.c.h.b16 %v2841
    %v2887 = vunpack.c.l.b16 %v2842
    %v2888 = vunpack.c.h.b16 %v2842
    %v2889 = vunpack.c.l.b16 %v2843
    %v2890 = vunpack.c.h.b16 %v2843
    %v2891 = vunpack.c.l.b16 %v2844
    %v2892 = vunpack.c.h.b16 %v2844
    %v2893 = vpack.c.b16 %v2861, %v2861
    %v2894 = vpack.c.b16 %v2862, %v2862
    %v2895 = vpack.c.b16 %v2863, %v2863
    %v2896 = vpack.c.b16 %v2864, %v2864
    %v2897 = vpack.c.b16 %v2865, %v2865
    %v2898 = vpack.c.b16 %v2866, %v2866
    %v2899 = vpack.c.b16 %v2867, %v2867
    %v2900 = vpack.c.b16 %v2868, %v2868
    %v2901 = vpack.c.b16 %v2869, %v2869
    %v2902 = vpack.c.b16 %v2870, %v2870
    %v2903 = vpack.c.b16 %v2871, %v2871
    %v2904 = vpack.c.b16 %v2872, %v2872
    %v2905 = vpack.c.b16 %v2873, %v2873
    %v2906 = vpack.c.b16 %v2874, %v2874
    %v2907 = vpack.c.b16 %v2875, %v2875
    %v2908 = vpack.c.b16 %v2876, %v2876
    %v2909 = vpack.c.b16 %v2877, %v2877
    %v2910 = vpack.c.b16 %v2878, %v2878
    %v2911 = vpack.c.b16 %v2879, %v2879
    %v2912 = vpack.c.b16 %v2880, %v2880
    %v2913 = vpack.c.b16 %v2881, %v2881
    %v2914 = vpack.c.b16 %v2882, %v2882
    %v2915 = vpack.c.b16 %v2883, %v2883
    %v2916 = vpack.c.b16 %v2884, %v2884
    %v2917 = vpack.c.b16 %v2885, %v2885
    %v2918 = vpack.c.b16 %v2886, %v2886
    %v2919 = vpack.c.b16 %v2887, %v2887
    %v2920 = vpack.c.b16 %v2888, %v2888
    %v2921 = vpack.c.b16 %v2889, %v2889
    %v2922 = vpack.c.b16 %v2890, %v2890
    %v2923 = vpack.c.b16 %v2891, %v2891
    %v2924 = vpack.c.b16 %v2892, %v2892
    %s2957 = scalar_lea.vmem [#allocation2], 1280
    %2958 = vst [vmem:[%s2957] sm:$0xf] %v2893
    %2959 = vst [vmem:[%s2957 + $0x8] sm:$0xf] %v2894
    %2960 = vst [vmem:[%s2957 + $0x10] sm:$0xf] %v2895
    %2961 = vst [vmem:[%s2957 + $0x18] sm:$0xf] %v2896
    %2962 = vst [vmem:[%s2957 + $0x20] sm:$0xf] %v2897
    %2963 = vst [vmem:[%s2957 + $0x28] sm:$0xf] %v2898
    %2964 = vst [vmem:[%s2957 + $0x30] sm:$0xf] %v2899
    %2965 = vst [vmem:[%s2957 + $0x38] sm:$0xf] %v2900
    %2966 = vst [vmem:[%s2957 + $0x40] sm:$0xf] %v2901
    %2967 = vst [vmem:[%s2957 + $0x48] sm:$0xf] %v2902
    %2968 = vst [vmem:[%s2957 + $0x50] sm:$0xf] %v2903
    %2969 = vst [vmem:[%s2957 + $0x58] sm:$0xf] %v2904
    %2970 = vst [vmem:[%s2957 + $0x60] sm:$0xf] %v2905
    %2971 = vst [vmem:[%s2957 + $0x68] sm:$0xf] %v2906
    %2972 = vst [vmem:[%s2957 + $0x70] sm:$0xf] %v2907
    %2973 = vst [vmem:[%s2957 + $0x78] sm:$0xf] %v2908
    %2974 = vst [vmem:[%s2957 + $0x80] sm:$0xf] %v2909
    %2975 = vst [vmem:[%s2957 + $0x88] sm:$0xf] %v2910
    %2976 = vst [vmem:[%s2957 + $0x90] sm:$0xf] %v2911
    %2977 = vst [vmem:[%s2957 + $0x98] sm:$0xf] %v2912
    %2978 = vst [vmem:[%s2957 + $0xa0] sm:$0xf] %v2913
    %2979 = vst [vmem:[%s2957 + $0xa8] sm:$0xf] %v2914
    %2980 = vst [vmem:[%s2957 + $0xb0] sm:$0xf] %v2915
    %2981 = vst [vmem:[%s2957 + $0xb8] sm:$0xf] %v2916
    %2982 = vst [vmem:[%s2957 + $0xc0] sm:$0xf] %v2917
    %2983 = vst [vmem:[%s2957 + $0xc8] sm:$0xf] %v2918
    %2984 = vst [vmem:[%s2957 + $0xd0] sm:$0xf] %v2919
    %2985 = vst [vmem:[%s2957 + $0xd8] sm:$0xf] %v2920
    %2986 = vst [vmem:[%s2957 + $0xe0] sm:$0xf] %v2921
    %2987 = vst [vmem:[%s2957 + $0xe8] sm:$0xf] %v2922
    %2988 = vst [vmem:[%s2957 + $0xf0] sm:$0xf] %v2923
    %2989 = vst [vmem:[%s2957 + $0xf8] sm:$0xf] %v2924
    %2990 = vset.pattern.permute.xlu0 6
    %2991 = vperm.xlu0 %2990, %v985
    %v2992 = vpop.permute.xlu0 %2991
    %2994 = vset.pattern.permute.xlu0 6
    %2995 = vperm.xlu0 %2994, %v986
    %v2996 = vpop.permute.xlu0 %2995
    %2998 = vset.pattern.permute.xlu0 6
    %2999 = vperm.xlu0 %2998, %v987
    %v3000 = vpop.permute.xlu0 %2999
    %3002 = vset.pattern.permute.xlu0 6
    %3003 = vperm.xlu0 %3002, %v988
    %v3004 = vpop.permute.xlu0 %3003
    %3006 = vset.pattern.permute.xlu0 6
    %3007 = vperm.xlu0 %3006, %v989
    %v3008 = vpop.permute.xlu0 %3007
    %3010 = vset.pattern.permute.xlu0 6
    %3011 = vperm.xlu0 %3010, %v990
    %v3012 = vpop.permute.xlu0 %3011
    %3014 = vset.pattern.permute.xlu0 6
    %3015 = vperm.xlu0 %3014, %v991
    %v3016 = vpop.permute.xlu0 %3015
    %3018 = vset.pattern.permute.xlu0 6
    %3019 = vperm.xlu0 %3018, %v992
    %v3020 = vpop.permute.xlu0 %3019
    %3022 = vset.pattern.permute.xlu0 6
    %3023 = vperm.xlu0 %3022, %v993
    %v3024 = vpop.permute.xlu0 %3023
    %3026 = vset.pattern.permute.xlu0 6
    %3027 = vperm.xlu0 %3026, %v994
    %v3028 = vpop.permute.xlu0 %3027
    %3030 = vset.pattern.permute.xlu0 6
    %3031 = vperm.xlu0 %3030, %v995
    %v3032 = vpop.permute.xlu0 %3031
    %3034 = vset.pattern.permute.xlu0 6
    %3035 = vperm.xlu0 %3034, %v996
    %v3036 = vpop.permute.xlu0 %3035
    %3038 = vset.pattern.permute.xlu0 6
    %3039 = vperm.xlu0 %3038, %v997
    %v3040 = vpop.permute.xlu0 %3039
    %3042 = vset.pattern.permute.xlu0 6
    %3043 = vperm.xlu0 %3042, %v998
    %v3044 = vpop.permute.xlu0 %3043
    %3046 = vset.pattern.permute.xlu0 6
    %3047 = vperm.xlu0 %3046, %v999
    %v3048 = vpop.permute.xlu0 %3047
    %3050 = vset.pattern.permute.xlu0 6
    %3051 = vperm.xlu0 %3050, %v1000
    %v3052 = vpop.permute.xlu0 %3051
    %3054 = vset.pattern.permute.xlu0 6
    %3055 = vperm.xlu0 %3054, %v1017
    %v3056 = vpop.permute.xlu0 %3055
    %3058 = vset.pattern.permute.xlu0 6
    %3059 = vperm.xlu0 %3058, %v1018
    %v3060 = vpop.permute.xlu0 %3059
    %3062 = vset.pattern.permute.xlu0 6
    %3063 = vperm.xlu0 %3062, %v1019
    %v3064 = vpop.permute.xlu0 %3063
    %3066 = vset.pattern.permute.xlu0 6
    %3067 = vperm.xlu0 %3066, %v1020
    %v3068 = vpop.permute.xlu0 %3067
    %3070 = vset.pattern.permute.xlu0 6
    %3071 = vperm.xlu0 %3070, %v1021
    %v3072 = vpop.permute.xlu0 %3071
    %3074 = vset.pattern.permute.xlu0 6
    %3075 = vperm.xlu0 %3074, %v1022
    %v3076 = vpop.permute.xlu0 %3075
    %3078 = vset.pattern.permute.xlu0 6
    %3079 = vperm.xlu0 %3078, %v1023
    %v3080 = vpop.permute.xlu0 %3079
    %3082 = vset.pattern.permute.xlu0 6
    %3083 = vperm.xlu0 %3082, %v1024
    %v3084 = vpop.permute.xlu0 %3083
    %3086 = vset.pattern.permute.xlu0 6
    %3087 = vperm.xlu0 %3086, %v1025
    %v3088 = vpop.permute.xlu0 %3087
    %3090 = vset.pattern.permute.xlu0 6
    %3091 = vperm.xlu0 %3090, %v1026
    %v3092 = vpop.permute.xlu0 %3091
    %3094 = vset.pattern.permute.xlu0 6
    %3095 = vperm.xlu0 %3094, %v1027
    %v3096 = vpop.permute.xlu0 %3095
    %3098 = vset.pattern.permute.xlu0 6
    %3099 = vperm.xlu0 %3098, %v1028
    %v3100 = vpop.permute.xlu0 %3099
    %3102 = vset.pattern.permute.xlu0 6
    %3103 = vperm.xlu0 %3102, %v1029
    %v3104 = vpop.permute.xlu0 %3103
    %3106 = vset.pattern.permute.xlu0 6
    %3107 = vperm.xlu0 %3106, %v1030
    %v3108 = vpop.permute.xlu0 %3107
    %3110 = vset.pattern.permute.xlu0 6
    %3111 = vperm.xlu0 %3110, %v1031
    %v3112 = vpop.permute.xlu0 %3111
    %3114 = vset.pattern.permute.xlu0 6
    %3115 = vperm.xlu0 %3114, %v1032
    %v3116 = vpop.permute.xlu0 %3115
    %v3118 = vmul.f32 %v2992, %v276
    %v3119 = vmul.f32 %v2996, %v282
    %v3120 = vmul.f32 %v3000, %v288
    %v3121 = vmul.f32 %v3004, %v294
    %v3122 = vmul.f32 %v3008, %v300
    %v3123 = vmul.f32 %v3012, %v306
    %v3124 = vmul.f32 %v3016, %v312
    %v3125 = vmul.f32 %v3020, %v318
    %v3126 = vmul.f32 %v3024, %v324
    %v3127 = vmul.f32 %v3028, %v330
    %v3128 = vmul.f32 %v3032, %v336
    %v3129 = vmul.f32 %v3036, %v342
    %v3130 = vmul.f32 %v3040, %v348
    %v3131 = vmul.f32 %v3044, %v354
    %v3132 = vmul.f32 %v3048, %v360
    %v3133 = vmul.f32 %v3052, %v366
    %v3134 = vmul.f32 %v3056, %v372
    %v3135 = vmul.f32 %v3060, %v378
    %v3136 = vmul.f32 %v3064, %v384
    %v3137 = vmul.f32 %v3068, %v390
    %v3138 = vmul.f32 %v3072, %v396
    %v3139 = vmul.f32 %v3076, %v402
    %v3140 = vmul.f32 %v3080, %v408
    %v3141 = vmul.f32 %v3084, %v414
    %v3142 = vmul.f32 %v3088, %v420
    %v3143 = vmul.f32 %v3092, %v426
    %v3144 = vmul.f32 %v3096, %v432
    %v3145 = vmul.f32 %v3100, %v438
    %v3146 = vmul.f32 %v3104, %v444
    %v3147 = vmul.f32 %v3108, %v450
    %v3148 = vmul.f32 %v3112, %v456
    %v3149 = vmul.f32 %v3116, %v462
    %v3150 = vpack.c.bf16 %v3119, %v3118
    %v3151 = vpack.c.bf16 %v3121, %v3120
    %v3152 = vpack.c.bf16 %v3123, %v3122
    %v3153 = vpack.c.bf16 %v3125, %v3124
    %v3154 = vpack.c.bf16 %v3127, %v3126
    %v3155 = vpack.c.bf16 %v3129, %v3128
    %v3156 = vpack.c.bf16 %v3131, %v3130
    %v3157 = vpack.c.bf16 %v3133, %v3132
    %v3158 = vpack.c.bf16 %v3135, %v3134
    %v3159 = vpack.c.bf16 %v3137, %v3136
    %v3160 = vpack.c.bf16 %v3139, %v3138
    %v3161 = vpack.c.bf16 %v3141, %v3140
    %v3162 = vpack.c.bf16 %v3143, %v3142
    %v3163 = vpack.c.bf16 %v3145, %v3144
    %v3164 = vpack.c.bf16 %v3147, %v3146
    %v3165 = vpack.c.bf16 %v3149, %v3148
    %v3182 = vunpack.c.l.b16 %v3150
    %v3183 = vunpack.c.h.b16 %v3150
    %v3184 = vunpack.c.l.b16 %v3151
    %v3185 = vunpack.c.h.b16 %v3151
    %v3186 = vunpack.c.l.b16 %v3152
    %v3187 = vunpack.c.h.b16 %v3152
    %v3188 = vunpack.c.l.b16 %v3153
    %v3189 = vunpack.c.h.b16 %v3153
    %v3190 = vunpack.c.l.b16 %v3154
    %v3191 = vunpack.c.h.b16 %v3154
    %v3192 = vunpack.c.l.b16 %v3155
    %v3193 = vunpack.c.h.b16 %v3155
    %v3194 = vunpack.c.l.b16 %v3156
    %v3195 = vunpack.c.h.b16 %v3156
    %v3196 = vunpack.c.l.b16 %v3157
    %v3197 = vunpack.c.h.b16 %v3157
    %v3198 = vunpack.c.l.b16 %v3158
    %v3199 = vunpack.c.h.b16 %v3158
    %v3200 = vunpack.c.l.b16 %v3159
    %v3201 = vunpack.c.h.b16 %v3159
    %v3202 = vunpack.c.l.b16 %v3160
    %v3203 = vunpack.c.h.b16 %v3160
    %v3204 = vunpack.c.l.b16 %v3161
    %v3205 = vunpack.c.h.b16 %v3161
    %v3206 = vunpack.c.l.b16 %v3162
    %v3207 = vunpack.c.h.b16 %v3162
    %v3208 = vunpack.c.l.b16 %v3163
    %v3209 = vunpack.c.h.b16 %v3163
    %v3210 = vunpack.c.l.b16 %v3164
    %v3211 = vunpack.c.h.b16 %v3164
    %v3212 = vunpack.c.l.b16 %v3165
    %v3213 = vunpack.c.h.b16 %v3165
    %v3214 = vpack.c.b16 %v3182, %v3182
    %v3215 = vpack.c.b16 %v3183, %v3183
    %v3216 = vpack.c.b16 %v3184, %v3184
    %v3217 = vpack.c.b16 %v3185, %v3185
    %v3218 = vpack.c.b16 %v3186, %v3186
    %v3219 = vpack.c.b16 %v3187, %v3187
    %v3220 = vpack.c.b16 %v3188, %v3188
    %v3221 = vpack.c.b16 %v3189, %v3189
    %v3222 = vpack.c.b16 %v3190, %v3190
    %v3223 = vpack.c.b16 %v3191, %v3191
    %v3224 = vpack.c.b16 %v3192, %v3192
    %v3225 = vpack.c.b16 %v3193, %v3193
    %v3226 = vpack.c.b16 %v3194, %v3194
    %v3227 = vpack.c.b16 %v3195, %v3195
    %v3228 = vpack.c.b16 %v3196, %v3196
    %v3229 = vpack.c.b16 %v3197, %v3197
    %v3230 = vpack.c.b16 %v3198, %v3198
    %v3231 = vpack.c.b16 %v3199, %v3199
    %v3232 = vpack.c.b16 %v3200, %v3200
    %v3233 = vpack.c.b16 %v3201, %v3201
    %v3234 = vpack.c.b16 %v3202, %v3202
    %v3235 = vpack.c.b16 %v3203, %v3203
    %v3236 = vpack.c.b16 %v3204, %v3204
    %v3237 = vpack.c.b16 %v3205, %v3205
    %v3238 = vpack.c.b16 %v3206, %v3206
    %v3239 = vpack.c.b16 %v3207, %v3207
    %v3240 = vpack.c.b16 %v3208, %v3208
    %v3241 = vpack.c.b16 %v3209, %v3209
    %v3242 = vpack.c.b16 %v3210, %v3210
    %v3243 = vpack.c.b16 %v3211, %v3211
    %v3244 = vpack.c.b16 %v3212, %v3212
    %v3245 = vpack.c.b16 %v3213, %v3213
    %s3278 = scalar_lea.vmem [#allocation2], 1536
    %3279 = vst [vmem:[%s3278] sm:$0xf] %v3214
    %3280 = vst [vmem:[%s3278 + $0x8] sm:$0xf] %v3215
    %3281 = vst [vmem:[%s3278 + $0x10] sm:$0xf] %v3216
    %3282 = vst [vmem:[%s3278 + $0x18] sm:$0xf] %v3217
    %3283 = vst [vmem:[%s3278 + $0x20] sm:$0xf] %v3218
    %3284 = vst [vmem:[%s3278 + $0x28] sm:$0xf] %v3219
    %3285 = vst [vmem:[%s3278 + $0x30] sm:$0xf] %v3220
    %3286 = vst [vmem:[%s3278 + $0x38] sm:$0xf] %v3221
    %3287 = vst [vmem:[%s3278 + $0x40] sm:$0xf] %v3222
    %3288 = vst [vmem:[%s3278 + $0x48] sm:$0xf] %v3223
    %3289 = vst [vmem:[%s3278 + $0x50] sm:$0xf] %v3224
    %3290 = vst [vmem:[%s3278 + $0x58] sm:$0xf] %v3225
    %3291 = vst [vmem:[%s3278 + $0x60] sm:$0xf] %v3226
    %3292 = vst [vmem:[%s3278 + $0x68] sm:$0xf] %v3227
    %3293 = vst [vmem:[%s3278 + $0x70] sm:$0xf] %v3228
    %3294 = vst [vmem:[%s3278 + $0x78] sm:$0xf] %v3229
    %3295 = vst [vmem:[%s3278 + $0x80] sm:$0xf] %v3230
    %3296 = vst [vmem:[%s3278 + $0x88] sm:$0xf] %v3231
    %3297 = vst [vmem:[%s3278 + $0x90] sm:$0xf] %v3232
    %3298 = vst [vmem:[%s3278 + $0x98] sm:$0xf] %v3233
    %3299 = vst [vmem:[%s3278 + $0xa0] sm:$0xf] %v3234
    %3300 = vst [vmem:[%s3278 + $0xa8] sm:$0xf] %v3235
    %3301 = vst [vmem:[%s3278 + $0xb0] sm:$0xf] %v3236
    %3302 = vst [vmem:[%s3278 + $0xb8] sm:$0xf] %v3237
    %3303 = vst [vmem:[%s3278 + $0xc0] sm:$0xf] %v3238
    %3304 = vst [vmem:[%s3278 + $0xc8] sm:$0xf] %v3239
    %3305 = vst [vmem:[%s3278 + $0xd0] sm:$0xf] %v3240
    %3306 = vst [vmem:[%s3278 + $0xd8] sm:$0xf] %v3241
    %3307 = vst [vmem:[%s3278 + $0xe0] sm:$0xf] %v3242
    %3308 = vst [vmem:[%s3278 + $0xe8] sm:$0xf] %v3243
    %3309 = vst [vmem:[%s3278 + $0xf0] sm:$0xf] %v3244
    %3310 = vst [vmem:[%s3278 + $0xf8] sm:$0xf] %v3245
    %3311 = vset.pattern.permute.xlu0 7
    %3312 = vperm.xlu0 %3311, %v985
    %v3313 = vpop.permute.xlu0 %3312
    %3315 = vset.pattern.permute.xlu0 7
    %3316 = vperm.xlu0 %3315, %v986
    %v3317 = vpop.permute.xlu0 %3316
    %3319 = vset.pattern.permute.xlu0 7
    %3320 = vperm.xlu0 %3319, %v987
    %v3321 = vpop.permute.xlu0 %3320
    %3323 = vset.pattern.permute.xlu0 7
    %3324 = vperm.xlu0 %3323, %v988
    %v3325 = vpop.permute.xlu0 %3324
    %3327 = vset.pattern.permute.xlu0 7
    %3328 = vperm.xlu0 %3327, %v989
    %v3329 = vpop.permute.xlu0 %3328
    %3331 = vset.pattern.permute.xlu0 7
    %3332 = vperm.xlu0 %3331, %v990
    %v3333 = vpop.permute.xlu0 %3332
    %3335 = vset.pattern.permute.xlu0 7
    %3336 = vperm.xlu0 %3335, %v991
    %v3337 = vpop.permute.xlu0 %3336
    %3339 = vset.pattern.permute.xlu0 7
    %3340 = vperm.xlu0 %3339, %v992
    %v3341 = vpop.permute.xlu0 %3340
    %3343 = vset.pattern.permute.xlu0 7
    %3344 = vperm.xlu0 %3343, %v993
    %v3345 = vpop.permute.xlu0 %3344
    %3347 = vset.pattern.permute.xlu0 7
    %3348 = vperm.xlu0 %3347, %v994
    %v3349 = vpop.permute.xlu0 %3348
    %3351 = vset.pattern.permute.xlu0 7
    %3352 = vperm.xlu0 %3351, %v995
    %v3353 = vpop.permute.xlu0 %3352
    %3355 = vset.pattern.permute.xlu0 7
    %3356 = vperm.xlu0 %3355, %v996
    %v3357 = vpop.permute.xlu0 %3356
    %3359 = vset.pattern.permute.xlu0 7
    %3360 = vperm.xlu0 %3359, %v997
    %v3361 = vpop.permute.xlu0 %3360
    %3363 = vset.pattern.permute.xlu0 7
    %3364 = vperm.xlu0 %3363, %v998
    %v3365 = vpop.permute.xlu0 %3364
    %3367 = vset.pattern.permute.xlu0 7
    %3368 = vperm.xlu0 %3367, %v999
    %v3369 = vpop.permute.xlu0 %3368
    %3371 = vset.pattern.permute.xlu0 7
    %3372 = vperm.xlu0 %3371, %v1000
    %v3373 = vpop.permute.xlu0 %3372
    %3375 = vset.pattern.permute.xlu0 7
    %3376 = vperm.xlu0 %3375, %v1017
    %v3377 = vpop.permute.xlu0 %3376
    %3379 = vset.pattern.permute.xlu0 7
    %3380 = vperm.xlu0 %3379, %v1018
    %v3381 = vpop.permute.xlu0 %3380
    %3383 = vset.pattern.permute.xlu0 7
    %3384 = vperm.xlu0 %3383, %v1019
    %v3385 = vpop.permute.xlu0 %3384
    %3387 = vset.pattern.permute.xlu0 7
    %3388 = vperm.xlu0 %3387, %v1020
    %v3389 = vpop.permute.xlu0 %3388
    %3391 = vset.pattern.permute.xlu0 7
    %3392 = vperm.xlu0 %3391, %v1021
    %v3393 = vpop.permute.xlu0 %3392
    %3395 = vset.pattern.permute.xlu0 7
    %3396 = vperm.xlu0 %3395, %v1022
    %v3397 = vpop.permute.xlu0 %3396
    %3399 = vset.pattern.permute.xlu0 7
    %3400 = vperm.xlu0 %3399, %v1023
    %v3401 = vpop.permute.xlu0 %3400
    %3403 = vset.pattern.permute.xlu0 7
    %3404 = vperm.xlu0 %3403, %v1024
    %v3405 = vpop.permute.xlu0 %3404
    %3407 = vset.pattern.permute.xlu0 7
    %3408 = vperm.xlu0 %3407, %v1025
    %v3409 = vpop.permute.xlu0 %3408
    %3411 = vset.pattern.permute.xlu0 7
    %3412 = vperm.xlu0 %3411, %v1026
    %v3413 = vpop.permute.xlu0 %3412
    %3415 = vset.pattern.permute.xlu0 7
    %3416 = vperm.xlu0 %3415, %v1027
    %v3417 = vpop.permute.xlu0 %3416
    %3419 = vset.pattern.permute.xlu0 7
    %3420 = vperm.xlu0 %3419, %v1028
    %v3421 = vpop.permute.xlu0 %3420
    %3423 = vset.pattern.permute.xlu0 7
    %3424 = vperm.xlu0 %3423, %v1029
    %v3425 = vpop.permute.xlu0 %3424
    %3427 = vset.pattern.permute.xlu0 7
    %3428 = vperm.xlu0 %3427, %v1030
    %v3429 = vpop.permute.xlu0 %3428
    %3431 = vset.pattern.permute.xlu0 7
    %3432 = vperm.xlu0 %3431, %v1031
    %v3433 = vpop.permute.xlu0 %3432
    %3435 = vset.pattern.permute.xlu0 7
    %3436 = vperm.xlu0 %3435, %v1032
    %v3437 = vpop.permute.xlu0 %3436
    %v3439 = vmul.f32 %v3313, %v276
    %v3440 = vmul.f32 %v3317, %v282
    %v3441 = vmul.f32 %v3321, %v288
    %v3442 = vmul.f32 %v3325, %v294
    %v3443 = vmul.f32 %v3329, %v300
    %v3444 = vmul.f32 %v3333, %v306
    %v3445 = vmul.f32 %v3337, %v312
    %v3446 = vmul.f32 %v3341, %v318
    %v3447 = vmul.f32 %v3345, %v324
    %v3448 = vmul.f32 %v3349, %v330
    %v3449 = vmul.f32 %v3353, %v336
    %v3450 = vmul.f32 %v3357, %v342
    %v3451 = vmul.f32 %v3361, %v348
    %v3452 = vmul.f32 %v3365, %v354
    %v3453 = vmul.f32 %v3369, %v360
    %v3454 = vmul.f32 %v3373, %v366
    %v3455 = vmul.f32 %v3377, %v372
    %v3456 = vmul.f32 %v3381, %v378
    %v3457 = vmul.f32 %v3385, %v384
    %v3458 = vmul.f32 %v3389, %v390
    %v3459 = vmul.f32 %v3393, %v396
    %v3460 = vmul.f32 %v3397, %v402
    %v3461 = vmul.f32 %v3401, %v408
    %v3462 = vmul.f32 %v3405, %v414
    %v3463 = vmul.f32 %v3409, %v420
    %v3464 = vmul.f32 %v3413, %v426
    %v3465 = vmul.f32 %v3417, %v432
    %v3466 = vmul.f32 %v3421, %v438
    %v3467 = vmul.f32 %v3425, %v444
    %v3468 = vmul.f32 %v3429, %v450
    %v3469 = vmul.f32 %v3433, %v456
    %v3470 = vmul.f32 %v3437, %v462
    %v3471 = vpack.c.bf16 %v3440, %v3439
    %v3472 = vpack.c.bf16 %v3442, %v3441
    %v3473 = vpack.c.bf16 %v3444, %v3443
    %v3474 = vpack.c.bf16 %v3446, %v3445
    %v3475 = vpack.c.bf16 %v3448, %v3447
    %v3476 = vpack.c.bf16 %v3450, %v3449
    %v3477 = vpack.c.bf16 %v3452, %v3451
    %v3478 = vpack.c.bf16 %v3454, %v3453
    %v3479 = vpack.c.bf16 %v3456, %v3455
    %v3480 = vpack.c.bf16 %v3458, %v3457
    %v3481 = vpack.c.bf16 %v3460, %v3459
    %v3482 = vpack.c.bf16 %v3462, %v3461
    %v3483 = vpack.c.bf16 %v3464, %v3463
    %v3484 = vpack.c.bf16 %v3466, %v3465
    %v3485 = vpack.c.bf16 %v3468, %v3467
    %v3486 = vpack.c.bf16 %v3470, %v3469
    %v3503 = vunpack.c.l.b16 %v3471
    %v3504 = vunpack.c.h.b16 %v3471
    %v3505 = vunpack.c.l.b16 %v3472
    %v3506 = vunpack.c.h.b16 %v3472
    %v3507 = vunpack.c.l.b16 %v3473
    %v3508 = vunpack.c.h.b16 %v3473
    %v3509 = vunpack.c.l.b16 %v3474
    %v3510 = vunpack.c.h.b16 %v3474
    %v3511 = vunpack.c.l.b16 %v3475
    %v3512 = vunpack.c.h.b16 %v3475
    %v3513 = vunpack.c.l.b16 %v3476
    %v3514 = vunpack.c.h.b16 %v3476
    %v3515 = vunpack.c.l.b16 %v3477
    %v3516 = vunpack.c.h.b16 %v3477
    %v3517 = vunpack.c.l.b16 %v3478
    %v3518 = vunpack.c.h.b16 %v3478
    %v3519 = vunpack.c.l.b16 %v3479
    %v3520 = vunpack.c.h.b16 %v3479
    %v3521 = vunpack.c.l.b16 %v3480
    %v3522 = vunpack.c.h.b16 %v3480
    %v3523 = vunpack.c.l.b16 %v3481
    %v3524 = vunpack.c.h.b16 %v3481
    %v3525 = vunpack.c.l.b16 %v3482
    %v3526 = vunpack.c.h.b16 %v3482
    %v3527 = vunpack.c.l.b16 %v3483
    %v3528 = vunpack.c.h.b16 %v3483
    %v3529 = vunpack.c.l.b16 %v3484
    %v3530 = vunpack.c.h.b16 %v3484
    %v3531 = vunpack.c.l.b16 %v3485
    %v3532 = vunpack.c.h.b16 %v3485
    %v3533 = vunpack.c.l.b16 %v3486
    %v3534 = vunpack.c.h.b16 %v3486
    %v3535 = vpack.c.b16 %v3503, %v3503
    %v3536 = vpack.c.b16 %v3504, %v3504
    %v3537 = vpack.c.b16 %v3505, %v3505
    %v3538 = vpack.c.b16 %v3506, %v3506
    %v3539 = vpack.c.b16 %v3507, %v3507
    %v3540 = vpack.c.b16 %v3508, %v3508
    %v3541 = vpack.c.b16 %v3509, %v3509
    %v3542 = vpack.c.b16 %v3510, %v3510
    %v3543 = vpack.c.b16 %v3511, %v3511
    %v3544 = vpack.c.b16 %v3512, %v3512
    %v3545 = vpack.c.b16 %v3513, %v3513
    %v3546 = vpack.c.b16 %v3514, %v3514
    %v3547 = vpack.c.b16 %v3515, %v3515
    %v3548 = vpack.c.b16 %v3516, %v3516
    %v3549 = vpack.c.b16 %v3517, %v3517
    %v3550 = vpack.c.b16 %v3518, %v3518
    %v3551 = vpack.c.b16 %v3519, %v3519
    %v3552 = vpack.c.b16 %v3520, %v3520
    %v3553 = vpack.c.b16 %v3521, %v3521
    %v3554 = vpack.c.b16 %v3522, %v3522
    %v3555 = vpack.c.b16 %v3523, %v3523
    %v3556 = vpack.c.b16 %v3524, %v3524
    %v3557 = vpack.c.b16 %v3525, %v3525
    %v3558 = vpack.c.b16 %v3526, %v3526
    %v3559 = vpack.c.b16 %v3527, %v3527
    %v3560 = vpack.c.b16 %v3528, %v3528
    %v3561 = vpack.c.b16 %v3529, %v3529
    %v3562 = vpack.c.b16 %v3530, %v3530
    %v3563 = vpack.c.b16 %v3531, %v3531
    %v3564 = vpack.c.b16 %v3532, %v3532
    %v3565 = vpack.c.b16 %v3533, %v3533
    %v3566 = vpack.c.b16 %v3534, %v3534
    %s3599 = scalar_lea.vmem [#allocation2], 1792
    %3600 = vst [vmem:[%s3599] sm:$0xf] %v3535
    %3601 = vst [vmem:[%s3599 + $0x8] sm:$0xf] %v3536
    %3602 = vst [vmem:[%s3599 + $0x10] sm:$0xf] %v3537
    %3603 = vst [vmem:[%s3599 + $0x18] sm:$0xf] %v3538
    %3604 = vst [vmem:[%s3599 + $0x20] sm:$0xf] %v3539
    %3605 = vst [vmem:[%s3599 + $0x28] sm:$0xf] %v3540
    %3606 = vst [vmem:[%s3599 + $0x30] sm:$0xf] %v3541
    %3607 = vst [vmem:[%s3599 + $0x38] sm:$0xf] %v3542
    %3608 = vst [vmem:[%s3599 + $0x40] sm:$0xf] %v3543
    %3609 = vst [vmem:[%s3599 + $0x48] sm:$0xf] %v3544
    %3610 = vst [vmem:[%s3599 + $0x50] sm:$0xf] %v3545
    %3611 = vst [vmem:[%s3599 + $0x58] sm:$0xf] %v3546
    %3612 = vst [vmem:[%s3599 + $0x60] sm:$0xf] %v3547
    %3613 = vst [vmem:[%s3599 + $0x68] sm:$0xf] %v3548
    %3614 = vst [vmem:[%s3599 + $0x70] sm:$0xf] %v3549
    %3615 = vst [vmem:[%s3599 + $0x78] sm:$0xf] %v3550
    %3616 = vst [vmem:[%s3599 + $0x80] sm:$0xf] %v3551
    %3617 = vst [vmem:[%s3599 + $0x88] sm:$0xf] %v3552
    %3618 = vst [vmem:[%s3599 + $0x90] sm:$0xf] %v3553
    %3619 = vst [vmem:[%s3599 + $0x98] sm:$0xf] %v3554
    %3620 = vst [vmem:[%s3599 + $0xa0] sm:$0xf] %v3555
    %3621 = vst [vmem:[%s3599 + $0xa8] sm:$0xf] %v3556
    %3622 = vst [vmem:[%s3599 + $0xb0] sm:$0xf] %v3557
    %3623 = vst [vmem:[%s3599 + $0xb8] sm:$0xf] %v3558
    %3624 = vst [vmem:[%s3599 + $0xc0] sm:$0xf] %v3559
    %3625 = vst [vmem:[%s3599 + $0xc8] sm:$0xf] %v3560
    %3626 = vst [vmem:[%s3599 + $0xd0] sm:$0xf] %v3561
    %3627 = vst [vmem:[%s3599 + $0xd8] sm:$0xf] %v3562
    %3628 = vst [vmem:[%s3599 + $0xe0] sm:$0xf] %v3563
    %3629 = vst [vmem:[%s3599 + $0xe8] sm:$0xf] %v3564
    %3630 = vst [vmem:[%s3599 + $0xf0] sm:$0xf] %v3565
    %3631 = vst [vmem:[%s3599 + $0xf8] sm:$0xf] %v3566
    %3632 = vmatprep.subr.mxu0 0.0
    %3633 = vmatpush1.xpose.msra.mxu0 %v736
    %3634 = vmatprep.subr.mxu0 0.0
    %3635 = vmatpush1.xpose.msra.mxu0 %v730
    %3636 = vmatprep.subr.mxu0 0.0
    %3637 = vmatpush1.xpose.msra.mxu0 %v724
    %3638 = vmatprep.subr.mxu0 0.0
    %3639 = vmatpush1.xpose.msra.mxu0 %v718
    %3640 = vmatprep.subr.mxu0 0.0
    %3641 = vmatpush1.xpose.msra.mxu0 %v712
    %3642 = vmatprep.subr.mxu0 0.0
    %3643 = vmatpush1.xpose.msra.mxu0 %v706
    %3644 = vmatprep.subr.mxu0 0.0
    %3645 = vmatpush1.xpose.msra.mxu0 %v700
    %3646 = vmatprep.subr.mxu0 0.0
    %3647 = vmatpush1.xpose.msra.mxu0 %v694
    %3648 = vmatprep.subr.mxu0 0.0
    %3649 = vmatpush1.xpose.msra.mxu0 %v688
    %3650 = vmatprep.subr.mxu0 0.0
    %3651 = vmatpush1.xpose.msra.mxu0 %v682
    %3652 = vmatprep.subr.mxu0 0.0
    %3653 = vmatpush1.xpose.msra.mxu0 %v676
    %3654 = vmatprep.subr.mxu0 0.0
    %3655 = vmatpush1.xpose.msra.mxu0 %v670
    %3656 = vmatprep.subr.mxu0 0.0
    %3657 = vmatpush1.xpose.msra.mxu0 %v664
    %3658 = vmatprep.subr.mxu0 0.0
    %3659 = vmatpush1.xpose.msra.mxu0 %v658
    %3660 = vmatprep.subr.mxu0 0.0
    %3661 = vmatpush1.xpose.msra.mxu0 %v652
    %3662 = vmatprep.subr.mxu0 0.0
    %3663 = vmatpush1.xpose.msra.mxu0 %v646
    %3664 = vmatprep.subr.mxu0 0.0
    %3665 = vmatpush2.xpose.msra.mxu0 %v832
    %3666 = vmatprep.subr.mxu0 0.0
    %3667 = vmatpush2.xpose.msra.mxu0 %v826
    %3668 = vmatprep.subr.mxu0 0.0
    %3669 = vmatpush2.xpose.msra.mxu0 %v820
    %3670 = vmatprep.subr.mxu0 0.0
    %3671 = vmatpush2.xpose.msra.mxu0 %v814
    %3672 = vmatprep.subr.mxu0 0.0
    %3673 = vmatpush2.xpose.msra.mxu0 %v808
    %3674 = vmatprep.subr.mxu0 0.0
    %3675 = vmatpush2.xpose.msra.mxu0 %v802
    %3676 = vmatprep.subr.mxu0 0.0
    %3677 = vmatpush2.xpose.msra.mxu0 %v796
    %3678 = vmatprep.subr.mxu0 0.0
    %3679 = vmatpush2.xpose.msra.mxu0 %v790
    %3680 = vmatprep.subr.mxu0 0.0
    %3681 = vmatpush2.xpose.msra.mxu0 %v784
    %3682 = vmatprep.subr.mxu0 0.0
    %3683 = vmatpush2.xpose.msra.mxu0 %v778
    %3684 = vmatprep.subr.mxu0 0.0
    %3685 = vmatpush2.xpose.msra.mxu0 %v772
    %3686 = vmatprep.subr.mxu0 0.0
    %3687 = vmatpush2.xpose.msra.mxu0 %v766
    %3688 = vmatprep.subr.mxu0 0.0
    %3689 = vmatpush2.xpose.msra.mxu0 %v760
    %3690 = vmatprep.subr.mxu0 0.0
    %3691 = vmatpush2.xpose.msra.mxu0 %v754
    %3692 = vmatprep.subr.mxu0 0.0
    %3693 = vmatpush2.xpose.msra.mxu0 %v748
    %3694 = vmatprep.subr.mxu0 0.0
    %3695 = vmatpush2.xpose.msra.mxu0 %v742
    %3696 = vmatprep.mubr.f32.mxu0 0.0
    %3697 = vmatmul.mubr.f32.gmra.mxu0 %v95
    %v3698 = vpop.f32.mrf.mxu0
    %v3699 = vadd.f32 0.0, %v3698
    %v3700 = vpop.f32.mrf.mxu0
    %v3701 = vadd.f32 0.0, %v3700
    %3702 = vdwg.mxu0
    %v3703 = vrot.slane %v3699, 4
    %v3704 = vmax.f32 %v3699, %v3703
    %v3705 = vrot.slane %v3704, 2
    %v3706 = vmax.f32 %v3704, %v3705
    %v3707 = vrot.slane %v3706, 1
    %v3708 = vmax.f32 %v3706, %v3707
    %v3709 = vrot.slane %v3701, 4
    %v3710 = vmax.f32 %v3701, %v3709
    %v3711 = vrot.slane %v3710, 2
    %v3712 = vmax.f32 %v3710, %v3711
    %v3713 = vrot.slane %v3712, 1
    %v3714 = vmax.f32 %v3712, %v3713
    %v3715 = vsub.f32 %v3699, %v3708
    %v3716 = vsub.f32 %v3701, %v3714
    %v3717 = vmul.f32 %v3715, 1.442695
    %v3718 = vpow.pop %v3717
    %v3719 = vmul.f32 %v3716, 1.442695
    %v3720 = vpow.pop %v3719
    %v3721 = vrot.slane %v3718, 4
    %v3722 = vadd.f32 %v3718, %v3721
    %v3723 = vrot.slane %v3722, 2
    %v3724 = vadd.f32 %v3722, %v3723
    %v3725 = vrot.slane %v3724, 1
    %v3726 = vadd.f32 %v3724, %v3725
    %v3727 = vrot.slane %v3720, 4
    %v3728 = vadd.f32 %v3720, %v3727
    %v3729 = vrot.slane %v3728, 2
    %v3730 = vadd.f32 %v3728, %v3729
    %v3731 = vrot.slane %v3730, 1
    %v3732 = vadd.f32 %v3730, %v3731
    %v3733 = vrcp.pop %v3726
    %v3734 = vmul.f32 1.0, %v3733
    %v3735 = vrcp.pop %v3732
    %v3736 = vmul.f32 1.0, %v3735
    %v3737 = vmul.f32 %v3718, %v3734
    %v3738 = vmul.f32 %v3720, %v3736
    %v3739 = vadd.f32 %v941, %v3737
    %v3740 = vadd.f32 %v942, %v3738
    %v3741 = vadd.f32 %v3737, 1e-06
    %v3742 = vadd.f32 %v3738, 1e-06
    %v3743 = vlog2.pop %v3741
    %v3744 = vmul.f32 %v3743, 0.6931472
    %v3745 = vlog2.pop %v3742
    %v3746 = vmul.f32 %v3745, 0.6931472
    %v3747 = vmul.f32 %v3737, %v3744
    %v3748 = vmul.f32 %v3738, %v3746
    %v3749 = vrot.slane %v3747, 4
    %v3750 = vadd.f32 %v3747, %v3749
    %v3751 = vrot.slane %v3750, 2
    %v3752 = vadd.f32 %v3750, %v3751
    %v3753 = vrot.slane %v3752, 1
    %v3754 = vadd.f32 %v3752, %v3753
    %v3755 = vrot.slane %v3748, 4
    %v3756 = vadd.f32 %v3748, %v3755
    %v3757 = vrot.slane %v3756, 2
    %v3758 = vadd.f32 %v3756, %v3757
    %v3759 = vrot.slane %v3758, 1
    %v3760 = vadd.f32 %v3758, %v3759
    %v3761 = vmul.f32 %v3754, 1.442695
    %v3762 = vpow.pop %v3761
    %v3763 = vmul.f32 %v3760, 1.442695
    %v3764 = vpow.pop %v3763
    %v3765 = vmul.f32 %v3737, %v3762
    %v3766 = vmul.f32 %v3738, %v3764
    %3767 = vxpose.xlu0.b32.start [1/16] %v3765, 128
    %3768 = vxpose.xlu0.b32.cont [2/16] 0.0, 128
    %3769 = vxpose.xlu0.b32.cont [3/16] 0.0, 128
    %3770 = vxpose.xlu0.b32.cont [4/16] 0.0, 128
    %3771 = vxpose.xlu0.b32.cont [5/16] 0.0, 128
    %3772 = vxpose.xlu0.b32.cont [6/16] 0.0, 128
    %3773 = vxpose.xlu0.b32.cont [7/16] 0.0, 128
    %3774 = vxpose.xlu0.b32.cont [8/16] 0.0, 128
    %3775 = vxpose.xlu0.b32.cont [9/16] 0.0, 128
    %3776 = vxpose.xlu0.b32.cont [10/16] 0.0, 128
    %3777 = vxpose.xlu0.b32.cont [11/16] 0.0, 128
    %3778 = vxpose.xlu0.b32.cont [12/16] 0.0, 128
    %3779 = vxpose.xlu0.b32.cont [13/16] 0.0, 128
    %3780 = vxpose.xlu0.b32.cont [14/16] 0.0, 128
    %3781 = vxpose.xlu0.b32.cont [15/16] 0.0, 128
    %3782 = vxpose.xlu0.b32.end [16/16] 0.0, 128
    %v3783 = vpop.trf.xlu0
    %v3784 = vpop.trf.xlu0
    %v3785 = vpop.trf.xlu0
    %v3786 = vpop.trf.xlu0
    %v3787 = vpop.trf.xlu0
    %v3788 = vpop.trf.xlu0
    %v3789 = vpop.trf.xlu0
    %v3790 = vpop.trf.xlu0
    %v3791 = vpop.trf.xlu0
    %v3792 = vpop.trf.xlu0
    %v3793 = vpop.trf.xlu0
    %v3794 = vpop.trf.xlu0
    %v3795 = vpop.trf.xlu0
    %v3796 = vpop.trf.xlu0
    %v3797 = vpop.trf.xlu0
    %v3798 = vpop.trf.xlu0
    %3799 = vxpose.xlu0.b32.start [1/16] %v3766, 128
    %3800 = vxpose.xlu0.b32.cont [2/16] 0.0, 128
    %3801 = vxpose.xlu0.b32.cont [3/16] 0.0, 128
    %3802 = vxpose.xlu0.b32.cont [4/16] 0.0, 128
    %3803 = vxpose.xlu0.b32.cont [5/16] 0.0, 128
    %3804 = vxpose.xlu0.b32.cont [6/16] 0.0, 128
    %3805 = vxpose.xlu0.b32.cont [7/16] 0.0, 128
    %3806 = vxpose.xlu0.b32.cont [8/16] 0.0, 128
    %3807 = vxpose.xlu0.b32.cont [9/16] 0.0, 128
    %3808 = vxpose.xlu0.b32.cont [10/16] 0.0, 128
    %3809 = vxpose.xlu0.b32.cont [11/16] 0.0, 128
    %3810 = vxpose.xlu0.b32.cont [12/16] 0.0, 128
    %3811 = vxpose.xlu0.b32.cont [13/16] 0.0, 128
    %3812 = vxpose.xlu0.b32.cont [14/16] 0.0, 128
    %3813 = vxpose.xlu0.b32.cont [15/16] 0.0, 128
    %3814 = vxpose.xlu0.b32.end [16/16] 0.0, 128
    %v3815 = vpop.trf.xlu0
    %v3816 = vpop.trf.xlu0
    %v3817 = vpop.trf.xlu0
    %v3818 = vpop.trf.xlu0
    %v3819 = vpop.trf.xlu0
    %v3820 = vpop.trf.xlu0
    %v3821 = vpop.trf.xlu0
    %v3822 = vpop.trf.xlu0
    %v3823 = vpop.trf.xlu0
    %v3824 = vpop.trf.xlu0
    %v3825 = vpop.trf.xlu0
    %v3826 = vpop.trf.xlu0
    %v3827 = vpop.trf.xlu0
    %v3828 = vpop.trf.xlu0
    %v3829 = vpop.trf.xlu0
    %v3830 = vpop.trf.xlu0
    %3832 = vset.pattern.permute.xlu0 0
    %3833 = vperm.xlu0 %3832, %v3783
    %v3834 = vpop.permute.xlu0 %3833
    %3837 = vset.pattern.permute.xlu0 0
    %3838 = vperm.xlu0 %3837, %v3784
    %v3839 = vpop.permute.xlu0 %3838
    %3842 = vset.pattern.permute.xlu0 0
    %3843 = vperm.xlu0 %3842, %v3785
    %v3844 = vpop.permute.xlu0 %3843
    %3847 = vset.pattern.permute.xlu0 0
    %3848 = vperm.xlu0 %3847, %v3786
    %v3849 = vpop.permute.xlu0 %3848
    %3852 = vset.pattern.permute.xlu0 0
    %3853 = vperm.xlu0 %3852, %v3787
    %v3854 = vpop.permute.xlu0 %3853
    %3857 = vset.pattern.permute.xlu0 0
    %3858 = vperm.xlu0 %3857, %v3788
    %v3859 = vpop.permute.xlu0 %3858
    %3862 = vset.pattern.permute.xlu0 0
    %3863 = vperm.xlu0 %3862, %v3789
    %v3864 = vpop.permute.xlu0 %3863
    %3867 = vset.pattern.permute.xlu0 0
    %3868 = vperm.xlu0 %3867, %v3790
    %v3869 = vpop.permute.xlu0 %3868
    %3872 = vset.pattern.permute.xlu0 0
    %3873 = vperm.xlu0 %3872, %v3791
    %v3874 = vpop.permute.xlu0 %3873
    %3877 = vset.pattern.permute.xlu0 0
    %3878 = vperm.xlu0 %3877, %v3792
    %v3879 = vpop.permute.xlu0 %3878
    %3882 = vset.pattern.permute.xlu0 0
    %3883 = vperm.xlu0 %3882, %v3793
    %v3884 = vpop.permute.xlu0 %3883
    %3887 = vset.pattern.permute.xlu0 0
    %3888 = vperm.xlu0 %3887, %v3794
    %v3889 = vpop.permute.xlu0 %3888
    %3892 = vset.pattern.permute.xlu0 0
    %3893 = vperm.xlu0 %3892, %v3795
    %v3894 = vpop.permute.xlu0 %3893
    %3897 = vset.pattern.permute.xlu0 0
    %3898 = vperm.xlu0 %3897, %v3796
    %v3899 = vpop.permute.xlu0 %3898
    %3902 = vset.pattern.permute.xlu0 0
    %3903 = vperm.xlu0 %3902, %v3797
    %v3904 = vpop.permute.xlu0 %3903
    %3907 = vset.pattern.permute.xlu0 0
    %3908 = vperm.xlu0 %3907, %v3798
    %v3909 = vpop.permute.xlu0 %3908
    %3912 = vset.pattern.permute.xlu0 0
    %3913 = vperm.xlu0 %3912, %v3815
    %v3914 = vpop.permute.xlu0 %3913
    %3917 = vset.pattern.permute.xlu0 0
    %3918 = vperm.xlu0 %3917, %v3816
    %v3919 = vpop.permute.xlu0 %3918
    %3922 = vset.pattern.permute.xlu0 0
    %3923 = vperm.xlu0 %3922, %v3817
    %v3924 = vpop.permute.xlu0 %3923
    %3927 = vset.pattern.permute.xlu0 0
    %3928 = vperm.xlu0 %3927, %v3818
    %v3929 = vpop.permute.xlu0 %3928
    %3932 = vset.pattern.permute.xlu0 0
    %3933 = vperm.xlu0 %3932, %v3819
    %v3934 = vpop.permute.xlu0 %3933
    %3937 = vset.pattern.permute.xlu0 0
    %3938 = vperm.xlu0 %3937, %v3820
    %v3939 = vpop.permute.xlu0 %3938
    %3942 = vset.pattern.permute.xlu0 0
    %3943 = vperm.xlu0 %3942, %v3821
    %v3944 = vpop.permute.xlu0 %3943
    %3947 = vset.pattern.permute.xlu0 0
    %3948 = vperm.xlu0 %3947, %v3822
    %v3949 = vpop.permute.xlu0 %3948
    %3952 = vset.pattern.permute.xlu0 0
    %3953 = vperm.xlu0 %3952, %v3823
    %v3954 = vpop.permute.xlu0 %3953
    %3957 = vset.pattern.permute.xlu0 0
    %3958 = vperm.xlu0 %3957, %v3824
    %v3959 = vpop.permute.xlu0 %3958
    %3962 = vset.pattern.permute.xlu0 0
    %3963 = vperm.xlu0 %3962, %v3825
    %v3964 = vpop.permute.xlu0 %3963
    %3967 = vset.pattern.permute.xlu0 0
    %3968 = vperm.xlu0 %3967, %v3826
    %v3969 = vpop.permute.xlu0 %3968
    %3972 = vset.pattern.permute.xlu0 0
    %3973 = vperm.xlu0 %3972, %v3827
    %v3974 = vpop.permute.xlu0 %3973
    %3977 = vset.pattern.permute.xlu0 0
    %3978 = vperm.xlu0 %3977, %v3828
    %v3979 = vpop.permute.xlu0 %3978
    %3982 = vset.pattern.permute.xlu0 0
    %3983 = vperm.xlu0 %3982, %v3829
    %v3984 = vpop.permute.xlu0 %3983
    %3987 = vset.pattern.permute.xlu0 0
    %3988 = vperm.xlu0 %3987, %v3830
    %v3989 = vpop.permute.xlu0 %3988
    %v3991 = vmul.f32 %v3834, %v278
    %v3992 = vmul.f32 %v3839, %v284
    %v3993 = vmul.f32 %v3844, %v290
    %v3994 = vmul.f32 %v3849, %v296
    %v3995 = vmul.f32 %v3854, %v302
    %v3996 = vmul.f32 %v3859, %v308
    %v3997 = vmul.f32 %v3864, %v314
    %v3998 = vmul.f32 %v3869, %v320
    %v3999 = vmul.f32 %v3874, %v326
    %v4000 = vmul.f32 %v3879, %v332
    %v4001 = vmul.f32 %v3884, %v338
    %v4002 = vmul.f32 %v3889, %v344
    %v4003 = vmul.f32 %v3894, %v350
    %v4004 = vmul.f32 %v3899, %v356
    %v4005 = vmul.f32 %v3904, %v362
    %v4006 = vmul.f32 %v3909, %v368
    %v4007 = vmul.f32 %v3914, %v374
    %v4008 = vmul.f32 %v3919, %v380
    %v4009 = vmul.f32 %v3924, %v386
    %v4010 = vmul.f32 %v3929, %v392
    %v4011 = vmul.f32 %v3934, %v398
    %v4012 = vmul.f32 %v3939, %v404
    %v4013 = vmul.f32 %v3944, %v410
    %v4014 = vmul.f32 %v3949, %v416
    %v4015 = vmul.f32 %v3954, %v422
    %v4016 = vmul.f32 %v3959, %v428
    %v4017 = vmul.f32 %v3964, %v434
    %v4018 = vmul.f32 %v3969, %v440
    %v4019 = vmul.f32 %v3974, %v446
    %v4020 = vmul.f32 %v3979, %v452
    %v4021 = vmul.f32 %v3984, %v458
    %v4022 = vmul.f32 %v3989, %v464
    %v4023 = vpack.c.bf16 %v3992, %v3991
    %v4024 = vpack.c.bf16 %v3994, %v3993
    %v4025 = vpack.c.bf16 %v3996, %v3995
    %v4026 = vpack.c.bf16 %v3998, %v3997
    %v4027 = vpack.c.bf16 %v4000, %v3999
    %v4028 = vpack.c.bf16 %v4002, %v4001
    %v4029 = vpack.c.bf16 %v4004, %v4003
    %v4030 = vpack.c.bf16 %v4006, %v4005
    %v4031 = vpack.c.bf16 %v4008, %v4007
    %v4032 = vpack.c.bf16 %v4010, %v4009
    %v4033 = vpack.c.bf16 %v4012, %v4011
    %v4034 = vpack.c.bf16 %v4014, %v4013
    %v4035 = vpack.c.bf16 %v4016, %v4015
    %v4036 = vpack.c.bf16 %v4018, %v4017
    %v4037 = vpack.c.bf16 %v4020, %v4019
    %v4038 = vpack.c.bf16 %v4022, %v4021
    %v4055 = vunpack.c.l.b16 %v4023
    %v4056 = vunpack.c.h.b16 %v4023
    %v4057 = vunpack.c.l.b16 %v4024
    %v4058 = vunpack.c.h.b16 %v4024
    %v4059 = vunpack.c.l.b16 %v4025
    %v4060 = vunpack.c.h.b16 %v4025
    %v4061 = vunpack.c.l.b16 %v4026
    %v4062 = vunpack.c.h.b16 %v4026
    %v4063 = vunpack.c.l.b16 %v4027
    %v4064 = vunpack.c.h.b16 %v4027
    %v4065 = vunpack.c.l.b16 %v4028
    %v4066 = vunpack.c.h.b16 %v4028
    %v4067 = vunpack.c.l.b16 %v4029
    %v4068 = vunpack.c.h.b16 %v4029
    %v4069 = vunpack.c.l.b16 %v4030
    %v4070 = vunpack.c.h.b16 %v4030
    %v4071 = vunpack.c.l.b16 %v4031
    %v4072 = vunpack.c.h.b16 %v4031
    %v4073 = vunpack.c.l.b16 %v4032
    %v4074 = vunpack.c.h.b16 %v4032
    %v4075 = vunpack.c.l.b16 %v4033
    %v4076 = vunpack.c.h.b16 %v4033
    %v4077 = vunpack.c.l.b16 %v4034
    %v4078 = vunpack.c.h.b16 %v4034
    %v4079 = vunpack.c.l.b16 %v4035
    %v4080 = vunpack.c.h.b16 %v4035
    %v4081 = vunpack.c.l.b16 %v4036
    %v4082 = vunpack.c.h.b16 %v4036
    %v4083 = vunpack.c.l.b16 %v4037
    %v4084 = vunpack.c.h.b16 %v4037
    %v4085 = vunpack.c.l.b16 %v4038
    %v4086 = vunpack.c.h.b16 %v4038
    %v4087 = vpack.c.b16 %v4055, %v4055
    %v4088 = vpack.c.b16 %v4056, %v4056
    %v4089 = vpack.c.b16 %v4057, %v4057
    %v4090 = vpack.c.b16 %v4058, %v4058
    %v4091 = vpack.c.b16 %v4059, %v4059
    %v4092 = vpack.c.b16 %v4060, %v4060
    %v4093 = vpack.c.b16 %v4061, %v4061
    %v4094 = vpack.c.b16 %v4062, %v4062
    %v4095 = vpack.c.b16 %v4063, %v4063
    %v4096 = vpack.c.b16 %v4064, %v4064
    %v4097 = vpack.c.b16 %v4065, %v4065
    %v4098 = vpack.c.b16 %v4066, %v4066
    %v4099 = vpack.c.b16 %v4067, %v4067
    %v4100 = vpack.c.b16 %v4068, %v4068
    %v4101 = vpack.c.b16 %v4069, %v4069
    %v4102 = vpack.c.b16 %v4070, %v4070
    %v4103 = vpack.c.b16 %v4071, %v4071
    %v4104 = vpack.c.b16 %v4072, %v4072
    %v4105 = vpack.c.b16 %v4073, %v4073
    %v4106 = vpack.c.b16 %v4074, %v4074
    %v4107 = vpack.c.b16 %v4075, %v4075
    %v4108 = vpack.c.b16 %v4076, %v4076
    %v4109 = vpack.c.b16 %v4077, %v4077
    %v4110 = vpack.c.b16 %v4078, %v4078
    %v4111 = vpack.c.b16 %v4079, %v4079
    %v4112 = vpack.c.b16 %v4080, %v4080
    %v4113 = vpack.c.b16 %v4081, %v4081
    %v4114 = vpack.c.b16 %v4082, %v4082
    %v4115 = vpack.c.b16 %v4083, %v4083
    %v4116 = vpack.c.b16 %v4084, %v4084
    %v4117 = vpack.c.b16 %v4085, %v4085
    %v4118 = vpack.c.b16 %v4086, %v4086
    %4151 = vst [vmem:[#allocation2 + $0x4] sm:$0xf] %v4087
    %4152 = vst [vmem:[#allocation2 + $0xc] sm:$0xf] %v4088
    %4153 = vst [vmem:[#allocation2 + $0x14] sm:$0xf] %v4089
    %4154 = vst [vmem:[#allocation2 + $0x1c] sm:$0xf] %v4090
    %4155 = vst [vmem:[#allocation2 + $0x24] sm:$0xf] %v4091
    %4156 = vst [vmem:[#allocation2 + $0x2c] sm:$0xf] %v4092
    %4157 = vst [vmem:[#allocation2 + $0x34] sm:$0xf] %v4093
    %4158 = vst [vmem:[#allocation2 + $0x3c] sm:$0xf] %v4094
    %4159 = vst [vmem:[#allocation2 + $0x44] sm:$0xf] %v4095
    %4160 = vst [vmem:[#allocation2 + $0x4c] sm:$0xf] %v4096
    %4161 = vst [vmem:[#allocation2 + $0x54] sm:$0xf] %v4097
    %4162 = vst [vmem:[#allocation2 + $0x5c] sm:$0xf] %v4098
    %4163 = vst [vmem:[#allocation2 + $0x64] sm:$0xf] %v4099
    %4164 = vst [vmem:[#allocation2 + $0x6c] sm:$0xf] %v4100
    %4165 = vst [vmem:[#allocation2 + $0x74] sm:$0xf] %v4101
    %4166 = vst [vmem:[#allocation2 + $0x7c] sm:$0xf] %v4102
    %4167 = vst [vmem:[#allocation2 + $0x84] sm:$0xf] %v4103
    %4168 = vst [vmem:[#allocation2 + $0x8c] sm:$0xf] %v4104
    %4169 = vst [vmem:[#allocation2 + $0x94] sm:$0xf] %v4105
    %4170 = vst [vmem:[#allocation2 + $0x9c] sm:$0xf] %v4106
    %4171 = vst [vmem:[#allocation2 + $0xa4] sm:$0xf] %v4107
    %4172 = vst [vmem:[#allocation2 + $0xac] sm:$0xf] %v4108
    %4173 = vst [vmem:[#allocation2 + $0xb4] sm:$0xf] %v4109
    %4174 = vst [vmem:[#allocation2 + $0xbc] sm:$0xf] %v4110
    %4175 = vst [vmem:[#allocation2 + $0xc4] sm:$0xf] %v4111
    %4176 = vst [vmem:[#allocation2 + $0xcc] sm:$0xf] %v4112
    %4177 = vst [vmem:[#allocation2 + $0xd4] sm:$0xf] %v4113
    %4178 = vst [vmem:[#allocation2 + $0xdc] sm:$0xf] %v4114
    %4179 = vst [vmem:[#allocation2 + $0xe4] sm:$0xf] %v4115
    %4180 = vst [vmem:[#allocation2 + $0xec] sm:$0xf] %v4116
    %4181 = vst [vmem:[#allocation2 + $0xf4] sm:$0xf] %v4117
    %4182 = vst [vmem:[#allocation2 + $0xfc] sm:$0xf] %v4118
    %4183 = vset.pattern.permute.xlu0 1
    %4184 = vperm.xlu0 %4183, %v3783
    %v4185 = vpop.permute.xlu0 %4184
    %4187 = vset.pattern.permute.xlu0 1
    %4188 = vperm.xlu0 %4187, %v3784
    %v4189 = vpop.permute.xlu0 %4188
    %4191 = vset.pattern.permute.xlu0 1
    %4192 = vperm.xlu0 %4191, %v3785
    %v4193 = vpop.permute.xlu0 %4192
    %4195 = vset.pattern.permute.xlu0 1
    %4196 = vperm.xlu0 %4195, %v3786
    %v4197 = vpop.permute.xlu0 %4196
    %4199 = vset.pattern.permute.xlu0 1
    %4200 = vperm.xlu0 %4199, %v3787
    %v4201 = vpop.permute.xlu0 %4200
    %4203 = vset.pattern.permute.xlu0 1
    %4204 = vperm.xlu0 %4203, %v3788
    %v4205 = vpop.permute.xlu0 %4204
    %4207 = vset.pattern.permute.xlu0 1
    %4208 = vperm.xlu0 %4207, %v3789
    %v4209 = vpop.permute.xlu0 %4208
    %4211 = vset.pattern.permute.xlu0 1
    %4212 = vperm.xlu0 %4211, %v3790
    %v4213 = vpop.permute.xlu0 %4212
    %4215 = vset.pattern.permute.xlu0 1
    %4216 = vperm.xlu0 %4215, %v3791
    %v4217 = vpop.permute.xlu0 %4216
    %4219 = vset.pattern.permute.xlu0 1
    %4220 = vperm.xlu0 %4219, %v3792
    %v4221 = vpop.permute.xlu0 %4220
    %4223 = vset.pattern.permute.xlu0 1
    %4224 = vperm.xlu0 %4223, %v3793
    %v4225 = vpop.permute.xlu0 %4224
    %4227 = vset.pattern.permute.xlu0 1
    %4228 = vperm.xlu0 %4227, %v3794
    %v4229 = vpop.permute.xlu0 %4228
    %4231 = vset.pattern.permute.xlu0 1
    %4232 = vperm.xlu0 %4231, %v3795
    %v4233 = vpop.permute.xlu0 %4232
    %4235 = vset.pattern.permute.xlu0 1
    %4236 = vperm.xlu0 %4235, %v3796
    %v4237 = vpop.permute.xlu0 %4236
    %4239 = vset.pattern.permute.xlu0 1
    %4240 = vperm.xlu0 %4239, %v3797
    %v4241 = vpop.permute.xlu0 %4240
    %4243 = vset.pattern.permute.xlu0 1
    %4244 = vperm.xlu0 %4243, %v3798
    %v4245 = vpop.permute.xlu0 %4244
    %4247 = vset.pattern.permute.xlu0 1
    %4248 = vperm.xlu0 %4247, %v3815
    %v4249 = vpop.permute.xlu0 %4248
    %4251 = vset.pattern.permute.xlu0 1
    %4252 = vperm.xlu0 %4251, %v3816
    %v4253 = vpop.permute.xlu0 %4252
    %4255 = vset.pattern.permute.xlu0 1
    %4256 = vperm.xlu0 %4255, %v3817
    %v4257 = vpop.permute.xlu0 %4256
    %4259 = vset.pattern.permute.xlu0 1
    %4260 = vperm.xlu0 %4259, %v3818
    %v4261 = vpop.permute.xlu0 %4260
    %4263 = vset.pattern.permute.xlu0 1
    %4264 = vperm.xlu0 %4263, %v3819
    %v4265 = vpop.permute.xlu0 %4264
    %4267 = vset.pattern.permute.xlu0 1
    %4268 = vperm.xlu0 %4267, %v3820
    %v4269 = vpop.permute.xlu0 %4268
    %4271 = vset.pattern.permute.xlu0 1
    %4272 = vperm.xlu0 %4271, %v3821
    %v4273 = vpop.permute.xlu0 %4272
    %4275 = vset.pattern.permute.xlu0 1
    %4276 = vperm.xlu0 %4275, %v3822
    %v4277 = vpop.permute.xlu0 %4276
    %4279 = vset.pattern.permute.xlu0 1
    %4280 = vperm.xlu0 %4279, %v3823
    %v4281 = vpop.permute.xlu0 %4280
    %4283 = vset.pattern.permute.xlu0 1
    %4284 = vperm.xlu0 %4283, %v3824
    %v4285 = vpop.permute.xlu0 %4284
    %4287 = vset.pattern.permute.xlu0 1
    %4288 = vperm.xlu0 %4287, %v3825
    %v4289 = vpop.permute.xlu0 %4288
    %4291 = vset.pattern.permute.xlu0 1
    %4292 = vperm.xlu0 %4291, %v3826
    %v4293 = vpop.permute.xlu0 %4292
    %4295 = vset.pattern.permute.xlu0 1
    %4296 = vperm.xlu0 %4295, %v3827
    %v4297 = vpop.permute.xlu0 %4296
    %4299 = vset.pattern.permute.xlu0 1
    %4300 = vperm.xlu0 %4299, %v3828
    %v4301 = vpop.permute.xlu0 %4300
    %4303 = vset.pattern.permute.xlu0 1
    %4304 = vperm.xlu0 %4303, %v3829
    %v4305 = vpop.permute.xlu0 %4304
    %4307 = vset.pattern.permute.xlu0 1
    %4308 = vperm.xlu0 %4307, %v3830
    %v4309 = vpop.permute.xlu0 %4308
    %v4311 = vmul.f32 %v4185, %v278
    %v4312 = vmul.f32 %v4189, %v284
    %v4313 = vmul.f32 %v4193, %v290
    %v4314 = vmul.f32 %v4197, %v296
    %v4315 = vmul.f32 %v4201, %v302
    %v4316 = vmul.f32 %v4205, %v308
    %v4317 = vmul.f32 %v4209, %v314
    %v4318 = vmul.f32 %v4213, %v320
    %v4319 = vmul.f32 %v4217, %v326
    %v4320 = vmul.f32 %v4221, %v332
    %v4321 = vmul.f32 %v4225, %v338
    %v4322 = vmul.f32 %v4229, %v344
    %v4323 = vmul.f32 %v4233, %v350
    %v4324 = vmul.f32 %v4237, %v356
    %v4325 = vmul.f32 %v4241, %v362
    %v4326 = vmul.f32 %v4245, %v368
    %v4327 = vmul.f32 %v4249, %v374
    %v4328 = vmul.f32 %v4253, %v380
    %v4329 = vmul.f32 %v4257, %v386
    %v4330 = vmul.f32 %v4261, %v392
    %v4331 = vmul.f32 %v4265, %v398
    %v4332 = vmul.f32 %v4269, %v404
    %v4333 = vmul.f32 %v4273, %v410
    %v4334 = vmul.f32 %v4277, %v416
    %v4335 = vmul.f32 %v4281, %v422
    %v4336 = vmul.f32 %v4285, %v428
    %v4337 = vmul.f32 %v4289, %v434
    %v4338 = vmul.f32 %v4293, %v440
    %v4339 = vmul.f32 %v4297, %v446
    %v4340 = vmul.f32 %v4301, %v452
    %v4341 = vmul.f32 %v4305, %v458
    %v4342 = vmul.f32 %v4309, %v464
    %v4343 = vpack.c.bf16 %v4312, %v4311
    %v4344 = vpack.c.bf16 %v4314, %v4313
    %v4345 = vpack.c.bf16 %v4316, %v4315
    %v4346 = vpack.c.bf16 %v4318, %v4317
    %v4347 = vpack.c.bf16 %v4320, %v4319
    %v4348 = vpack.c.bf16 %v4322, %v4321
    %v4349 = vpack.c.bf16 %v4324, %v4323
    %v4350 = vpack.c.bf16 %v4326, %v4325
    %v4351 = vpack.c.bf16 %v4328, %v4327
    %v4352 = vpack.c.bf16 %v4330, %v4329
    %v4353 = vpack.c.bf16 %v4332, %v4331
    %v4354 = vpack.c.bf16 %v4334, %v4333
    %v4355 = vpack.c.bf16 %v4336, %v4335
    %v4356 = vpack.c.bf16 %v4338, %v4337
    %v4357 = vpack.c.bf16 %v4340, %v4339
    %v4358 = vpack.c.bf16 %v4342, %v4341
    %v4375 = vunpack.c.l.b16 %v4343
    %v4376 = vunpack.c.h.b16 %v4343
    %v4377 = vunpack.c.l.b16 %v4344
    %v4378 = vunpack.c.h.b16 %v4344
    %v4379 = vunpack.c.l.b16 %v4345
    %v4380 = vunpack.c.h.b16 %v4345
    %v4381 = vunpack.c.l.b16 %v4346
    %v4382 = vunpack.c.h.b16 %v4346
    %v4383 = vunpack.c.l.b16 %v4347
    %v4384 = vunpack.c.h.b16 %v4347
    %v4385 = vunpack.c.l.b16 %v4348
    %v4386 = vunpack.c.h.b16 %v4348
    %v4387 = vunpack.c.l.b16 %v4349
    %v4388 = vunpack.c.h.b16 %v4349
    %v4389 = vunpack.c.l.b16 %v4350
    %v4390 = vunpack.c.h.b16 %v4350
    %v4391 = vunpack.c.l.b16 %v4351
    %v4392 = vunpack.c.h.b16 %v4351
    %v4393 = vunpack.c.l.b16 %v4352
    %v4394 = vunpack.c.h.b16 %v4352
    %v4395 = vunpack.c.l.b16 %v4353
    %v4396 = vunpack.c.h.b16 %v4353
    %v4397 = vunpack.c.l.b16 %v4354
    %v4398 = vunpack.c.h.b16 %v4354
    %v4399 = vunpack.c.l.b16 %v4355
    %v4400 = vunpack.c.h.b16 %v4355
    %v4401 = vunpack.c.l.b16 %v4356
    %v4402 = vunpack.c.h.b16 %v4356
    %v4403 = vunpack.c.l.b16 %v4357
    %v4404 = vunpack.c.h.b16 %v4357
    %v4405 = vunpack.c.l.b16 %v4358
    %v4406 = vunpack.c.h.b16 %v4358
    %v4407 = vpack.c.b16 %v4375, %v4375
    %v4408 = vpack.c.b16 %v4376, %v4376
    %v4409 = vpack.c.b16 %v4377, %v4377
    %v4410 = vpack.c.b16 %v4378, %v4378
    %v4411 = vpack.c.b16 %v4379, %v4379
    %v4412 = vpack.c.b16 %v4380, %v4380
    %v4413 = vpack.c.b16 %v4381, %v4381
    %v4414 = vpack.c.b16 %v4382, %v4382
    %v4415 = vpack.c.b16 %v4383, %v4383
    %v4416 = vpack.c.b16 %v4384, %v4384
    %v4417 = vpack.c.b16 %v4385, %v4385
    %v4418 = vpack.c.b16 %v4386, %v4386
    %v4419 = vpack.c.b16 %v4387, %v4387
    %v4420 = vpack.c.b16 %v4388, %v4388
    %v4421 = vpack.c.b16 %v4389, %v4389
    %v4422 = vpack.c.b16 %v4390, %v4390
    %v4423 = vpack.c.b16 %v4391, %v4391
    %v4424 = vpack.c.b16 %v4392, %v4392
    %v4425 = vpack.c.b16 %v4393, %v4393
    %v4426 = vpack.c.b16 %v4394, %v4394
    %v4427 = vpack.c.b16 %v4395, %v4395
    %v4428 = vpack.c.b16 %v4396, %v4396
    %v4429 = vpack.c.b16 %v4397, %v4397
    %v4430 = vpack.c.b16 %v4398, %v4398
    %v4431 = vpack.c.b16 %v4399, %v4399
    %v4432 = vpack.c.b16 %v4400, %v4400
    %v4433 = vpack.c.b16 %v4401, %v4401
    %v4434 = vpack.c.b16 %v4402, %v4402
    %v4435 = vpack.c.b16 %v4403, %v4403
    %v4436 = vpack.c.b16 %v4404, %v4404
    %v4437 = vpack.c.b16 %v4405, %v4405
    %v4438 = vpack.c.b16 %v4406, %v4406
    %4471 = vst [vmem:[%s1673 + $0x4] sm:$0xf] %v4407
    %4472 = vst [vmem:[%s1673 + $0xc] sm:$0xf] %v4408
    %4473 = vst [vmem:[%s1673 + $0x14] sm:$0xf] %v4409
    %4474 = vst [vmem:[%s1673 + $0x1c] sm:$0xf] %v4410
    %4475 = vst [vmem:[%s1673 + $0x24] sm:$0xf] %v4411
    %4476 = vst [vmem:[%s1673 + $0x2c] sm:$0xf] %v4412
    %4477 = vst [vmem:[%s1673 + $0x34] sm:$0xf] %v4413
    %4478 = vst [vmem:[%s1673 + $0x3c] sm:$0xf] %v4414
    %4479 = vst [vmem:[%s1673 + $0x44] sm:$0xf] %v4415
    %4480 = vst [vmem:[%s1673 + $0x4c] sm:$0xf] %v4416
    %4481 = vst [vmem:[%s1673 + $0x54] sm:$0xf] %v4417
    %4482 = vst [vmem:[%s1673 + $0x5c] sm:$0xf] %v4418
    %4483 = vst [vmem:[%s1673 + $0x64] sm:$0xf] %v4419
    %4484 = vst [vmem:[%s1673 + $0x6c] sm:$0xf] %v4420
    %4485 = vst [vmem:[%s1673 + $0x74] sm:$0xf] %v4421
    %4486 = vst [vmem:[%s1673 + $0x7c] sm:$0xf] %v4422
    %4487 = vst [vmem:[%s1673 + $0x84] sm:$0xf] %v4423
    %4488 = vst [vmem:[%s1673 + $0x8c] sm:$0xf] %v4424
    %4489 = vst [vmem:[%s1673 + $0x94] sm:$0xf] %v4425
    %4490 = vst [vmem:[%s1673 + $0x9c] sm:$0xf] %v4426
    %4491 = vst [vmem:[%s1673 + $0xa4] sm:$0xf] %v4427
    %4492 = vst [vmem:[%s1673 + $0xac] sm:$0xf] %v4428
    %4493 = vst [vmem:[%s1673 + $0xb4] sm:$0xf] %v4429
    %4494 = vst [vmem:[%s1673 + $0xbc] sm:$0xf] %v4430
    %4495 = vst [vmem:[%s1673 + $0xc4] sm:$0xf] %v4431
    %4496 = vst [vmem:[%s1673 + $0xcc] sm:$0xf] %v4432
    %4497 = vst [vmem:[%s1673 + $0xd4] sm:$0xf] %v4433
    %4498 = vst [vmem:[%s1673 + $0xdc] sm:$0xf] %v4434
    %4499 = vst [vmem:[%s1673 + $0xe4] sm:$0xf] %v4435
    %4500 = vst [vmem:[%s1673 + $0xec] sm:$0xf] %v4436
    %4501 = vst [vmem:[%s1673 + $0xf4] sm:$0xf] %v4437
    %4502 = vst [vmem:[%s1673 + $0xfc] sm:$0xf] %v4438
    %4503 = vset.pattern.permute.xlu0 2
    %4504 = vperm.xlu0 %4503, %v3783
    %v4505 = vpop.permute.xlu0 %4504
    %4507 = vset.pattern.permute.xlu0 2
    %4508 = vperm.xlu0 %4507, %v3784
    %v4509 = vpop.permute.xlu0 %4508
    %4511 = vset.pattern.permute.xlu0 2
    %4512 = vperm.xlu0 %4511, %v3785
    %v4513 = vpop.permute.xlu0 %4512
    %4515 = vset.pattern.permute.xlu0 2
    %4516 = vperm.xlu0 %4515, %v3786
    %v4517 = vpop.permute.xlu0 %4516
    %4519 = vset.pattern.permute.xlu0 2
    %4520 = vperm.xlu0 %4519, %v3787
    %v4521 = vpop.permute.xlu0 %4520
    %4523 = vset.pattern.permute.xlu0 2
    %4524 = vperm.xlu0 %4523, %v3788
    %v4525 = vpop.permute.xlu0 %4524
    %4527 = vset.pattern.permute.xlu0 2
    %4528 = vperm.xlu0 %4527, %v3789
    %v4529 = vpop.permute.xlu0 %4528
    %4531 = vset.pattern.permute.xlu0 2
    %4532 = vperm.xlu0 %4531, %v3790
    %v4533 = vpop.permute.xlu0 %4532
    %4535 = vset.pattern.permute.xlu0 2
    %4536 = vperm.xlu0 %4535, %v3791
    %v4537 = vpop.permute.xlu0 %4536
    %4539 = vset.pattern.permute.xlu0 2
    %4540 = vperm.xlu0 %4539, %v3792
    %v4541 = vpop.permute.xlu0 %4540
    %4543 = vset.pattern.permute.xlu0 2
    %4544 = vperm.xlu0 %4543, %v3793
    %v4545 = vpop.permute.xlu0 %4544
    %4547 = vset.pattern.permute.xlu0 2
    %4548 = vperm.xlu0 %4547, %v3794
    %v4549 = vpop.permute.xlu0 %4548
    %4551 = vset.pattern.permute.xlu0 2
    %4552 = vperm.xlu0 %4551, %v3795
    %v4553 = vpop.permute.xlu0 %4552
    %4555 = vset.pattern.permute.xlu0 2
    %4556 = vperm.xlu0 %4555, %v3796
    %v4557 = vpop.permute.xlu0 %4556
    %4559 = vset.pattern.permute.xlu0 2
    %4560 = vperm.xlu0 %4559, %v3797
    %v4561 = vpop.permute.xlu0 %4560
    %4563 = vset.pattern.permute.xlu0 2
    %4564 = vperm.xlu0 %4563, %v3798
    %v4565 = vpop.permute.xlu0 %4564
    %4567 = vset.pattern.permute.xlu0 2
    %4568 = vperm.xlu0 %4567, %v3815
    %v4569 = vpop.permute.xlu0 %4568
    %4571 = vset.pattern.permute.xlu0 2
    %4572 = vperm.xlu0 %4571, %v3816
    %v4573 = vpop.permute.xlu0 %4572
    %4575 = vset.pattern.permute.xlu0 2
    %4576 = vperm.xlu0 %4575, %v3817
    %v4577 = vpop.permute.xlu0 %4576
    %4579 = vset.pattern.permute.xlu0 2
    %4580 = vperm.xlu0 %4579, %v3818
    %v4581 = vpop.permute.xlu0 %4580
    %4583 = vset.pattern.permute.xlu0 2
    %4584 = vperm.xlu0 %4583, %v3819
    %v4585 = vpop.permute.xlu0 %4584
    %4587 = vset.pattern.permute.xlu0 2
    %4588 = vperm.xlu0 %4587, %v3820
    %v4589 = vpop.permute.xlu0 %4588
    %4591 = vset.pattern.permute.xlu0 2
    %4592 = vperm.xlu0 %4591, %v3821
    %v4593 = vpop.permute.xlu0 %4592
    %4595 = vset.pattern.permute.xlu0 2
    %4596 = vperm.xlu0 %4595, %v3822
    %v4597 = vpop.permute.xlu0 %4596
    %4599 = vset.pattern.permute.xlu0 2
    %4600 = vperm.xlu0 %4599, %v3823
    %v4601 = vpop.permute.xlu0 %4600
    %4603 = vset.pattern.permute.xlu0 2
    %4604 = vperm.xlu0 %4603, %v3824
    %v4605 = vpop.permute.xlu0 %4604
    %4607 = vset.pattern.permute.xlu0 2
    %4608 = vperm.xlu0 %4607, %v3825
    %v4609 = vpop.permute.xlu0 %4608
    %4611 = vset.pattern.permute.xlu0 2
    %4612 = vperm.xlu0 %4611, %v3826
    %v4613 = vpop.permute.xlu0 %4612
    %4615 = vset.pattern.permute.xlu0 2
    %4616 = vperm.xlu0 %4615, %v3827
    %v4617 = vpop.permute.xlu0 %4616
    %4619 = vset.pattern.permute.xlu0 2
    %4620 = vperm.xlu0 %4619, %v3828
    %v4621 = vpop.permute.xlu0 %4620
    %4623 = vset.pattern.permute.xlu0 2
    %4624 = vperm.xlu0 %4623, %v3829
    %v4625 = vpop.permute.xlu0 %4624
    %4627 = vset.pattern.permute.xlu0 2
    %4628 = vperm.xlu0 %4627, %v3830
    %v4629 = vpop.permute.xlu0 %4628
    %v4631 = vmul.f32 %v4505, %v278
    %v4632 = vmul.f32 %v4509, %v284
    %v4633 = vmul.f32 %v4513, %v290
    %v4634 = vmul.f32 %v4517, %v296
    %v4635 = vmul.f32 %v4521, %v302
    %v4636 = vmul.f32 %v4525, %v308
    %v4637 = vmul.f32 %v4529, %v314
    %v4638 = vmul.f32 %v4533, %v320
    %v4639 = vmul.f32 %v4537, %v326
    %v4640 = vmul.f32 %v4541, %v332
    %v4641 = vmul.f32 %v4545, %v338
    %v4642 = vmul.f32 %v4549, %v344
    %v4643 = vmul.f32 %v4553, %v350
    %v4644 = vmul.f32 %v4557, %v356
    %v4645 = vmul.f32 %v4561, %v362
    %v4646 = vmul.f32 %v4565, %v368
    %v4647 = vmul.f32 %v4569, %v374
    %v4648 = vmul.f32 %v4573, %v380
    %v4649 = vmul.f32 %v4577, %v386
    %v4650 = vmul.f32 %v4581, %v392
    %v4651 = vmul.f32 %v4585, %v398
    %v4652 = vmul.f32 %v4589, %v404
    %v4653 = vmul.f32 %v4593, %v410
    %v4654 = vmul.f32 %v4597, %v416
    %v4655 = vmul.f32 %v4601, %v422
    %v4656 = vmul.f32 %v4605, %v428
    %v4657 = vmul.f32 %v4609, %v434
    %v4658 = vmul.f32 %v4613, %v440
    %v4659 = vmul.f32 %v4617, %v446
    %v4660 = vmul.f32 %v4621, %v452
    %v4661 = vmul.f32 %v4625, %v458
    %v4662 = vmul.f32 %v4629, %v464
    %v4663 = vpack.c.bf16 %v4632, %v4631
    %v4664 = vpack.c.bf16 %v4634, %v4633
    %v4665 = vpack.c.bf16 %v4636, %v4635
    %v4666 = vpack.c.bf16 %v4638, %v4637
    %v4667 = vpack.c.bf16 %v4640, %v4639
    %v4668 = vpack.c.bf16 %v4642, %v4641
    %v4669 = vpack.c.bf16 %v4644, %v4643
    %v4670 = vpack.c.bf16 %v4646, %v4645
    %v4671 = vpack.c.bf16 %v4648, %v4647
    %v4672 = vpack.c.bf16 %v4650, %v4649
    %v4673 = vpack.c.bf16 %v4652, %v4651
    %v4674 = vpack.c.bf16 %v4654, %v4653
    %v4675 = vpack.c.bf16 %v4656, %v4655
    %v4676 = vpack.c.bf16 %v4658, %v4657
    %v4677 = vpack.c.bf16 %v4660, %v4659
    %v4678 = vpack.c.bf16 %v4662, %v4661
    %v4695 = vunpack.c.l.b16 %v4663
    %v4696 = vunpack.c.h.b16 %v4663
    %v4697 = vunpack.c.l.b16 %v4664
    %v4698 = vunpack.c.h.b16 %v4664
    %v4699 = vunpack.c.l.b16 %v4665
    %v4700 = vunpack.c.h.b16 %v4665
    %v4701 = vunpack.c.l.b16 %v4666
    %v4702 = vunpack.c.h.b16 %v4666
    %v4703 = vunpack.c.l.b16 %v4667
    %v4704 = vunpack.c.h.b16 %v4667
    %v4705 = vunpack.c.l.b16 %v4668
    %v4706 = vunpack.c.h.b16 %v4668
    %v4707 = vunpack.c.l.b16 %v4669
    %v4708 = vunpack.c.h.b16 %v4669
    %v4709 = vunpack.c.l.b16 %v4670
    %v4710 = vunpack.c.h.b16 %v4670
    %v4711 = vunpack.c.l.b16 %v4671
    %v4712 = vunpack.c.h.b16 %v4671
    %v4713 = vunpack.c.l.b16 %v4672
    %v4714 = vunpack.c.h.b16 %v4672
    %v4715 = vunpack.c.l.b16 %v4673
    %v4716 = vunpack.c.h.b16 %v4673
    %v4717 = vunpack.c.l.b16 %v4674
    %v4718 = vunpack.c.h.b16 %v4674
    %v4719 = vunpack.c.l.b16 %v4675
    %v4720 = vunpack.c.h.b16 %v4675
    %v4721 = vunpack.c.l.b16 %v4676
    %v4722 = vunpack.c.h.b16 %v4676
    %v4723 = vunpack.c.l.b16 %v4677
    %v4724 = vunpack.c.h.b16 %v4677
    %v4725 = vunpack.c.l.b16 %v4678
    %v4726 = vunpack.c.h.b16 %v4678
    %v4727 = vpack.c.b16 %v4695, %v4695
    %v4728 = vpack.c.b16 %v4696, %v4696
    %v4729 = vpack.c.b16 %v4697, %v4697
    %v4730 = vpack.c.b16 %v4698, %v4698
    %v4731 = vpack.c.b16 %v4699, %v4699
    %v4732 = vpack.c.b16 %v4700, %v4700
    %v4733 = vpack.c.b16 %v4701, %v4701
    %v4734 = vpack.c.b16 %v4702, %v4702
    %v4735 = vpack.c.b16 %v4703, %v4703
    %v4736 = vpack.c.b16 %v4704, %v4704
    %v4737 = vpack.c.b16 %v4705, %v4705
    %v4738 = vpack.c.b16 %v4706, %v4706
    %v4739 = vpack.c.b16 %v4707, %v4707
    %v4740 = vpack.c.b16 %v4708, %v4708
    %v4741 = vpack.c.b16 %v4709, %v4709
    %v4742 = vpack.c.b16 %v4710, %v4710
    %v4743 = vpack.c.b16 %v4711, %v4711
    %v4744 = vpack.c.b16 %v4712, %v4712
    %v4745 = vpack.c.b16 %v4713, %v4713
    %v4746 = vpack.c.b16 %v4714, %v4714
    %v4747 = vpack.c.b16 %v4715, %v4715
    %v4748 = vpack.c.b16 %v4716, %v4716
    %v4749 = vpack.c.b16 %v4717, %v4717
    %v4750 = vpack.c.b16 %v4718, %v4718
    %v4751 = vpack.c.b16 %v4719, %v4719
    %v4752 = vpack.c.b16 %v4720, %v4720
    %v4753 = vpack.c.b16 %v4721, %v4721
    %v4754 = vpack.c.b16 %v4722, %v4722
    %v4755 = vpack.c.b16 %v4723, %v4723
    %v4756 = vpack.c.b16 %v4724, %v4724
    %v4757 = vpack.c.b16 %v4725, %v4725
    %v4758 = vpack.c.b16 %v4726, %v4726
    %4791 = vst [vmem:[%s1994 + $0x4] sm:$0xf] %v4727
    %4792 = vst [vmem:[%s1994 + $0xc] sm:$0xf] %v4728
    %4793 = vst [vmem:[%s1994 + $0x14] sm:$0xf] %v4729
    %4794 = vst [vmem:[%s1994 + $0x1c] sm:$0xf] %v4730
    %4795 = vst [vmem:[%s1994 + $0x24] sm:$0xf] %v4731
    %4796 = vst [vmem:[%s1994 + $0x2c] sm:$0xf] %v4732
    %4797 = vst [vmem:[%s1994 + $0x34] sm:$0xf] %v4733
    %4798 = vst [vmem:[%s1994 + $0x3c] sm:$0xf] %v4734
    %4799 = vst [vmem:[%s1994 + $0x44] sm:$0xf] %v4735
    %4800 = vst [vmem:[%s1994 + $0x4c] sm:$0xf] %v4736
    %4801 = vst [vmem:[%s1994 + $0x54] sm:$0xf] %v4737
    %4802 = vst [vmem:[%s1994 + $0x5c] sm:$0xf] %v4738
    %4803 = vst [vmem:[%s1994 + $0x64] sm:$0xf] %v4739
    %4804 = vst [vmem:[%s1994 + $0x6c] sm:$0xf] %v4740
    %4805 = vst [vmem:[%s1994 + $0x74] sm:$0xf] %v4741
    %4806 = vst [vmem:[%s1994 + $0x7c] sm:$0xf] %v4742
    %4807 = vst [vmem:[%s1994 + $0x84] sm:$0xf] %v4743
    %4808 = vst [vmem:[%s1994 + $0x8c] sm:$0xf] %v4744
    %4809 = vst [vmem:[%s1994 + $0x94] sm:$0xf] %v4745
    %4810 = vst [vmem:[%s1994 + $0x9c] sm:$0xf] %v4746
    %4811 = vst [vmem:[%s1994 + $0xa4] sm:$0xf] %v4747
    %4812 = vst [vmem:[%s1994 + $0xac] sm:$0xf] %v4748
    %4813 = vst [vmem:[%s1994 + $0xb4] sm:$0xf] %v4749
    %4814 = vst [vmem:[%s1994 + $0xbc] sm:$0xf] %v4750
    %4815 = vst [vmem:[%s1994 + $0xc4] sm:$0xf] %v4751
    %4816 = vst [vmem:[%s1994 + $0xcc] sm:$0xf] %v4752
    %4817 = vst [vmem:[%s1994 + $0xd4] sm:$0xf] %v4753
    %4818 = vst [vmem:[%s1994 + $0xdc] sm:$0xf] %v4754
    %4819 = vst [vmem:[%s1994 + $0xe4] sm:$0xf] %v4755
    %4820 = vst [vmem:[%s1994 + $0xec] sm:$0xf] %v4756
    %4821 = vst [vmem:[%s1994 + $0xf4] sm:$0xf] %v4757
    %4822 = vst [vmem:[%s1994 + $0xfc] sm:$0xf] %v4758
    %4823 = vset.pattern.permute.xlu0 3
    %4824 = vperm.xlu0 %4823, %v3783
    %v4825 = vpop.permute.xlu0 %4824
    %4827 = vset.pattern.permute.xlu0 3
    %4828 = vperm.xlu0 %4827, %v3784
    %v4829 = vpop.permute.xlu0 %4828
    %4831 = vset.pattern.permute.xlu0 3
    %4832 = vperm.xlu0 %4831, %v3785
    %v4833 = vpop.permute.xlu0 %4832
    %4835 = vset.pattern.permute.xlu0 3
    %4836 = vperm.xlu0 %4835, %v3786
    %v4837 = vpop.permute.xlu0 %4836
    %4839 = vset.pattern.permute.xlu0 3
    %4840 = vperm.xlu0 %4839, %v3787
    %v4841 = vpop.permute.xlu0 %4840
    %4843 = vset.pattern.permute.xlu0 3
    %4844 = vperm.xlu0 %4843, %v3788
    %v4845 = vpop.permute.xlu0 %4844
    %4847 = vset.pattern.permute.xlu0 3
    %4848 = vperm.xlu0 %4847, %v3789
    %v4849 = vpop.permute.xlu0 %4848
    %4851 = vset.pattern.permute.xlu0 3
    %4852 = vperm.xlu0 %4851, %v3790
    %v4853 = vpop.permute.xlu0 %4852
    %4855 = vset.pattern.permute.xlu0 3
    %4856 = vperm.xlu0 %4855, %v3791
    %v4857 = vpop.permute.xlu0 %4856
    %4859 = vset.pattern.permute.xlu0 3
    %4860 = vperm.xlu0 %4859, %v3792
    %v4861 = vpop.permute.xlu0 %4860
    %4863 = vset.pattern.permute.xlu0 3
    %4864 = vperm.xlu0 %4863, %v3793
    %v4865 = vpop.permute.xlu0 %4864
    %4867 = vset.pattern.permute.xlu0 3
    %4868 = vperm.xlu0 %4867, %v3794
    %v4869 = vpop.permute.xlu0 %4868
    %4871 = vset.pattern.permute.xlu0 3
    %4872 = vperm.xlu0 %4871, %v3795
    %v4873 = vpop.permute.xlu0 %4872
    %4875 = vset.pattern.permute.xlu0 3
    %4876 = vperm.xlu0 %4875, %v3796
    %v4877 = vpop.permute.xlu0 %4876
    %4879 = vset.pattern.permute.xlu0 3
    %4880 = vperm.xlu0 %4879, %v3797
    %v4881 = vpop.permute.xlu0 %4880
    %4883 = vset.pattern.permute.xlu0 3
    %4884 = vperm.xlu0 %4883, %v3798
    %v4885 = vpop.permute.xlu0 %4884
    %4887 = vset.pattern.permute.xlu0 3
    %4888 = vperm.xlu0 %4887, %v3815
    %v4889 = vpop.permute.xlu0 %4888
    %4891 = vset.pattern.permute.xlu0 3
    %4892 = vperm.xlu0 %4891, %v3816
    %v4893 = vpop.permute.xlu0 %4892
    %4895 = vset.pattern.permute.xlu0 3
    %4896 = vperm.xlu0 %4895, %v3817
    %v4897 = vpop.permute.xlu0 %4896
    %4899 = vset.pattern.permute.xlu0 3
    %4900 = vperm.xlu0 %4899, %v3818
    %v4901 = vpop.permute.xlu0 %4900
    %4903 = vset.pattern.permute.xlu0 3
    %4904 = vperm.xlu0 %4903, %v3819
    %v4905 = vpop.permute.xlu0 %4904
    %4907 = vset.pattern.permute.xlu0 3
    %4908 = vperm.xlu0 %4907, %v3820
    %v4909 = vpop.permute.xlu0 %4908
    %4911 = vset.pattern.permute.xlu0 3
    %4912 = vperm.xlu0 %4911, %v3821
    %v4913 = vpop.permute.xlu0 %4912
    %4915 = vset.pattern.permute.xlu0 3
    %4916 = vperm.xlu0 %4915, %v3822
    %v4917 = vpop.permute.xlu0 %4916
    %4919 = vset.pattern.permute.xlu0 3
    %4920 = vperm.xlu0 %4919, %v3823
    %v4921 = vpop.permute.xlu0 %4920
    %4923 = vset.pattern.permute.xlu0 3
    %4924 = vperm.xlu0 %4923, %v3824
    %v4925 = vpop.permute.xlu0 %4924
    %4927 = vset.pattern.permute.xlu0 3
    %4928 = vperm.xlu0 %4927, %v3825
    %v4929 = vpop.permute.xlu0 %4928
    %4931 = vset.pattern.permute.xlu0 3
    %4932 = vperm.xlu0 %4931, %v3826
    %v4933 = vpop.permute.xlu0 %4932
    %4935 = vset.pattern.permute.xlu0 3
    %4936 = vperm.xlu0 %4935, %v3827
    %v4937 = vpop.permute.xlu0 %4936
    %4939 = vset.pattern.permute.xlu0 3
    %4940 = vperm.xlu0 %4939, %v3828
    %v4941 = vpop.permute.xlu0 %4940
    %4943 = vset.pattern.permute.xlu0 3
    %4944 = vperm.xlu0 %4943, %v3829
    %v4945 = vpop.permute.xlu0 %4944
    %4947 = vset.pattern.permute.xlu0 3
    %4948 = vperm.xlu0 %4947, %v3830
    %v4949 = vpop.permute.xlu0 %4948
    %v4951 = vmul.f32 %v4825, %v278
    %v4952 = vmul.f32 %v4829, %v284
    %v4953 = vmul.f32 %v4833, %v290
    %v4954 = vmul.f32 %v4837, %v296
    %v4955 = vmul.f32 %v4841, %v302
    %v4956 = vmul.f32 %v4845, %v308
    %v4957 = vmul.f32 %v4849, %v314
    %v4958 = vmul.f32 %v4853, %v320
    %v4959 = vmul.f32 %v4857, %v326
    %v4960 = vmul.f32 %v4861, %v332
    %v4961 = vmul.f32 %v4865, %v338
    %v4962 = vmul.f32 %v4869, %v344
    %v4963 = vmul.f32 %v4873, %v350
    %v4964 = vmul.f32 %v4877, %v356
    %v4965 = vmul.f32 %v4881, %v362
    %v4966 = vmul.f32 %v4885, %v368
    %v4967 = vmul.f32 %v4889, %v374
    %v4968 = vmul.f32 %v4893, %v380
    %v4969 = vmul.f32 %v4897, %v386
    %v4970 = vmul.f32 %v4901, %v392
    %v4971 = vmul.f32 %v4905, %v398
    %v4972 = vmul.f32 %v4909, %v404
    %v4973 = vmul.f32 %v4913, %v410
    %v4974 = vmul.f32 %v4917, %v416
    %v4975 = vmul.f32 %v4921, %v422
    %v4976 = vmul.f32 %v4925, %v428
    %v4977 = vmul.f32 %v4929, %v434
    %v4978 = vmul.f32 %v4933, %v440
    %v4979 = vmul.f32 %v4937, %v446
    %v4980 = vmul.f32 %v4941, %v452
    %v4981 = vmul.f32 %v4945, %v458
    %v4982 = vmul.f32 %v4949, %v464
    %v4983 = vpack.c.bf16 %v4952, %v4951
    %v4984 = vpack.c.bf16 %v4954, %v4953
    %v4985 = vpack.c.bf16 %v4956, %v4955
    %v4986 = vpack.c.bf16 %v4958, %v4957
    %v4987 = vpack.c.bf16 %v4960, %v4959
    %v4988 = vpack.c.bf16 %v4962, %v4961
    %v4989 = vpack.c.bf16 %v4964, %v4963
    %v4990 = vpack.c.bf16 %v4966, %v4965
    %v4991 = vpack.c.bf16 %v4968, %v4967
    %v4992 = vpack.c.bf16 %v4970, %v4969
    %v4993 = vpack.c.bf16 %v4972, %v4971
    %v4994 = vpack.c.bf16 %v4974, %v4973
    %v4995 = vpack.c.bf16 %v4976, %v4975
    %v4996 = vpack.c.bf16 %v4978, %v4977
    %v4997 = vpack.c.bf16 %v4980, %v4979
    %v4998 = vpack.c.bf16 %v4982, %v4981
    %v5015 = vunpack.c.l.b16 %v4983
    %v5016 = vunpack.c.h.b16 %v4983
    %v5017 = vunpack.c.l.b16 %v4984
    %v5018 = vunpack.c.h.b16 %v4984
    %v5019 = vunpack.c.l.b16 %v4985
    %v5020 = vunpack.c.h.b16 %v4985
    %v5021 = vunpack.c.l.b16 %v4986
    %v5022 = vunpack.c.h.b16 %v4986
    %v5023 = vunpack.c.l.b16 %v4987
    %v5024 = vunpack.c.h.b16 %v4987
    %v5025 = vunpack.c.l.b16 %v4988
    %v5026 = vunpack.c.h.b16 %v4988
    %v5027 = vunpack.c.l.b16 %v4989
    %v5028 = vunpack.c.h.b16 %v4989
    %v5029 = vunpack.c.l.b16 %v4990
    %v5030 = vunpack.c.h.b16 %v4990
    %v5031 = vunpack.c.l.b16 %v4991
    %v5032 = vunpack.c.h.b16 %v4991
    %v5033 = vunpack.c.l.b16 %v4992
    %v5034 = vunpack.c.h.b16 %v4992
    %v5035 = vunpack.c.l.b16 %v4993
    %v5036 = vunpack.c.h.b16 %v4993
    %v5037 = vunpack.c.l.b16 %v4994
    %v5038 = vunpack.c.h.b16 %v4994
    %v5039 = vunpack.c.l.b16 %v4995
    %v5040 = vunpack.c.h.b16 %v4995
    %v5041 = vunpack.c.l.b16 %v4996
    %v5042 = vunpack.c.h.b16 %v4996
    %v5043 = vunpack.c.l.b16 %v4997
    %v5044 = vunpack.c.h.b16 %v4997
    %v5045 = vunpack.c.l.b16 %v4998
    %v5046 = vunpack.c.h.b16 %v4998
    %v5047 = vpack.c.b16 %v5015, %v5015
    %v5048 = vpack.c.b16 %v5016, %v5016
    %v5049 = vpack.c.b16 %v5017, %v5017
    %v5050 = vpack.c.b16 %v5018, %v5018
    %v5051 = vpack.c.b16 %v5019, %v5019
    %v5052 = vpack.c.b16 %v5020, %v5020
    %v5053 = vpack.c.b16 %v5021, %v5021
    %v5054 = vpack.c.b16 %v5022, %v5022
    %v5055 = vpack.c.b16 %v5023, %v5023
    %v5056 = vpack.c.b16 %v5024, %v5024
    %v5057 = vpack.c.b16 %v5025, %v5025
    %v5058 = vpack.c.b16 %v5026, %v5026
    %v5059 = vpack.c.b16 %v5027, %v5027
    %v5060 = vpack.c.b16 %v5028, %v5028
    %v5061 = vpack.c.b16 %v5029, %v5029
    %v5062 = vpack.c.b16 %v5030, %v5030
    %v5063 = vpack.c.b16 %v5031, %v5031
    %v5064 = vpack.c.b16 %v5032, %v5032
    %v5065 = vpack.c.b16 %v5033, %v5033
    %v5066 = vpack.c.b16 %v5034, %v5034
    %v5067 = vpack.c.b16 %v5035, %v5035
    %v5068 = vpack.c.b16 %v5036, %v5036
    %v5069 = vpack.c.b16 %v5037, %v5037
    %v5070 = vpack.c.b16 %v5038, %v5038
    %v5071 = vpack.c.b16 %v5039, %v5039
    %v5072 = vpack.c.b16 %v5040, %v5040
    %v5073 = vpack.c.b16 %v5041, %v5041
    %v5074 = vpack.c.b16 %v5042, %v5042
    %v5075 = vpack.c.b16 %v5043, %v5043
    %v5076 = vpack.c.b16 %v5044, %v5044
    %v5077 = vpack.c.b16 %v5045, %v5045
    %v5078 = vpack.c.b16 %v5046, %v5046
    %5111 = vst [vmem:[%s2315 + $0x4] sm:$0xf] %v5047
    %5112 = vst [vmem:[%s2315 + $0xc] sm:$0xf] %v5048
    %5113 = vst [vmem:[%s2315 + $0x14] sm:$0xf] %v5049
    %5114 = vst [vmem:[%s2315 + $0x1c] sm:$0xf] %v5050
    %5115 = vst [vmem:[%s2315 + $0x24] sm:$0xf] %v5051
    %5116 = vst [vmem:[%s2315 + $0x2c] sm:$0xf] %v5052
    %5117 = vst [vmem:[%s2315 + $0x34] sm:$0xf] %v5053
    %5118 = vst [vmem:[%s2315 + $0x3c] sm:$0xf] %v5054
    %5119 = vst [vmem:[%s2315 + $0x44] sm:$0xf] %v5055
    %5120 = vst [vmem:[%s2315 + $0x4c] sm:$0xf] %v5056
    %5121 = vst [vmem:[%s2315 + $0x54] sm:$0xf] %v5057
    %5122 = vst [vmem:[%s2315 + $0x5c] sm:$0xf] %v5058
    %5123 = vst [vmem:[%s2315 + $0x64] sm:$0xf] %v5059
    %5124 = vst [vmem:[%s2315 + $0x6c] sm:$0xf] %v5060
    %5125 = vst [vmem:[%s2315 + $0x74] sm:$0xf] %v5061
    %5126 = vst [vmem:[%s2315 + $0x7c] sm:$0xf] %v5062
    %5127 = vst [vmem:[%s2315 + $0x84] sm:$0xf] %v5063
    %5128 = vst [vmem:[%s2315 + $0x8c] sm:$0xf] %v5064
    %5129 = vst [vmem:[%s2315 + $0x94] sm:$0xf] %v5065
    %5130 = vst [vmem:[%s2315 + $0x9c] sm:$0xf] %v5066
    %5131 = vst [vmem:[%s2315 + $0xa4] sm:$0xf] %v5067
    %5132 = vst [vmem:[%s2315 + $0xac] sm:$0xf] %v5068
    %5133 = vst [vmem:[%s2315 + $0xb4] sm:$0xf] %v5069
    %5134 = vst [vmem:[%s2315 + $0xbc] sm:$0xf] %v5070
    %5135 = vst [vmem:[%s2315 + $0xc4] sm:$0xf] %v5071
    %5136 = vst [vmem:[%s2315 + $0xcc] sm:$0xf] %v5072
    %5137 = vst [vmem:[%s2315 + $0xd4] sm:$0xf] %v5073
    %5138 = vst [vmem:[%s2315 + $0xdc] sm:$0xf] %v5074
    %5139 = vst [vmem:[%s2315 + $0xe4] sm:$0xf] %v5075
    %5140 = vst [vmem:[%s2315 + $0xec] sm:$0xf] %v5076
    %5141 = vst [vmem:[%s2315 + $0xf4] sm:$0xf] %v5077
    %5142 = vst [vmem:[%s2315 + $0xfc] sm:$0xf] %v5078
    %5143 = vset.pattern.permute.xlu0 4
    %5144 = vperm.xlu0 %5143, %v3783
    %v5145 = vpop.permute.xlu0 %5144
    %5147 = vset.pattern.permute.xlu0 4
    %5148 = vperm.xlu0 %5147, %v3784
    %v5149 = vpop.permute.xlu0 %5148
    %5151 = vset.pattern.permute.xlu0 4
    %5152 = vperm.xlu0 %5151, %v3785
    %v5153 = vpop.permute.xlu0 %5152
    %5155 = vset.pattern.permute.xlu0 4
    %5156 = vperm.xlu0 %5155, %v3786
    %v5157 = vpop.permute.xlu0 %5156
    %5159 = vset.pattern.permute.xlu0 4
    %5160 = vperm.xlu0 %5159, %v3787
    %v5161 = vpop.permute.xlu0 %5160
    %5163 = vset.pattern.permute.xlu0 4
    %5164 = vperm.xlu0 %5163, %v3788
    %v5165 = vpop.permute.xlu0 %5164
    %5167 = vset.pattern.permute.xlu0 4
    %5168 = vperm.xlu0 %5167, %v3789
    %v5169 = vpop.permute.xlu0 %5168
    %5171 = vset.pattern.permute.xlu0 4
    %5172 = vperm.xlu0 %5171, %v3790
    %v5173 = vpop.permute.xlu0 %5172
    %5175 = vset.pattern.permute.xlu0 4
    %5176 = vperm.xlu0 %5175, %v3791
    %v5177 = vpop.permute.xlu0 %5176
    %5179 = vset.pattern.permute.xlu0 4
    %5180 = vperm.xlu0 %5179, %v3792
    %v5181 = vpop.permute.xlu0 %5180
    %5183 = vset.pattern.permute.xlu0 4
    %5184 = vperm.xlu0 %5183, %v3793
    %v5185 = vpop.permute.xlu0 %5184
    %5187 = vset.pattern.permute.xlu0 4
    %5188 = vperm.xlu0 %5187, %v3794
    %v5189 = vpop.permute.xlu0 %5188
    %5191 = vset.pattern.permute.xlu0 4
    %5192 = vperm.xlu0 %5191, %v3795
    %v5193 = vpop.permute.xlu0 %5192
    %5195 = vset.pattern.permute.xlu0 4
    %5196 = vperm.xlu0 %5195, %v3796
    %v5197 = vpop.permute.xlu0 %5196
    %5199 = vset.pattern.permute.xlu0 4
    %5200 = vperm.xlu0 %5199, %v3797
    %v5201 = vpop.permute.xlu0 %5200
    %5203 = vset.pattern.permute.xlu0 4
    %5204 = vperm.xlu0 %5203, %v3798
    %v5205 = vpop.permute.xlu0 %5204
    %5207 = vset.pattern.permute.xlu0 4
    %5208 = vperm.xlu0 %5207, %v3815
    %v5209 = vpop.permute.xlu0 %5208
    %5211 = vset.pattern.permute.xlu0 4
    %5212 = vperm.xlu0 %5211, %v3816
    %v5213 = vpop.permute.xlu0 %5212
    %5215 = vset.pattern.permute.xlu0 4
    %5216 = vperm.xlu0 %5215, %v3817
    %v5217 = vpop.permute.xlu0 %5216
    %5219 = vset.pattern.permute.xlu0 4
    %5220 = vperm.xlu0 %5219, %v3818
    %v5221 = vpop.permute.xlu0 %5220
    %5223 = vset.pattern.permute.xlu0 4
    %5224 = vperm.xlu0 %5223, %v3819
    %v5225 = vpop.permute.xlu0 %5224
    %5227 = vset.pattern.permute.xlu0 4
    %5228 = vperm.xlu0 %5227, %v3820
    %v5229 = vpop.permute.xlu0 %5228
    %5231 = vset.pattern.permute.xlu0 4
    %5232 = vperm.xlu0 %5231, %v3821
    %v5233 = vpop.permute.xlu0 %5232
    %5235 = vset.pattern.permute.xlu0 4
    %5236 = vperm.xlu0 %5235, %v3822
    %v5237 = vpop.permute.xlu0 %5236
    %5239 = vset.pattern.permute.xlu0 4
    %5240 = vperm.xlu0 %5239, %v3823
    %v5241 = vpop.permute.xlu0 %5240
    %5243 = vset.pattern.permute.xlu0 4
    %5244 = vperm.xlu0 %5243, %v3824
    %v5245 = vpop.permute.xlu0 %5244
    %5247 = vset.pattern.permute.xlu0 4
    %5248 = vperm.xlu0 %5247, %v3825
    %v5249 = vpop.permute.xlu0 %5248
    %5251 = vset.pattern.permute.xlu0 4
    %5252 = vperm.xlu0 %5251, %v3826
    %v5253 = vpop.permute.xlu0 %5252
    %5255 = vset.pattern.permute.xlu0 4
    %5256 = vperm.xlu0 %5255, %v3827
    %v5257 = vpop.permute.xlu0 %5256
    %5259 = vset.pattern.permute.xlu0 4
    %5260 = vperm.xlu0 %5259, %v3828
    %v5261 = vpop.permute.xlu0 %5260
    %5263 = vset.pattern.permute.xlu0 4
    %5264 = vperm.xlu0 %5263, %v3829
    %v5265 = vpop.permute.xlu0 %5264
    %5267 = vset.pattern.permute.xlu0 4
    %5268 = vperm.xlu0 %5267, %v3830
    %v5269 = vpop.permute.xlu0 %5268
    %v5271 = vmul.f32 %v5145, %v278
    %v5272 = vmul.f32 %v5149, %v284
    %v5273 = vmul.f32 %v5153, %v290
    %v5274 = vmul.f32 %v5157, %v296
    %v5275 = vmul.f32 %v5161, %v302
    %v5276 = vmul.f32 %v5165, %v308
    %v5277 = vmul.f32 %v5169, %v314
    %v5278 = vmul.f32 %v5173, %v320
    %v5279 = vmul.f32 %v5177, %v326
    %v5280 = vmul.f32 %v5181, %v332
    %v5281 = vmul.f32 %v5185, %v338
    %v5282 = vmul.f32 %v5189, %v344
    %v5283 = vmul.f32 %v5193, %v350
    %v5284 = vmul.f32 %v5197, %v356
    %v5285 = vmul.f32 %v5201, %v362
    %v5286 = vmul.f32 %v5205, %v368
    %v5287 = vmul.f32 %v5209, %v374
    %v5288 = vmul.f32 %v5213, %v380
    %v5289 = vmul.f32 %v5217, %v386
    %v5290 = vmul.f32 %v5221, %v392
    %v5291 = vmul.f32 %v5225, %v398
    %v5292 = vmul.f32 %v5229, %v404
    %v5293 = vmul.f32 %v5233, %v410
    %v5294 = vmul.f32 %v5237, %v416
    %v5295 = vmul.f32 %v5241, %v422
    %v5296 = vmul.f32 %v5245, %v428
    %v5297 = vmul.f32 %v5249, %v434
    %v5298 = vmul.f32 %v5253, %v440
    %v5299 = vmul.f32 %v5257, %v446
    %v5300 = vmul.f32 %v5261, %v452
    %v5301 = vmul.f32 %v5265, %v458
    %v5302 = vmul.f32 %v5269, %v464
    %v5303 = vpack.c.bf16 %v5272, %v5271
    %v5304 = vpack.c.bf16 %v5274, %v5273
    %v5305 = vpack.c.bf16 %v5276, %v5275
    %v5306 = vpack.c.bf16 %v5278, %v5277
    %v5307 = vpack.c.bf16 %v5280, %v5279
    %v5308 = vpack.c.bf16 %v5282, %v5281
    %v5309 = vpack.c.bf16 %v5284, %v5283
    %v5310 = vpack.c.bf16 %v5286, %v5285
    %v5311 = vpack.c.bf16 %v5288, %v5287
    %v5312 = vpack.c.bf16 %v5290, %v5289
    %v5313 = vpack.c.bf16 %v5292, %v5291
    %v5314 = vpack.c.bf16 %v5294, %v5293
    %v5315 = vpack.c.bf16 %v5296, %v5295
    %v5316 = vpack.c.bf16 %v5298, %v5297
    %v5317 = vpack.c.bf16 %v5300, %v5299
    %v5318 = vpack.c.bf16 %v5302, %v5301
    %v5335 = vunpack.c.l.b16 %v5303
    %v5336 = vunpack.c.h.b16 %v5303
    %v5337 = vunpack.c.l.b16 %v5304
    %v5338 = vunpack.c.h.b16 %v5304
    %v5339 = vunpack.c.l.b16 %v5305
    %v5340 = vunpack.c.h.b16 %v5305
    %v5341 = vunpack.c.l.b16 %v5306
    %v5342 = vunpack.c.h.b16 %v5306
    %v5343 = vunpack.c.l.b16 %v5307
    %v5344 = vunpack.c.h.b16 %v5307
    %v5345 = vunpack.c.l.b16 %v5308
    %v5346 = vunpack.c.h.b16 %v5308
    %v5347 = vunpack.c.l.b16 %v5309
    %v5348 = vunpack.c.h.b16 %v5309
    %v5349 = vunpack.c.l.b16 %v5310
    %v5350 = vunpack.c.h.b16 %v5310
    %v5351 = vunpack.c.l.b16 %v5311
    %v5352 = vunpack.c.h.b16 %v5311
    %v5353 = vunpack.c.l.b16 %v5312
    %v5354 = vunpack.c.h.b16 %v5312
    %v5355 = vunpack.c.l.b16 %v5313
    %v5356 = vunpack.c.h.b16 %v5313
    %v5357 = vunpack.c.l.b16 %v5314
    %v5358 = vunpack.c.h.b16 %v5314
    %v5359 = vunpack.c.l.b16 %v5315
    %v5360 = vunpack.c.h.b16 %v5315
    %v5361 = vunpack.c.l.b16 %v5316
    %v5362 = vunpack.c.h.b16 %v5316
    %v5363 = vunpack.c.l.b16 %v5317
    %v5364 = vunpack.c.h.b16 %v5317
    %v5365 = vunpack.c.l.b16 %v5318
    %v5366 = vunpack.c.h.b16 %v5318
    %v5367 = vpack.c.b16 %v5335, %v5335
    %v5368 = vpack.c.b16 %v5336, %v5336
    %v5369 = vpack.c.b16 %v5337, %v5337
    %v5370 = vpack.c.b16 %v5338, %v5338
    %v5371 = vpack.c.b16 %v5339, %v5339
    %v5372 = vpack.c.b16 %v5340, %v5340
    %v5373 = vpack.c.b16 %v5341, %v5341
    %v5374 = vpack.c.b16 %v5342, %v5342
    %v5375 = vpack.c.b16 %v5343, %v5343
    %v5376 = vpack.c.b16 %v5344, %v5344
    %v5377 = vpack.c.b16 %v5345, %v5345
    %v5378 = vpack.c.b16 %v5346, %v5346
    %v5379 = vpack.c.b16 %v5347, %v5347
    %v5380 = vpack.c.b16 %v5348, %v5348
    %v5381 = vpack.c.b16 %v5349, %v5349
    %v5382 = vpack.c.b16 %v5350, %v5350
    %v5383 = vpack.c.b16 %v5351, %v5351
    %v5384 = vpack.c.b16 %v5352, %v5352
    %v5385 = vpack.c.b16 %v5353, %v5353
    %v5386 = vpack.c.b16 %v5354, %v5354
    %v5387 = vpack.c.b16 %v5355, %v5355
    %v5388 = vpack.c.b16 %v5356, %v5356
    %v5389 = vpack.c.b16 %v5357, %v5357
    %v5390 = vpack.c.b16 %v5358, %v5358
    %v5391 = vpack.c.b16 %v5359, %v5359
    %v5392 = vpack.c.b16 %v5360, %v5360
    %v5393 = vpack.c.b16 %v5361, %v5361
    %v5394 = vpack.c.b16 %v5362, %v5362
    %v5395 = vpack.c.b16 %v5363, %v5363
    %v5396 = vpack.c.b16 %v5364, %v5364
    %v5397 = vpack.c.b16 %v5365, %v5365
    %v5398 = vpack.c.b16 %v5366, %v5366
    %5431 = vst [vmem:[%s2636 + $0x4] sm:$0xf] %v5367
    %5432 = vst [vmem:[%s2636 + $0xc] sm:$0xf] %v5368
    %5433 = vst [vmem:[%s2636 + $0x14] sm:$0xf] %v5369
    %5434 = vst [vmem:[%s2636 + $0x1c] sm:$0xf] %v5370
    %5435 = vst [vmem:[%s2636 + $0x24] sm:$0xf] %v5371
    %5436 = vst [vmem:[%s2636 + $0x2c] sm:$0xf] %v5372
    %5437 = vst [vmem:[%s2636 + $0x34] sm:$0xf] %v5373
    %5438 = vst [vmem:[%s2636 + $0x3c] sm:$0xf] %v5374
    %5439 = vst [vmem:[%s2636 + $0x44] sm:$0xf] %v5375
    %5440 = vst [vmem:[%s2636 + $0x4c] sm:$0xf] %v5376
    %5441 = vst [vmem:[%s2636 + $0x54] sm:$0xf] %v5377
    %5442 = vst [vmem:[%s2636 + $0x5c] sm:$0xf] %v5378
    %5443 = vst [vmem:[%s2636 + $0x64] sm:$0xf] %v5379
    %5444 = vst [vmem:[%s2636 + $0x6c] sm:$0xf] %v5380
    %5445 = vst [vmem:[%s2636 + $0x74] sm:$0xf] %v5381
    %5446 = vst [vmem:[%s2636 + $0x7c] sm:$0xf] %v5382
    %5447 = vst [vmem:[%s2636 + $0x84] sm:$0xf] %v5383
    %5448 = vst [vmem:[%s2636 + $0x8c] sm:$0xf] %v5384
    %5449 = vst [vmem:[%s2636 + $0x94] sm:$0xf] %v5385
    %5450 = vst [vmem:[%s2636 + $0x9c] sm:$0xf] %v5386
    %5451 = vst [vmem:[%s2636 + $0xa4] sm:$0xf] %v5387
    %5452 = vst [vmem:[%s2636 + $0xac] sm:$0xf] %v5388
    %5453 = vst [vmem:[%s2636 + $0xb4] sm:$0xf] %v5389
    %5454 = vst [vmem:[%s2636 + $0xbc] sm:$0xf] %v5390
    %5455 = vst [vmem:[%s2636 + $0xc4] sm:$0xf] %v5391
    %5456 = vst [vmem:[%s2636 + $0xcc] sm:$0xf] %v5392
    %5457 = vst [vmem:[%s2636 + $0xd4] sm:$0xf] %v5393
    %5458 = vst [vmem:[%s2636 + $0xdc] sm:$0xf] %v5394
    %5459 = vst [vmem:[%s2636 + $0xe4] sm:$0xf] %v5395
    %5460 = vst [vmem:[%s2636 + $0xec] sm:$0xf] %v5396
    %5461 = vst [vmem:[%s2636 + $0xf4] sm:$0xf] %v5397
    %5462 = vst [vmem:[%s2636 + $0xfc] sm:$0xf] %v5398
    %5463 = vset.pattern.permute.xlu0 5
    %5464 = vperm.xlu0 %5463, %v3783
    %v5465 = vpop.permute.xlu0 %5464
    %5467 = vset.pattern.permute.xlu0 5
    %5468 = vperm.xlu0 %5467, %v3784
    %v5469 = vpop.permute.xlu0 %5468
    %5471 = vset.pattern.permute.xlu0 5
    %5472 = vperm.xlu0 %5471, %v3785
    %v5473 = vpop.permute.xlu0 %5472
    %5475 = vset.pattern.permute.xlu0 5
    %5476 = vperm.xlu0 %5475, %v3786
    %v5477 = vpop.permute.xlu0 %5476
    %5479 = vset.pattern.permute.xlu0 5
    %5480 = vperm.xlu0 %5479, %v3787
    %v5481 = vpop.permute.xlu0 %5480
    %5483 = vset.pattern.permute.xlu0 5
    %5484 = vperm.xlu0 %5483, %v3788
    %v5485 = vpop.permute.xlu0 %5484
    %5487 = vset.pattern.permute.xlu0 5
    %5488 = vperm.xlu0 %5487, %v3789
    %v5489 = vpop.permute.xlu0 %5488
    %5491 = vset.pattern.permute.xlu0 5
    %5492 = vperm.xlu0 %5491, %v3790
    %v5493 = vpop.permute.xlu0 %5492
    %5495 = vset.pattern.permute.xlu0 5
    %5496 = vperm.xlu0 %5495, %v3791
    %v5497 = vpop.permute.xlu0 %5496
    %5499 = vset.pattern.permute.xlu0 5
    %5500 = vperm.xlu0 %5499, %v3792
    %v5501 = vpop.permute.xlu0 %5500
    %5503 = vset.pattern.permute.xlu0 5
    %5504 = vperm.xlu0 %5503, %v3793
    %v5505 = vpop.permute.xlu0 %5504
    %5507 = vset.pattern.permute.xlu0 5
    %5508 = vperm.xlu0 %5507, %v3794
    %v5509 = vpop.permute.xlu0 %5508
    %5511 = vset.pattern.permute.xlu0 5
    %5512 = vperm.xlu0 %5511, %v3795
    %v5513 = vpop.permute.xlu0 %5512
    %5515 = vset.pattern.permute.xlu0 5
    %5516 = vperm.xlu0 %5515, %v3796
    %v5517 = vpop.permute.xlu0 %5516
    %5519 = vset.pattern.permute.xlu0 5
    %5520 = vperm.xlu0 %5519, %v3797
    %v5521 = vpop.permute.xlu0 %5520
    %5523 = vset.pattern.permute.xlu0 5
    %5524 = vperm.xlu0 %5523, %v3798
    %v5525 = vpop.permute.xlu0 %5524
    %5527 = vset.pattern.permute.xlu0 5
    %5528 = vperm.xlu0 %5527, %v3815
    %v5529 = vpop.permute.xlu0 %5528
    %5531 = vset.pattern.permute.xlu0 5
    %5532 = vperm.xlu0 %5531, %v3816
    %v5533 = vpop.permute.xlu0 %5532
    %5535 = vset.pattern.permute.xlu0 5
    %5536 = vperm.xlu0 %5535, %v3817
    %v5537 = vpop.permute.xlu0 %5536
    %5539 = vset.pattern.permute.xlu0 5
    %5540 = vperm.xlu0 %5539, %v3818
    %v5541 = vpop.permute.xlu0 %5540
    %5543 = vset.pattern.permute.xlu0 5
    %5544 = vperm.xlu0 %5543, %v3819
    %v5545 = vpop.permute.xlu0 %5544
    %5547 = vset.pattern.permute.xlu0 5
    %5548 = vperm.xlu0 %5547, %v3820
    %v5549 = vpop.permute.xlu0 %5548
    %5551 = vset.pattern.permute.xlu0 5
    %5552 = vperm.xlu0 %5551, %v3821
    %v5553 = vpop.permute.xlu0 %5552
    %5555 = vset.pattern.permute.xlu0 5
    %5556 = vperm.xlu0 %5555, %v3822
    %v5557 = vpop.permute.xlu0 %5556
    %5559 = vset.pattern.permute.xlu0 5
    %5560 = vperm.xlu0 %5559, %v3823
    %v5561 = vpop.permute.xlu0 %5560
    %5563 = vset.pattern.permute.xlu0 5
    %5564 = vperm.xlu0 %5563, %v3824
    %v5565 = vpop.permute.xlu0 %5564
    %5567 = vset.pattern.permute.xlu0 5
    %5568 = vperm.xlu0 %5567, %v3825
    %v5569 = vpop.permute.xlu0 %5568
    %5571 = vset.pattern.permute.xlu0 5
    %5572 = vperm.xlu0 %5571, %v3826
    %v5573 = vpop.permute.xlu0 %5572
    %5575 = vset.pattern.permute.xlu0 5
    %5576 = vperm.xlu0 %5575, %v3827
    %v5577 = vpop.permute.xlu0 %5576
    %5579 = vset.pattern.permute.xlu0 5
    %5580 = vperm.xlu0 %5579, %v3828
    %v5581 = vpop.permute.xlu0 %5580
    %5583 = vset.pattern.permute.xlu0 5
    %5584 = vperm.xlu0 %5583, %v3829
    %v5585 = vpop.permute.xlu0 %5584
    %5587 = vset.pattern.permute.xlu0 5
    %5588 = vperm.xlu0 %5587, %v3830
    %v5589 = vpop.permute.xlu0 %5588
    %v5591 = vmul.f32 %v5465, %v278
    %v5592 = vmul.f32 %v5469, %v284
    %v5593 = vmul.f32 %v5473, %v290
    %v5594 = vmul.f32 %v5477, %v296
    %v5595 = vmul.f32 %v5481, %v302
    %v5596 = vmul.f32 %v5485, %v308
    %v5597 = vmul.f32 %v5489, %v314
    %v5598 = vmul.f32 %v5493, %v320
    %v5599 = vmul.f32 %v5497, %v326
    %v5600 = vmul.f32 %v5501, %v332
    %v5601 = vmul.f32 %v5505, %v338
    %v5602 = vmul.f32 %v5509, %v344
    %v5603 = vmul.f32 %v5513, %v350
    %v5604 = vmul.f32 %v5517, %v356
    %v5605 = vmul.f32 %v5521, %v362
    %v5606 = vmul.f32 %v5525, %v368
    %v5607 = vmul.f32 %v5529, %v374
    %v5608 = vmul.f32 %v5533, %v380
    %v5609 = vmul.f32 %v5537, %v386
    %v5610 = vmul.f32 %v5541, %v392
    %v5611 = vmul.f32 %v5545, %v398
    %v5612 = vmul.f32 %v5549, %v404
    %v5613 = vmul.f32 %v5553, %v410
    %v5614 = vmul.f32 %v5557, %v416
    %v5615 = vmul.f32 %v5561, %v422
    %v5616 = vmul.f32 %v5565, %v428
    %v5617 = vmul.f32 %v5569, %v434
    %v5618 = vmul.f32 %v5573, %v440
    %v5619 = vmul.f32 %v5577, %v446
    %v5620 = vmul.f32 %v5581, %v452
    %v5621 = vmul.f32 %v5585, %v458
    %v5622 = vmul.f32 %v5589, %v464
    %v5623 = vpack.c.bf16 %v5592, %v5591
    %v5624 = vpack.c.bf16 %v5594, %v5593
    %v5625 = vpack.c.bf16 %v5596, %v5595
    %v5626 = vpack.c.bf16 %v5598, %v5597
    %v5627 = vpack.c.bf16 %v5600, %v5599
    %v5628 = vpack.c.bf16 %v5602, %v5601
    %v5629 = vpack.c.bf16 %v5604, %v5603
    %v5630 = vpack.c.bf16 %v5606, %v5605
    %v5631 = vpack.c.bf16 %v5608, %v5607
    %v5632 = vpack.c.bf16 %v5610, %v5609
    %v5633 = vpack.c.bf16 %v5612, %v5611
    %v5634 = vpack.c.bf16 %v5614, %v5613
    %v5635 = vpack.c.bf16 %v5616, %v5615
    %v5636 = vpack.c.bf16 %v5618, %v5617
    %v5637 = vpack.c.bf16 %v5620, %v5619
    %v5638 = vpack.c.bf16 %v5622, %v5621
    %v5655 = vunpack.c.l.b16 %v5623
    %v5656 = vunpack.c.h.b16 %v5623
    %v5657 = vunpack.c.l.b16 %v5624
    %v5658 = vunpack.c.h.b16 %v5624
    %v5659 = vunpack.c.l.b16 %v5625
    %v5660 = vunpack.c.h.b16 %v5625
    %v5661 = vunpack.c.l.b16 %v5626
    %v5662 = vunpack.c.h.b16 %v5626
    %v5663 = vunpack.c.l.b16 %v5627
    %v5664 = vunpack.c.h.b16 %v5627
    %v5665 = vunpack.c.l.b16 %v5628
    %v5666 = vunpack.c.h.b16 %v5628
    %v5667 = vunpack.c.l.b16 %v5629
    %v5668 = vunpack.c.h.b16 %v5629
    %v5669 = vunpack.c.l.b16 %v5630
    %v5670 = vunpack.c.h.b16 %v5630
    %v5671 = vunpack.c.l.b16 %v5631
    %v5672 = vunpack.c.h.b16 %v5631
    %v5673 = vunpack.c.l.b16 %v5632
    %v5674 = vunpack.c.h.b16 %v5632
    %v5675 = vunpack.c.l.b16 %v5633
    %v5676 = vunpack.c.h.b16 %v5633
    %v5677 = vunpack.c.l.b16 %v5634
    %v5678 = vunpack.c.h.b16 %v5634
    %v5679 = vunpack.c.l.b16 %v5635
    %v5680 = vunpack.c.h.b16 %v5635
    %v5681 = vunpack.c.l.b16 %v5636
    %v5682 = vunpack.c.h.b16 %v5636
    %v5683 = vunpack.c.l.b16 %v5637
    %v5684 = vunpack.c.h.b16 %v5637
    %v5685 = vunpack.c.l.b16 %v5638
    %v5686 = vunpack.c.h.b16 %v5638
    %v5687 = vpack.c.b16 %v5655, %v5655
    %v5688 = vpack.c.b16 %v5656, %v5656
    %v5689 = vpack.c.b16 %v5657, %v5657
    %v5690 = vpack.c.b16 %v5658, %v5658
    %v5691 = vpack.c.b16 %v5659, %v5659
    %v5692 = vpack.c.b16 %v5660, %v5660
    %v5693 = vpack.c.b16 %v5661, %v5661
    %v5694 = vpack.c.b16 %v5662, %v5662
    %v5695 = vpack.c.b16 %v5663, %v5663
    %v5696 = vpack.c.b16 %v5664, %v5664
    %v5697 = vpack.c.b16 %v5665, %v5665
    %v5698 = vpack.c.b16 %v5666, %v5666
    %v5699 = vpack.c.b16 %v5667, %v5667
    %v5700 = vpack.c.b16 %v5668, %v5668
    %v5701 = vpack.c.b16 %v5669, %v5669
    %v5702 = vpack.c.b16 %v5670, %v5670
    %v5703 = vpack.c.b16 %v5671, %v5671
    %v5704 = vpack.c.b16 %v5672, %v5672
    %v5705 = vpack.c.b16 %v5673, %v5673
    %v5706 = vpack.c.b16 %v5674, %v5674
    %v5707 = vpack.c.b16 %v5675, %v5675
    %v5708 = vpack.c.b16 %v5676, %v5676
    %v5709 = vpack.c.b16 %v5677, %v5677
    %v5710 = vpack.c.b16 %v5678, %v5678
    %v5711 = vpack.c.b16 %v5679, %v5679
    %v5712 = vpack.c.b16 %v5680, %v5680
    %v5713 = vpack.c.b16 %v5681, %v5681
    %v5714 = vpack.c.b16 %v5682, %v5682
    %v5715 = vpack.c.b16 %v5683, %v5683
    %v5716 = vpack.c.b16 %v5684, %v5684
    %v5717 = vpack.c.b16 %v5685, %v5685
    %v5718 = vpack.c.b16 %v5686, %v5686
    %5751 = vst [vmem:[%s2957 + $0x4] sm:$0xf] %v5687
    %5752 = vst [vmem:[%s2957 + $0xc] sm:$0xf] %v5688
    %5753 = vst [vmem:[%s2957 + $0x14] sm:$0xf] %v5689
    %5754 = vst [vmem:[%s2957 + $0x1c] sm:$0xf] %v5690
    %5755 = vst [vmem:[%s2957 + $0x24] sm:$0xf] %v5691
    %5756 = vst [vmem:[%s2957 + $0x2c] sm:$0xf] %v5692
    %5757 = vst [vmem:[%s2957 + $0x34] sm:$0xf] %v5693
    %5758 = vst [vmem:[%s2957 + $0x3c] sm:$0xf] %v5694
    %5759 = vst [vmem:[%s2957 + $0x44] sm:$0xf] %v5695
    %5760 = vst [vmem:[%s2957 + $0x4c] sm:$0xf] %v5696
    %5761 = vst [vmem:[%s2957 + $0x54] sm:$0xf] %v5697
    %5762 = vst [vmem:[%s2957 + $0x5c] sm:$0xf] %v5698
    %5763 = vst [vmem:[%s2957 + $0x64] sm:$0xf] %v5699
    %5764 = vst [vmem:[%s2957 + $0x6c] sm:$0xf] %v5700
    %5765 = vst [vmem:[%s2957 + $0x74] sm:$0xf] %v5701
    %5766 = vst [vmem:[%s2957 + $0x7c] sm:$0xf] %v5702
    %5767 = vst [vmem:[%s2957 + $0x84] sm:$0xf] %v5703
    %5768 = vst [vmem:[%s2957 + $0x8c] sm:$0xf] %v5704
    %5769 = vst [vmem:[%s2957 + $0x94] sm:$0xf] %v5705
    %5770 = vst [vmem:[%s2957 + $0x9c] sm:$0xf] %v5706
    %5771 = vst [vmem:[%s2957 + $0xa4] sm:$0xf] %v5707
    %5772 = vst [vmem:[%s2957 + $0xac] sm:$0xf] %v5708
    %5773 = vst [vmem:[%s2957 + $0xb4] sm:$0xf] %v5709
    %5774 = vst [vmem:[%s2957 + $0xbc] sm:$0xf] %v5710
    %5775 = vst [vmem:[%s2957 + $0xc4] sm:$0xf] %v5711
    %5776 = vst [vmem:[%s2957 + $0xcc] sm:$0xf] %v5712
    %5777 = vst [vmem:[%s2957 + $0xd4] sm:$0xf] %v5713
    %5778 = vst [vmem:[%s2957 + $0xdc] sm:$0xf] %v5714
    %5779 = vst [vmem:[%s2957 + $0xe4] sm:$0xf] %v5715
    %5780 = vst [vmem:[%s2957 + $0xec] sm:$0xf] %v5716
    %5781 = vst [vmem:[%s2957 + $0xf4] sm:$0xf] %v5717
    %5782 = vst [vmem:[%s2957 + $0xfc] sm:$0xf] %v5718
    %5783 = vset.pattern.permute.xlu0 6
    %5784 = vperm.xlu0 %5783, %v3783
    %v5785 = vpop.permute.xlu0 %5784
    %5787 = vset.pattern.permute.xlu0 6
    %5788 = vperm.xlu0 %5787, %v3784
    %v5789 = vpop.permute.xlu0 %5788
    %5791 = vset.pattern.permute.xlu0 6
    %5792 = vperm.xlu0 %5791, %v3785
    %v5793 = vpop.permute.xlu0 %5792
    %5795 = vset.pattern.permute.xlu0 6
    %5796 = vperm.xlu0 %5795, %v3786
    %v5797 = vpop.permute.xlu0 %5796
    %5799 = vset.pattern.permute.xlu0 6
    %5800 = vperm.xlu0 %5799, %v3787
    %v5801 = vpop.permute.xlu0 %5800
    %5803 = vset.pattern.permute.xlu0 6
    %5804 = vperm.xlu0 %5803, %v3788
    %v5805 = vpop.permute.xlu0 %5804
    %5807 = vset.pattern.permute.xlu0 6
    %5808 = vperm.xlu0 %5807, %v3789
    %v5809 = vpop.permute.xlu0 %5808
    %5811 = vset.pattern.permute.xlu0 6
    %5812 = vperm.xlu0 %5811, %v3790
    %v5813 = vpop.permute.xlu0 %5812
    %5815 = vset.pattern.permute.xlu0 6
    %5816 = vperm.xlu0 %5815, %v3791
    %v5817 = vpop.permute.xlu0 %5816
    %5819 = vset.pattern.permute.xlu0 6
    %5820 = vperm.xlu0 %5819, %v3792
    %v5821 = vpop.permute.xlu0 %5820
    %5823 = vset.pattern.permute.xlu0 6
    %5824 = vperm.xlu0 %5823, %v3793
    %v5825 = vpop.permute.xlu0 %5824
    %5827 = vset.pattern.permute.xlu0 6
    %5828 = vperm.xlu0 %5827, %v3794
    %v5829 = vpop.permute.xlu0 %5828
    %5831 = vset.pattern.permute.xlu0 6
    %5832 = vperm.xlu0 %5831, %v3795
    %v5833 = vpop.permute.xlu0 %5832
    %5835 = vset.pattern.permute.xlu0 6
    %5836 = vperm.xlu0 %5835, %v3796
    %v5837 = vpop.permute.xlu0 %5836
    %5839 = vset.pattern.permute.xlu0 6
    %5840 = vperm.xlu0 %5839, %v3797
    %v5841 = vpop.permute.xlu0 %5840
    %5843 = vset.pattern.permute.xlu0 6
    %5844 = vperm.xlu0 %5843, %v3798
    %v5845 = vpop.permute.xlu0 %5844
    %5847 = vset.pattern.permute.xlu0 6
    %5848 = vperm.xlu0 %5847, %v3815
    %v5849 = vpop.permute.xlu0 %5848
    %5851 = vset.pattern.permute.xlu0 6
    %5852 = vperm.xlu0 %5851, %v3816
    %v5853 = vpop.permute.xlu0 %5852
    %5855 = vset.pattern.permute.xlu0 6
    %5856 = vperm.xlu0 %5855, %v3817
    %v5857 = vpop.permute.xlu0 %5856
    %5859 = vset.pattern.permute.xlu0 6
    %5860 = vperm.xlu0 %5859, %v3818
    %v5861 = vpop.permute.xlu0 %5860
    %5863 = vset.pattern.permute.xlu0 6
    %5864 = vperm.xlu0 %5863, %v3819
    %v5865 = vpop.permute.xlu0 %5864
    %5867 = vset.pattern.permute.xlu0 6
    %5868 = vperm.xlu0 %5867, %v3820
    %v5869 = vpop.permute.xlu0 %5868
    %5871 = vset.pattern.permute.xlu0 6
    %5872 = vperm.xlu0 %5871, %v3821
    %v5873 = vpop.permute.xlu0 %5872
    %5875 = vset.pattern.permute.xlu0 6
    %5876 = vperm.xlu0 %5875, %v3822
    %v5877 = vpop.permute.xlu0 %5876
    %5879 = vset.pattern.permute.xlu0 6
    %5880 = vperm.xlu0 %5879, %v3823
    %v5881 = vpop.permute.xlu0 %5880
    %5883 = vset.pattern.permute.xlu0 6
    %5884 = vperm.xlu0 %5883, %v3824
    %v5885 = vpop.permute.xlu0 %5884
    %5887 = vset.pattern.permute.xlu0 6
    %5888 = vperm.xlu0 %5887, %v3825
    %v5889 = vpop.permute.xlu0 %5888
    %5891 = vset.pattern.permute.xlu0 6
    %5892 = vperm.xlu0 %5891, %v3826
    %v5893 = vpop.permute.xlu0 %5892
    %5895 = vset.pattern.permute.xlu0 6
    %5896 = vperm.xlu0 %5895, %v3827
    %v5897 = vpop.permute.xlu0 %5896
    %5899 = vset.pattern.permute.xlu0 6
    %5900 = vperm.xlu0 %5899, %v3828
    %v5901 = vpop.permute.xlu0 %5900
    %5903 = vset.pattern.permute.xlu0 6
    %5904 = vperm.xlu0 %5903, %v3829
    %v5905 = vpop.permute.xlu0 %5904
    %5907 = vset.pattern.permute.xlu0 6
    %5908 = vperm.xlu0 %5907, %v3830
    %v5909 = vpop.permute.xlu0 %5908
    %v5911 = vmul.f32 %v5785, %v278
    %v5912 = vmul.f32 %v5789, %v284
    %v5913 = vmul.f32 %v5793, %v290
    %v5914 = vmul.f32 %v5797, %v296
    %v5915 = vmul.f32 %v5801, %v302
    %v5916 = vmul.f32 %v5805, %v308
    %v5917 = vmul.f32 %v5809, %v314
    %v5918 = vmul.f32 %v5813, %v320
    %v5919 = vmul.f32 %v5817, %v326
    %v5920 = vmul.f32 %v5821, %v332
    %v5921 = vmul.f32 %v5825, %v338
    %v5922 = vmul.f32 %v5829, %v344
    %v5923 = vmul.f32 %v5833, %v350
    %v5924 = vmul.f32 %v5837, %v356
    %v5925 = vmul.f32 %v5841, %v362
    %v5926 = vmul.f32 %v5845, %v368
    %v5927 = vmul.f32 %v5849, %v374
    %v5928 = vmul.f32 %v5853, %v380
    %v5929 = vmul.f32 %v5857, %v386
    %v5930 = vmul.f32 %v5861, %v392
    %v5931 = vmul.f32 %v5865, %v398
    %v5932 = vmul.f32 %v5869, %v404
    %v5933 = vmul.f32 %v5873, %v410
    %v5934 = vmul.f32 %v5877, %v416
    %v5935 = vmul.f32 %v5881, %v422
    %v5936 = vmul.f32 %v5885, %v428
    %v5937 = vmul.f32 %v5889, %v434
    %v5938 = vmul.f32 %v5893, %v440
    %v5939 = vmul.f32 %v5897, %v446
    %v5940 = vmul.f32 %v5901, %v452
    %v5941 = vmul.f32 %v5905, %v458
    %v5942 = vmul.f32 %v5909, %v464
    %v5943 = vpack.c.bf16 %v5912, %v5911
    %v5944 = vpack.c.bf16 %v5914, %v5913
    %v5945 = vpack.c.bf16 %v5916, %v5915
    %v5946 = vpack.c.bf16 %v5918, %v5917
    %v5947 = vpack.c.bf16 %v5920, %v5919
    %v5948 = vpack.c.bf16 %v5922, %v5921
    %v5949 = vpack.c.bf16 %v5924, %v5923
    %v5950 = vpack.c.bf16 %v5926, %v5925
    %v5951 = vpack.c.bf16 %v5928, %v5927
    %v5952 = vpack.c.bf16 %v5930, %v5929
    %v5953 = vpack.c.bf16 %v5932, %v5931
    %v5954 = vpack.c.bf16 %v5934, %v5933
    %v5955 = vpack.c.bf16 %v5936, %v5935
    %v5956 = vpack.c.bf16 %v5938, %v5937
    %v5957 = vpack.c.bf16 %v5940, %v5939
    %v5958 = vpack.c.bf16 %v5942, %v5941
    %v5975 = vunpack.c.l.b16 %v5943
    %v5976 = vunpack.c.h.b16 %v5943
    %v5977 = vunpack.c.l.b16 %v5944
    %v5978 = vunpack.c.h.b16 %v5944
    %v5979 = vunpack.c.l.b16 %v5945
    %v5980 = vunpack.c.h.b16 %v5945
    %v5981 = vunpack.c.l.b16 %v5946
    %v5982 = vunpack.c.h.b16 %v5946
    %v5983 = vunpack.c.l.b16 %v5947
    %v5984 = vunpack.c.h.b16 %v5947
    %v5985 = vunpack.c.l.b16 %v5948
    %v5986 = vunpack.c.h.b16 %v5948
    %v5987 = vunpack.c.l.b16 %v5949
    %v5988 = vunpack.c.h.b16 %v5949
    %v5989 = vunpack.c.l.b16 %v5950
    %v5990 = vunpack.c.h.b16 %v5950
    %v5991 = vunpack.c.l.b16 %v5951
    %v5992 = vunpack.c.h.b16 %v5951
    %v5993 = vunpack.c.l.b16 %v5952
    %v5994 = vunpack.c.h.b16 %v5952
    %v5995 = vunpack.c.l.b16 %v5953
    %v5996 = vunpack.c.h.b16 %v5953
    %v5997 = vunpack.c.l.b16 %v5954
    %v5998 = vunpack.c.h.b16 %v5954
    %v5999 = vunpack.c.l.b16 %v5955
    %v6000 = vunpack.c.h.b16 %v5955
    %v6001 = vunpack.c.l.b16 %v5956
    %v6002 = vunpack.c.h.b16 %v5956
    %v6003 = vunpack.c.l.b16 %v5957
    %v6004 = vunpack.c.h.b16 %v5957
    %v6005 = vunpack.c.l.b16 %v5958
    %v6006 = vunpack.c.h.b16 %v5958
    %v6007 = vpack.c.b16 %v5975, %v5975
    %v6008 = vpack.c.b16 %v5976, %v5976
    %v6009 = vpack.c.b16 %v5977, %v5977
    %v6010 = vpack.c.b16 %v5978, %v5978
    %v6011 = vpack.c.b16 %v5979, %v5979
    %v6012 = vpack.c.b16 %v5980, %v5980
    %v6013 = vpack.c.b16 %v5981, %v5981
    %v6014 = vpack.c.b16 %v5982, %v5982
    %v6015 = vpack.c.b16 %v5983, %v5983
    %v6016 = vpack.c.b16 %v5984, %v5984
    %v6017 = vpack.c.b16 %v5985, %v5985
    %v6018 = vpack.c.b16 %v5986, %v5986
    %v6019 = vpack.c.b16 %v5987, %v5987
    %v6020 = vpack.c.b16 %v5988, %v5988
    %v6021 = vpack.c.b16 %v5989, %v5989
    %v6022 = vpack.c.b16 %v5990, %v5990
    %v6023 = vpack.c.b16 %v5991, %v5991
    %v6024 = vpack.c.b16 %v5992, %v5992
    %v6025 = vpack.c.b16 %v5993, %v5993
    %v6026 = vpack.c.b16 %v5994, %v5994
    %v6027 = vpack.c.b16 %v5995, %v5995
    %v6028 = vpack.c.b16 %v5996, %v5996
    %v6029 = vpack.c.b16 %v5997, %v5997
    %v6030 = vpack.c.b16 %v5998, %v5998
    %v6031 = vpack.c.b16 %v5999, %v5999
    %v6032 = vpack.c.b16 %v6000, %v6000
    %v6033 = vpack.c.b16 %v6001, %v6001
    %v6034 = vpack.c.b16 %v6002, %v6002
    %v6035 = vpack.c.b16 %v6003, %v6003
    %v6036 = vpack.c.b16 %v6004, %v6004
    %v6037 = vpack.c.b16 %v6005, %v6005
    %v6038 = vpack.c.b16 %v6006, %v6006
    %6071 = vst [vmem:[%s3278 + $0x4] sm:$0xf] %v6007
    %6072 = vst [vmem:[%s3278 + $0xc] sm:$0xf] %v6008
    %6073 = vst [vmem:[%s3278 + $0x14] sm:$0xf] %v6009
    %6074 = vst [vmem:[%s3278 + $0x1c] sm:$0xf] %v6010
    %6075 = vst [vmem:[%s3278 + $0x24] sm:$0xf] %v6011
    %6076 = vst [vmem:[%s3278 + $0x2c] sm:$0xf] %v6012
    %6077 = vst [vmem:[%s3278 + $0x34] sm:$0xf] %v6013
    %6078 = vst [vmem:[%s3278 + $0x3c] sm:$0xf] %v6014
    %6079 = vst [vmem:[%s3278 + $0x44] sm:$0xf] %v6015
    %6080 = vst [vmem:[%s3278 + $0x4c] sm:$0xf] %v6016
    %6081 = vst [vmem:[%s3278 + $0x54] sm:$0xf] %v6017
    %6082 = vst [vmem:[%s3278 + $0x5c] sm:$0xf] %v6018
    %6083 = vst [vmem:[%s3278 + $0x64] sm:$0xf] %v6019
    %6084 = vst [vmem:[%s3278 + $0x6c] sm:$0xf] %v6020
    %6085 = vst [vmem:[%s3278 + $0x74] sm:$0xf] %v6021
    %6086 = vst [vmem:[%s3278 + $0x7c] sm:$0xf] %v6022
    %6087 = vst [vmem:[%s3278 + $0x84] sm:$0xf] %v6023
    %6088 = vst [vmem:[%s3278 + $0x8c] sm:$0xf] %v6024
    %6089 = vst [vmem:[%s3278 + $0x94] sm:$0xf] %v6025
    %6090 = vst [vmem:[%s3278 + $0x9c] sm:$0xf] %v6026
    %6091 = vst [vmem:[%s3278 + $0xa4] sm:$0xf] %v6027
    %6092 = vst [vmem:[%s3278 + $0xac] sm:$0xf] %v6028
    %6093 = vst [vmem:[%s3278 + $0xb4] sm:$0xf] %v6029
    %6094 = vst [vmem:[%s3278 + $0xbc] sm:$0xf] %v6030
    %6095 = vst [vmem:[%s3278 + $0xc4] sm:$0xf] %v6031
    %6096 = vst [vmem:[%s3278 + $0xcc] sm:$0xf] %v6032
    %6097 = vst [vmem:[%s3278 + $0xd4] sm:$0xf] %v6033
    %6098 = vst [vmem:[%s3278 + $0xdc] sm:$0xf] %v6034
    %6099 = vst [vmem:[%s3278 + $0xe4] sm:$0xf] %v6035
    %6100 = vst [vmem:[%s3278 + $0xec] sm:$0xf] %v6036
    %6101 = vst [vmem:[%s3278 + $0xf4] sm:$0xf] %v6037
    %6102 = vst [vmem:[%s3278 + $0xfc] sm:$0xf] %v6038
    %6103 = vset.pattern.permute.xlu0 7
    %6104 = vperm.xlu0 %6103, %v3783
    %v6105 = vpop.permute.xlu0 %6104
    %6107 = vset.pattern.permute.xlu0 7
    %6108 = vperm.xlu0 %6107, %v3784
    %v6109 = vpop.permute.xlu0 %6108
    %6111 = vset.pattern.permute.xlu0 7
    %6112 = vperm.xlu0 %6111, %v3785
    %v6113 = vpop.permute.xlu0 %6112
    %6115 = vset.pattern.permute.xlu0 7
    %6116 = vperm.xlu0 %6115, %v3786
    %v6117 = vpop.permute.xlu0 %6116
    %6119 = vset.pattern.permute.xlu0 7
    %6120 = vperm.xlu0 %6119, %v3787
    %v6121 = vpop.permute.xlu0 %6120
    %6123 = vset.pattern.permute.xlu0 7
    %6124 = vperm.xlu0 %6123, %v3788
    %v6125 = vpop.permute.xlu0 %6124
    %6127 = vset.pattern.permute.xlu0 7
    %6128 = vperm.xlu0 %6127, %v3789
    %v6129 = vpop.permute.xlu0 %6128
    %6131 = vset.pattern.permute.xlu0 7
    %6132 = vperm.xlu0 %6131, %v3790
    %v6133 = vpop.permute.xlu0 %6132
    %6135 = vset.pattern.permute.xlu0 7
    %6136 = vperm.xlu0 %6135, %v3791
    %v6137 = vpop.permute.xlu0 %6136
    %6139 = vset.pattern.permute.xlu0 7
    %6140 = vperm.xlu0 %6139, %v3792
    %v6141 = vpop.permute.xlu0 %6140
    %6143 = vset.pattern.permute.xlu0 7
    %6144 = vperm.xlu0 %6143, %v3793
    %v6145 = vpop.permute.xlu0 %6144
    %6147 = vset.pattern.permute.xlu0 7
    %6148 = vperm.xlu0 %6147, %v3794
    %v6149 = vpop.permute.xlu0 %6148
    %6151 = vset.pattern.permute.xlu0 7
    %6152 = vperm.xlu0 %6151, %v3795
    %v6153 = vpop.permute.xlu0 %6152
    %6155 = vset.pattern.permute.xlu0 7
    %6156 = vperm.xlu0 %6155, %v3796
    %v6157 = vpop.permute.xlu0 %6156
    %6159 = vset.pattern.permute.xlu0 7
    %6160 = vperm.xlu0 %6159, %v3797
    %v6161 = vpop.permute.xlu0 %6160
    %6163 = vset.pattern.permute.xlu0 7
    %6164 = vperm.xlu0 %6163, %v3798
    %v6165 = vpop.permute.xlu0 %6164
    %6167 = vset.pattern.permute.xlu0 7
    %6168 = vperm.xlu0 %6167, %v3815
    %v6169 = vpop.permute.xlu0 %6168
    %6171 = vset.pattern.permute.xlu0 7
    %6172 = vperm.xlu0 %6171, %v3816
    %v6173 = vpop.permute.xlu0 %6172
    %6175 = vset.pattern.permute.xlu0 7
    %6176 = vperm.xlu0 %6175, %v3817
    %v6177 = vpop.permute.xlu0 %6176
    %6179 = vset.pattern.permute.xlu0 7
    %6180 = vperm.xlu0 %6179, %v3818
    %v6181 = vpop.permute.xlu0 %6180
    %6183 = vset.pattern.permute.xlu0 7
    %6184 = vperm.xlu0 %6183, %v3819
    %v6185 = vpop.permute.xlu0 %6184
    %6187 = vset.pattern.permute.xlu0 7
    %6188 = vperm.xlu0 %6187, %v3820
    %v6189 = vpop.permute.xlu0 %6188
    %6191 = vset.pattern.permute.xlu0 7
    %6192 = vperm.xlu0 %6191, %v3821
    %v6193 = vpop.permute.xlu0 %6192
    %6195 = vset.pattern.permute.xlu0 7
    %6196 = vperm.xlu0 %6195, %v3822
    %v6197 = vpop.permute.xlu0 %6196
    %6199 = vset.pattern.permute.xlu0 7
    %6200 = vperm.xlu0 %6199, %v3823
    %v6201 = vpop.permute.xlu0 %6200
    %6203 = vset.pattern.permute.xlu0 7
    %6204 = vperm.xlu0 %6203, %v3824
    %v6205 = vpop.permute.xlu0 %6204
    %6207 = vset.pattern.permute.xlu0 7
    %6208 = vperm.xlu0 %6207, %v3825
    %v6209 = vpop.permute.xlu0 %6208
    %6211 = vset.pattern.permute.xlu0 7
    %6212 = vperm.xlu0 %6211, %v3826
    %v6213 = vpop.permute.xlu0 %6212
    %6215 = vset.pattern.permute.xlu0 7
    %6216 = vperm.xlu0 %6215, %v3827
    %v6217 = vpop.permute.xlu0 %6216
    %6219 = vset.pattern.permute.xlu0 7
    %6220 = vperm.xlu0 %6219, %v3828
    %v6221 = vpop.permute.xlu0 %6220
    %6223 = vset.pattern.permute.xlu0 7
    %6224 = vperm.xlu0 %6223, %v3829
    %v6225 = vpop.permute.xlu0 %6224
    %6227 = vset.pattern.permute.xlu0 7
    %6228 = vperm.xlu0 %6227, %v3830
    %v6229 = vpop.permute.xlu0 %6228
    %v6231 = vmul.f32 %v6105, %v278
    %v6232 = vmul.f32 %v6109, %v284
    %v6233 = vmul.f32 %v6113, %v290
    %v6234 = vmul.f32 %v6117, %v296
    %v6235 = vmul.f32 %v6121, %v302
    %v6236 = vmul.f32 %v6125, %v308
    %v6237 = vmul.f32 %v6129, %v314
    %v6238 = vmul.f32 %v6133, %v320
    %v6239 = vmul.f32 %v6137, %v326
    %v6240 = vmul.f32 %v6141, %v332
    %v6241 = vmul.f32 %v6145, %v338
    %v6242 = vmul.f32 %v6149, %v344
    %v6243 = vmul.f32 %v6153, %v350
    %v6244 = vmul.f32 %v6157, %v356
    %v6245 = vmul.f32 %v6161, %v362
    %v6246 = vmul.f32 %v6165, %v368
    %v6247 = vmul.f32 %v6169, %v374
    %v6248 = vmul.f32 %v6173, %v380
    %v6249 = vmul.f32 %v6177, %v386
    %v6250 = vmul.f32 %v6181, %v392
    %v6251 = vmul.f32 %v6185, %v398
    %v6252 = vmul.f32 %v6189, %v404
    %v6253 = vmul.f32 %v6193, %v410
    %v6254 = vmul.f32 %v6197, %v416
    %v6255 = vmul.f32 %v6201, %v422
    %v6256 = vmul.f32 %v6205, %v428
    %v6257 = vmul.f32 %v6209, %v434
    %v6258 = vmul.f32 %v6213, %v440
    %v6259 = vmul.f32 %v6217, %v446
    %v6260 = vmul.f32 %v6221, %v452
    %v6261 = vmul.f32 %v6225, %v458
    %v6262 = vmul.f32 %v6229, %v464
    %v6263 = vpack.c.bf16 %v6232, %v6231
    %v6264 = vpack.c.bf16 %v6234, %v6233
    %v6265 = vpack.c.bf16 %v6236, %v6235
    %v6266 = vpack.c.bf16 %v6238, %v6237
    %v6267 = vpack.c.bf16 %v6240, %v6239
    %v6268 = vpack.c.bf16 %v6242, %v6241
    %v6269 = vpack.c.bf16 %v6244, %v6243
    %v6270 = vpack.c.bf16 %v6246, %v6245
    %v6271 = vpack.c.bf16 %v6248, %v6247
    %v6272 = vpack.c.bf16 %v6250, %v6249
    %v6273 = vpack.c.bf16 %v6252, %v6251
    %v6274 = vpack.c.bf16 %v6254, %v6253
    %v6275 = vpack.c.bf16 %v6256, %v6255
    %v6276 = vpack.c.bf16 %v6258, %v6257
    %v6277 = vpack.c.bf16 %v6260, %v6259
    %v6278 = vpack.c.bf16 %v6262, %v6261
    %v6295 = vunpack.c.l.b16 %v6263
    %v6296 = vunpack.c.h.b16 %v6263
    %v6297 = vunpack.c.l.b16 %v6264
    %v6298 = vunpack.c.h.b16 %v6264
    %v6299 = vunpack.c.l.b16 %v6265
    %v6300 = vunpack.c.h.b16 %v6265
    %v6301 = vunpack.c.l.b16 %v6266
    %v6302 = vunpack.c.h.b16 %v6266
    %v6303 = vunpack.c.l.b16 %v6267
    %v6304 = vunpack.c.h.b16 %v6267
    %v6305 = vunpack.c.l.b16 %v6268
    %v6306 = vunpack.c.h.b16 %v6268
    %v6307 = vunpack.c.l.b16 %v6269
    %v6308 = vunpack.c.h.b16 %v6269
    %v6309 = vunpack.c.l.b16 %v6270
    %v6310 = vunpack.c.h.b16 %v6270
    %v6311 = vunpack.c.l.b16 %v6271
    %v6312 = vunpack.c.h.b16 %v6271
    %v6313 = vunpack.c.l.b16 %v6272
    %v6314 = vunpack.c.h.b16 %v6272
    %v6315 = vunpack.c.l.b16 %v6273
    %v6316 = vunpack.c.h.b16 %v6273
    %v6317 = vunpack.c.l.b16 %v6274
    %v6318 = vunpack.c.h.b16 %v6274
    %v6319 = vunpack.c.l.b16 %v6275
    %v6320 = vunpack.c.h.b16 %v6275
    %v6321 = vunpack.c.l.b16 %v6276
    %v6322 = vunpack.c.h.b16 %v6276
    %v6323 = vunpack.c.l.b16 %v6277
    %v6324 = vunpack.c.h.b16 %v6277
    %v6325 = vunpack.c.l.b16 %v6278
    %v6326 = vunpack.c.h.b16 %v6278
    %v6327 = vpack.c.b16 %v6295, %v6295
    %v6328 = vpack.c.b16 %v6296, %v6296
    %v6329 = vpack.c.b16 %v6297, %v6297
    %v6330 = vpack.c.b16 %v6298, %v6298
    %v6331 = vpack.c.b16 %v6299, %v6299
    %v6332 = vpack.c.b16 %v6300, %v6300
    %v6333 = vpack.c.b16 %v6301, %v6301
    %v6334 = vpack.c.b16 %v6302, %v6302
    %v6335 = vpack.c.b16 %v6303, %v6303
    %v6336 = vpack.c.b16 %v6304, %v6304
    %v6337 = vpack.c.b16 %v6305, %v6305
    %v6338 = vpack.c.b16 %v6306, %v6306
    %v6339 = vpack.c.b16 %v6307, %v6307
    %v6340 = vpack.c.b16 %v6308, %v6308
    %v6341 = vpack.c.b16 %v6309, %v6309
    %v6342 = vpack.c.b16 %v6310, %v6310
    %v6343 = vpack.c.b16 %v6311, %v6311
    %v6344 = vpack.c.b16 %v6312, %v6312
    %v6345 = vpack.c.b16 %v6313, %v6313
    %v6346 = vpack.c.b16 %v6314, %v6314
    %v6347 = vpack.c.b16 %v6315, %v6315
    %v6348 = vpack.c.b16 %v6316, %v6316
    %v6349 = vpack.c.b16 %v6317, %v6317
    %v6350 = vpack.c.b16 %v6318, %v6318
    %v6351 = vpack.c.b16 %v6319, %v6319
    %v6352 = vpack.c.b16 %v6320, %v6320
    %v6353 = vpack.c.b16 %v6321, %v6321
    %v6354 = vpack.c.b16 %v6322, %v6322
    %v6355 = vpack.c.b16 %v6323, %v6323
    %v6356 = vpack.c.b16 %v6324, %v6324
    %v6357 = vpack.c.b16 %v6325, %v6325
    %v6358 = vpack.c.b16 %v6326, %v6326
    %6391 = vst [vmem:[%s3599 + $0x4] sm:$0xf] %v6327
    %6392 = vst [vmem:[%s3599 + $0xc] sm:$0xf] %v6328
    %6393 = vst [vmem:[%s3599 + $0x14] sm:$0xf] %v6329
    %6394 = vst [vmem:[%s3599 + $0x1c] sm:$0xf] %v6330
    %6395 = vst [vmem:[%s3599 + $0x24] sm:$0xf] %v6331
    %6396 = vst [vmem:[%s3599 + $0x2c] sm:$0xf] %v6332
    %6397 = vst [vmem:[%s3599 + $0x34] sm:$0xf] %v6333
    %6398 = vst [vmem:[%s3599 + $0x3c] sm:$0xf] %v6334
    %6399 = vst [vmem:[%s3599 + $0x44] sm:$0xf] %v6335
    %6400 = vst [vmem:[%s3599 + $0x4c] sm:$0xf] %v6336
    %6401 = vst [vmem:[%s3599 + $0x54] sm:$0xf] %v6337
    %6402 = vst [vmem:[%s3599 + $0x5c] sm:$0xf] %v6338
    %6403 = vst [vmem:[%s3599 + $0x64] sm:$0xf] %v6339
    %6404 = vst [vmem:[%s3599 + $0x6c] sm:$0xf] %v6340
    %6405 = vst [vmem:[%s3599 + $0x74] sm:$0xf] %v6341
    %6406 = vst [vmem:[%s3599 + $0x7c] sm:$0xf] %v6342
    %6407 = vst [vmem:[%s3599 + $0x84] sm:$0xf] %v6343
    %6408 = vst [vmem:[%s3599 + $0x8c] sm:$0xf] %v6344
    %6409 = vst [vmem:[%s3599 + $0x94] sm:$0xf] %v6345
    %6410 = vst [vmem:[%s3599 + $0x9c] sm:$0xf] %v6346
    %6411 = vst [vmem:[%s3599 + $0xa4] sm:$0xf] %v6347
    %6412 = vst [vmem:[%s3599 + $0xac] sm:$0xf] %v6348
    %6413 = vst [vmem:[%s3599 + $0xb4] sm:$0xf] %v6349
    %6414 = vst [vmem:[%s3599 + $0xbc] sm:$0xf] %v6350
    %6415 = vst [vmem:[%s3599 + $0xc4] sm:$0xf] %v6351
    %6416 = vst [vmem:[%s3599 + $0xcc] sm:$0xf] %v6352
    %6417 = vst [vmem:[%s3599 + $0xd4] sm:$0xf] %v6353
    %6418 = vst [vmem:[%s3599 + $0xdc] sm:$0xf] %v6354
    %6419 = vst [vmem:[%s3599 + $0xe4] sm:$0xf] %v6355
    %6420 = vst [vmem:[%s3599 + $0xec] sm:$0xf] %v6356
    %6421 = vst [vmem:[%s3599 + $0xf4] sm:$0xf] %v6357
    %6422 = vst [vmem:[%s3599 + $0xfc] sm:$0xf] %v6358
    %v6423 = vmul.f32 %v3739, 0.5
    %v6424 = vmul.f32 %v3740, 0.5
    %6425 = vst [vmem:[#allocation4] sm:$0xff] %v6423
    %6426 = vst [vmem:[#allocation4 + $0x8] sm:$0xff] %v6424
    // Predicated region
    $region30: #{tpu_custom_call.1} parent=1 // pred_check
      _
    $region31: #{tpu_custom_call.1} parent=1 // pred_check_branch
      %6428 = sbr.rel (0) target = $region33
    $region32: #{tpu_custom_call.1} parent=1 // pred_region
      %s6430 = ssub.s32 32768, 32768
      %6431 = vsyncadd [#allocation3], %s6430
      %s6432 = sshll.u32 [#allocation2], 4
      %s6433 = int_to_ptr.vmem [resolvable:$true] %s6432
      %6438 = dma.vmem_to_hbm [thread:$0]  %s6433, 32768, %s7, [#allocation3], 128, 128, 8
    $region33: #{tpu_custom_call.1} parent=1 // pred_fallthru
      _
    // Predicated region
    $region34: #{tpu_custom_call.1} parent=1 // pred_check
      _
    $region35: #{tpu_custom_call.1} parent=1 // pred_check_branch
      %6440 = sbr.rel (0) target = $region37
    $region36: #{tpu_custom_call.1} parent=1 // pred_region
      %s6442 = ssub.s32 256, 256
      %6443 = vsyncadd [#allocation5], %s6442
      %s6445 = sshll.u32 [#allocation4], 4
      %s6446 = int_to_ptr.vmem [resolvable:$true] %s6445
      %6448 = dma.vmem_to_hbm [thread:$0]  %s6446, 256, %s8, [#allocation5]
    $region37: #{tpu_custom_call.1} parent=1 // pred_fallthru
      _
    // Predicated region
    $region38: #{tpu_custom_call.1} parent=1 // pred_check
      _
    $region39: #{tpu_custom_call.1} parent=1 // pred_check_branch
      %6450 = sbr.rel (0) target = $region41
    $region40: #{tpu_custom_call.1} parent=1 // pred_region
      %6451 = dma.done [#allocation3], 32768
    $region41: #{tpu_custom_call.1} parent=1 // pred_fallthru
      _
    // Predicated region
    $region42: #{tpu_custom_call.1} parent=1 // pred_check
      _
    $region43: #{tpu_custom_call.1} parent=1 // pred_check_branch
      %6453 = sbr.rel (0) target = $region45
    $region44: #{tpu_custom_call.1} parent=1 // pred_region
      %6454 = dma.done [#allocation5], 256
    $region45: #{tpu_custom_call.1} parent=1 // pred_fallthru
      _
    %6455 = vsyncpa [#allocation3], 1
    %6456 = vsyncpa [#allocation5], 1

</llo_original>
